<compile_context>
chip_gen: v7x
topology: tpu7x:2x2x1
jax: 0.10.0
libtpu: 0.0.40
codegen_flags: <defaults>
</compile_context>

<pallas_src>
import numpy as np

import jax
import jax.numpy as jnp
from jax.experimental import pallas as pl
from jax.experimental import pallas as _pl_unused  # noqa: F401
from jax.experimental.pallas import tpu as pltpu

# ----------------------------- model configuration ---------------------------
BATCH = 2
C_IN = 3
IMG = 24                      # input spatial size (H = W); must be >= 16 for this net
K1, K2, K3 = 7, 3, 3
C1, C2, C3 = 32, 64, 128
NUM_CLASSES = 10
NC_PAD = 128                  # lane-dense padded classifier width

# spatial sizes
CONV1_W = IMG - K1 + 1        # 18
CONV2_W = CONV1_W - K2 + 1    # 16
POOL1_W = CONV2_W // 2        # 8
CONV3_W = POOL1_W - K3 + 1    # 6
POOL2_W = CONV3_W // 2        # 3

# flattened-lane slice widths (per image)
X_POS = IMG * IMG                                  # 576
CONV1_POS = X_POS - (K1 - 1) * (IMG + 1)           # 426
CONV2_POS = CONV1_POS - (K2 - 1) * (IMG + 1)       # 376
POOL1_POS = CONV2_POS - (IMG + 1)                  # 351
SEL1_OUT = POOL1_W * POOL1_W                       # 64
CONV3_POS = SEL1_OUT - (K3 - 1) * (POOL1_W + 1)    # 46
POOL2_POS = CONV3_POS - (POOL1_W + 1)              # 37

# Assert the telescoping invariant: every valid read position stays in range.
assert (CONV1_W - 1) * (IMG + 1) < CONV1_POS
assert (CONV2_W - 1) * (IMG + 1) < CONV2_POS
assert 2 * (POOL1_W - 1) * (IMG + 1) < POOL1_POS
assert (CONV3_W - 1) * (POOL1_W + 1) < CONV3_POS
assert 2 * (POOL2_W - 1) * (POOL1_W + 1) < POOL2_POS


# ------------------------------- kernel helpers ------------------------------
def _conv_fold(act_bf16, w2d_ref, bias, ksize, row_stride, out_width):
    """Valid KxK conv as ONE deep-contraction MXU matmul (+ bias + ReLU).

    act_bf16 : (Cin, act_w) bf16, flattened spatial on lanes, row stride `row_stride`
    w2d_ref  : (Cout, K*K*Cin) bf16 ref, column index = dx*K*Cin + dy*Cin + cin
    bias     : (Cout, 1) f32
    returns  : (Cout, out_width) f32
    """
    wx = out_width + ksize - 1
    # level 1: stack dy row-shifts along sublanes -> (K*Cin, wx), row = dy*Cin + cin
    rows = jnp.concatenate(
        [act_bf16[:, dy * row_stride: dy * row_stride + wx] for dy in range(ksize)],
        axis=0)
    # level 2: stack dx lane-shifts -> (K*K*Cin, out_width), row = dx*K*Cin + dy*Cin + cin
    stacked = jnp.concatenate(
        [rows[:, dx: dx + out_width] for dx in range(ksize)], axis=0)
    y = jnp.dot(w2d_ref[...], stacked, preferred_element_type=jnp.float32)
    return jnp.maximum(y + bias, 0.0)


def _maxpool2x2(act, row_stride, out_width):
    """Elementwise max of the 4 positions of every 2x2 window (no subsampling)."""
    return jnp.maximum(
        jnp.maximum(act[:, 0:out_width], act[:, 1:1 + out_width]),
        jnp.maximum(act[:, row_stride:row_stride + out_width],
                    act[:, row_stride + 1:row_stride + 1 + out_width]))


# --------------------------------- the kernel --------------------------------
def fused_cnn_kernel(x_ref, w1_ref, b1_ref, w2_ref, b2_ref, w3_ref, b3_ref,
                     s1_ref, fcw_ref, fcb_ref, out_ref):
    # One image per grid step.  x_ref block: (1, C_IN, IMG*IMG) f32.
    x0 = x_ref[0].astype(jnp.bfloat16)                                   # (3, 576)

    # conv1 + ReLU   (row stride IMG)
    a1 = _conv_fold(x0, w1_ref, b1_ref[...], K1, IMG, CONV1_POS)         # (32, 426)
    # conv2 + ReLU
    a2 = _conv_fold(a1.astype(jnp.bfloat16), w2_ref, b2_ref[...],
                    K2, IMG, CONV2_POS)                                  # (64, 376)

    # maxpool 2x2: window max, then stride-2 compaction via bf16 one-hot matmul
    # (gather-as-matmul; one-hot selection of bf16 values is exact).
    # dropout1: inference no-op.
    m1 = _maxpool2x2(a2, IMG, POOL1_POS)                                 # (64, 351)
    a3 = jnp.dot(m1.astype(jnp.bfloat16), s1_ref[...],
                 preferred_element_type=jnp.float32)                     # (64, 64)

    # conv3 + ReLU   (row stride POOL1_W)
    a4 = _conv_fold(a3.astype(jnp.bfloat16), w3_ref, b3_ref[...],
                    K3, POOL1_W, CONV3_POS)                              # (128, 46)

    # maxpool 2x2 + AdaptiveAvgPool((1,1)): window max, then sum the 9 valid
    # stride-2 anchors with static lane slices and one f32 (1/9) post-scale.
    # dropout2: inference no-op.
    m4 = _maxpool2x2(a4, POOL1_W, POOL2_POS)                             # (128, 37)
    h = None
    for y in range(POOL2_W):
        for x in range(POOL2_W):
            p = 2 * y * POOL1_W + 2 * x
            v = m4[:, p:p + 1]
            h = v if h is None else h + v
    h = h * (1.0 / (POOL2_W * POOL2_W))                                  # (128, 1) f32

    # classifier: contract over channels (sublanes) with a VPU multiply +
    # sublane reduction -- no activation transpose, lane-dense (1, 128) output.
    logits = jnp.sum(h * fcw_ref[...], axis=0, keepdims=True) + fcb_ref[...]
    out_ref[0] = logits                                                  # (1, NC_PAD)


# ------------------------- host-side constant builders -----------------------
def _make_pool1_select():
    """Per-image one-hot (POOL1_POS, 64): column y*8+x picks lane 2y*IMG + 2x."""
    s = np.zeros((POOL1_POS, SEL1_OUT), np.float32)
    for y in range(POOL1_W):
        for x in range(POOL1_W):
            s[2 * y * IMG + 2 * x, y * POOL1_W + x] = 1.0
    return s


def _conv_w2d(w):
    """(Cout, Cin, kH, kW) torch layout -> (Cout, K*K*Cin) bf16,
    column index = dx*K*Cin + dy*Cin + cin (matches _conv_fold stacking)."""
    cout, cin, k, _ = w.shape
    return jnp.transpose(w, (0, 3, 2, 1)).reshape(cout, k * k * cin).astype(jnp.bfloat16)


def prepare_params(params):
    """One-time reformatting of weights/constants (hoisted out of the jitted fwd)."""
    fcw = jnp.zeros((C3, NC_PAD), jnp.float32).at[:, :NUM_CLASSES].set(params["fc_w"].T)
    fcb = jnp.zeros((1, NC_PAD), jnp.float32).at[:, :NUM_CLASSES].set(params["fc_b"][None, :])
    return {
        "w1": _conv_w2d(params["w1"]), "b1": params["b1"].reshape(C1, 1),
        "w2": _conv_w2d(params["w2"]), "b2": params["b2"].reshape(C2, 1),
        "w3": _conv_w2d(params["w3"]), "b3": params["b3"].reshape(C3, 1),
        "s1": jnp.asarray(_make_pool1_select(), dtype=jnp.bfloat16),
        "fcw": fcw, "fcb": fcb,
    }


# --------------------------------- forward -----------------------------------
def base_model_forward(x, p):
    """x: (B, C_IN, IMG, IMG) NCHW float32, p = prepare_params(...) -> (B, NUM_CLASSES)."""
    batch = x.shape[0]
    x3 = x.reshape(batch, C_IN, IMG * IMG)            # contiguous reshape, free

    out = pl.pallas_call(
        fused_cnn_kernel,
        out_shape=jax.ShapeDtypeStruct((batch, 1, NC_PAD), jnp.float32),
        grid=(batch,),
        in_specs=[
            pl.BlockSpec((1, C_IN, IMG * IMG), lambda b: (b, 0, 0)),
            pl.BlockSpec(p["w1"].shape, lambda b: (0, 0)),
            pl.BlockSpec(p["b1"].shape, lambda b: (0, 0)),
            pl.BlockSpec(p["w2"].shape, lambda b: (0, 0)),
            pl.BlockSpec(p["b2"].shape, lambda b: (0, 0)),
            pl.BlockSpec(p["w3"].shape, lambda b: (0, 0)),
            pl.BlockSpec(p["b3"].shape, lambda b: (0, 0)),
            pl.BlockSpec(p["s1"].shape, lambda b: (0, 0)),
            pl.BlockSpec(p["fcw"].shape, lambda b: (0, 0)),
            pl.BlockSpec(p["fcb"].shape, lambda b: (0, 0)),
        ],
        out_specs=pl.BlockSpec((1, 1, NC_PAD), lambda b: (b, 0, 0)),
        compiler_params=pltpu.CompilerParams(dimension_semantics=("parallel",)),
    )(x3, p["w1"], p["b1"], p["w2"], p["b2"], p["w3"], p["b3"],
      p["s1"], p["fcw"], p["fcb"])

    return out[:, 0, :NUM_CLASSES]


# ----------------------------- pure-JAX reference ----------------------------
def reference_forward(x, params):
    def conv(z, w, b):
        wq = w.astype(jnp.bfloat16).astype(jnp.float32)  # match kernel's bf16 weights
        y = jax.lax.conv_general_dilated(
            z, wq, window_strides=(1, 1), padding="VALID",
            dimension_numbers=("NCHW", "OIHW", "NCHW"),
            precision=jax.lax.Precision.HIGHEST)
        return y + b[None, :, None, None]

    def maxpool(z):
        return jax.lax.reduce_window(z, -jnp.inf, jax.lax.max,
                                     (1, 1, 2, 2), (1, 1, 2, 2), "VALID")

    y = jax.nn.relu(conv(x, params["w1"], params["b1"]))
    y = jax.nn.relu(conv(y, params["w2"], params["b2"]))
    y = maxpool(y)
    y = jax.nn.relu(conv(y, params["w3"], params["b3"]))
    y = maxpool(y)
    y = jnp.mean(y, axis=(2, 3))                      # AdaptiveAvgPool2d((1,1)) + flatten
    return y @ params["fc_w"].T + params["fc_b"][None, :]


# -------------------------- deterministic initializers ------------------------
def init_params(key):
    ks = jax.random.split(key, 5)

    def conv_init(k, cout, cin, ksz):
        bound = 1.0 / np.sqrt(cin * ksz * ksz)
        kw, kb = jax.random.split(k)
        w = jax.random.uniform(kw, (cout, cin, ksz, ksz), jnp.float32, -bound, bound)
        b = jax.random.uniform(kb, (cout,), jnp.float32, -bound, bound)
        return w, b

    w1, b1 = conv_init(ks[0], C1, C_IN, K1)
    w2, b2 = conv_init(ks[1], C2, C1, K2)
    w3, b3 = conv_init(ks[2], C3, C2, K3)
    bound = 1.0 / np.sqrt(C3)
    fc_w = jax.random.uniform(ks[3], (NUM_CLASSES, C3), jnp.float32, -bound, bound)
    fc_b = jax.random.uniform(ks[4], (NUM_CLASSES,), jnp.float32, -bound, bound)
    return {"w1": w1, "b1": b1, "w2": w2, "b2": b2, "w3": w3, "b3": b3,
            "fc_w": fc_w, "fc_b": fc_b}


if __name__ == "__main__":
    key = jax.random.PRNGKey(0)
    pkey, xkey = jax.random.split(key)
    params = init_params(pkey)
    prep = prepare_params(params)          # one-time weight reformatting (not per call)

    x = jax.random.normal(xkey, (BATCH, C_IN, IMG, IMG), jnp.float32)  # NCHW

    fwd = jax.jit(base_model_forward)
    logits = jax.block_until_ready(fwd(x, prep))

    assert logits.shape == (BATCH, NUM_CLASSES), logits.shape
    assert bool(jnp.all(jnp.isfinite(logits)))

    # Reference mirrors bf16 conv-weight quantization; intermediate bf16 activation
    # casts are absorbed by the tolerance.
    ref = reference_forward(x, params)
    np.testing.assert_allclose(np.asarray(logits), np.asarray(ref),
                               rtol=5e-2, atol=2e-2)
    print("KERNEL_OK")
</pallas_src>

<mosaic_0001>
module attributes {stable_mosaic.version = 11 : i64} {
  func.func @fused_cnn_kernel(%arg0: i32, %arg1: memref<1x3x576xf32, #tpu.memory_space<vmem>>, %arg2: memref<32x147xbf16, #tpu.memory_space<vmem>>, %arg3: memref<32x1xf32, #tpu.memory_space<vmem>>, %arg4: memref<64x288xbf16, #tpu.memory_space<vmem>>, %arg5: memref<64x1xf32, #tpu.memory_space<vmem>>, %arg6: memref<128x576xbf16, #tpu.memory_space<vmem>>, %arg7: memref<128x1xf32, #tpu.memory_space<vmem>>, %arg8: memref<351x64xbf16, #tpu.memory_space<vmem>>, %arg9: memref<128x128xf32, #tpu.memory_space<vmem>>, %arg10: memref<1x128xf32, #tpu.memory_space<vmem>>, %arg11: memref<1x1x128xf32, #tpu.memory_space<vmem>>) attributes {dimension_semantics = [#tpu.dimension_semantics<parallel>], iteration_bounds = array<i64: 2>, scalar_prefetch = 0 : i64, scratch_operands = 0 : i64, tpu.core_type = #tpu.core_type<tc>, window_params = [{transform_indices = @transform_0, window_bounds = array<i64: 1, 3, 576>}, {pipeline_mode = #tpu.pipeline_mode<synchronous>, transform_indices = @transform_1, window_bounds = array<i64: 32, 147>}, {pipeline_mode = #tpu.pipeline_mode<synchronous>, transform_indices = @transform_2, window_bounds = array<i64: 32, 1>}, {pipeline_mode = #tpu.pipeline_mode<synchronous>, transform_indices = @transform_3, window_bounds = array<i64: 64, 288>}, {pipeline_mode = #tpu.pipeline_mode<synchronous>, transform_indices = @transform_4, window_bounds = array<i64: 64, 1>}, {pipeline_mode = #tpu.pipeline_mode<synchronous>, transform_indices = @transform_5, window_bounds = array<i64: 128, 576>}, {pipeline_mode = #tpu.pipeline_mode<synchronous>, transform_indices = @transform_6, window_bounds = array<i64: 128, 1>}, {pipeline_mode = #tpu.pipeline_mode<synchronous>, transform_indices = @transform_7, window_bounds = array<i64: 351, 64>}, {pipeline_mode = #tpu.pipeline_mode<synchronous>, transform_indices = @transform_8, window_bounds = array<i64: 128, 128>}, {pipeline_mode = #tpu.pipeline_mode<synchronous>, transform_indices = @transform_9, window_bounds = array<i64: 1, 128>}, {transform_indices = @transform_10, window_bounds = array<i64: 1, 1, 128>}]} {
    %c0 = arith.constant 0 : index
    %c0_0 = arith.constant 0 : index
    %c0_1 = arith.constant 0 : index
    %0 = vector.load %arg1[%c0, %c0_0, %c0_1] : memref<1x3x576xf32, #tpu.memory_space<vmem>>, vector<1x3x576xf32>
    %1 = vector.shape_cast %0 : vector<1x3x576xf32> to vector<3x576xf32>
    %2 = arith.truncf %1 : vector<3x576xf32> to vector<3x576xbf16>
    %c0_2 = arith.constant 0 : index
    %c0_3 = arith.constant 0 : index
    %3 = vector.load %arg3[%c0_2, %c0_3] : memref<32x1xf32, #tpu.memory_space<vmem>>, vector<32x1xf32>
    %4 = vector.extract_strided_slice %2 {offsets = [0, 0], sizes = [3, 432], strides = [1, 1]} : vector<3x576xbf16> to vector<3x432xbf16>
    %5 = vector.extract_strided_slice %2 {offsets = [0, 24], sizes = [3, 432], strides = [1, 1]} : vector<3x576xbf16> to vector<3x432xbf16>
    %6 = vector.extract_strided_slice %2 {offsets = [0, 48], sizes = [3, 432], strides = [1, 1]} : vector<3x576xbf16> to vector<3x432xbf16>
    %7 = vector.extract_strided_slice %2 {offsets = [0, 72], sizes = [3, 432], strides = [1, 1]} : vector<3x576xbf16> to vector<3x432xbf16>
    %8 = vector.extract_strided_slice %2 {offsets = [0, 96], sizes = [3, 432], strides = [1, 1]} : vector<3x576xbf16> to vector<3x432xbf16>
    %9 = vector.extract_strided_slice %2 {offsets = [0, 120], sizes = [3, 432], strides = [1, 1]} : vector<3x576xbf16> to vector<3x432xbf16>
    %10 = vector.extract_strided_slice %2 {offsets = [0, 144], sizes = [3, 432], strides = [1, 1]} : vector<3x576xbf16> to vector<3x432xbf16>
    %11 = tpu.concatenate %4, %5, %6, %7, %8, %9, %10 in 0 : vector<3x432xbf16>, vector<3x432xbf16>, vector<3x432xbf16>, vector<3x432xbf16>, vector<3x432xbf16>, vector<3x432xbf16>, vector<3x432xbf16> -> vector<21x432xbf16>
    %12 = vector.extract_strided_slice %11 {offsets = [0, 0], sizes = [21, 426], strides = [1, 1]} : vector<21x432xbf16> to vector<21x426xbf16>
    %13 = vector.extract_strided_slice %11 {offsets = [0, 1], sizes = [21, 426], strides = [1, 1]} : vector<21x432xbf16> to vector<21x426xbf16>
    %14 = vector.extract_strided_slice %11 {offsets = [0, 2], sizes = [21, 426], strides = [1, 1]} : vector<21x432xbf16> to vector<21x426xbf16>
    %15 = vector.extract_strided_slice %11 {offsets = [0, 3], sizes = [21, 426], strides = [1, 1]} : vector<21x432xbf16> to vector<21x426xbf16>
    %16 = vector.extract_strided_slice %11 {offsets = [0, 4], sizes = [21, 426], strides = [1, 1]} : vector<21x432xbf16> to vector<21x426xbf16>
    %17 = vector.extract_strided_slice %11 {offsets = [0, 5], sizes = [21, 426], strides = [1, 1]} : vector<21x432xbf16> to vector<21x426xbf16>
    %18 = vector.extract_strided_slice %11 {offsets = [0, 6], sizes = [21, 426], strides = [1, 1]} : vector<21x432xbf16> to vector<21x426xbf16>
    %19 = tpu.concatenate %12, %13, %14, %15, %16, %17, %18 in 0 : vector<21x426xbf16>, vector<21x426xbf16>, vector<21x426xbf16>, vector<21x426xbf16>, vector<21x426xbf16>, vector<21x426xbf16>, vector<21x426xbf16> -> vector<147x426xbf16>
    %c0_4 = arith.constant 0 : index
    %c0_5 = arith.constant 0 : index
    %20 = vector.load %arg2[%c0_4, %c0_5] : memref<32x147xbf16, #tpu.memory_space<vmem>>, vector<32x147xbf16>
    %cst = arith.constant dense<0.000000e+00> : vector<32x426xf32>
    %21 = tpu.matmul %20, %19, %cst {dimension_numbers = #tpu.dot_dimension_numbers<[1], [0], [0], [1], [0, 0, 1, 1], [], []>} : vector<32x147xbf16>, vector<147x426xbf16>, vector<32x426xf32> -> vector<32x426xf32>
    %22 = vector.broadcast %3 : vector<32x1xf32> to vector<32x426xf32>
    %23 = arith.addf %21, %22 : vector<32x426xf32>
    %cst_6 = arith.constant 0.000000e+00 : f32
    %24 = vector.broadcast %cst_6 : f32 to vector<32x426xf32>
    %25 = arith.maximumf %23, %24 : vector<32x426xf32>
    %26 = arith.truncf %25 : vector<32x426xf32> to vector<32x426xbf16>
    %c0_7 = arith.constant 0 : index
    %c0_8 = arith.constant 0 : index
    %27 = vector.load %arg5[%c0_7, %c0_8] : memref<64x1xf32, #tpu.memory_space<vmem>>, vector<64x1xf32>
    %28 = vector.extract_strided_slice %26 {offsets = [0, 0], sizes = [32, 378], strides = [1, 1]} : vector<32x426xbf16> to vector<32x378xbf16>
    %29 = vector.extract_strided_slice %26 {offsets = [0, 24], sizes = [32, 378], strides = [1, 1]} : vector<32x426xbf16> to vector<32x378xbf16>
    %30 = vector.extract_strided_slice %26 {offsets = [0, 48], sizes = [32, 378], strides = [1, 1]} : vector<32x426xbf16> to vector<32x378xbf16>
    %31 = tpu.concatenate %28, %29, %30 in 0 : vector<32x378xbf16>, vector<32x378xbf16>, vector<32x378xbf16> -> vector<96x378xbf16>
    %32 = vector.extract_strided_slice %31 {offsets = [0, 0], sizes = [96, 376], strides = [1, 1]} : vector<96x378xbf16> to vector<96x376xbf16>
    %33 = vector.extract_strided_slice %31 {offsets = [0, 1], sizes = [96, 376], strides = [1, 1]} : vector<96x378xbf16> to vector<96x376xbf16>
    %34 = vector.extract_strided_slice %31 {offsets = [0, 2], sizes = [96, 376], strides = [1, 1]} : vector<96x378xbf16> to vector<96x376xbf16>
    %35 = tpu.concatenate %32, %33, %34 in 0 : vector<96x376xbf16>, vector<96x376xbf16>, vector<96x376xbf16> -> vector<288x376xbf16>
    %c0_9 = arith.constant 0 : index
    %c0_10 = arith.constant 0 : index
    %36 = vector.load %arg4[%c0_9, %c0_10] : memref<64x288xbf16, #tpu.memory_space<vmem>>, vector<64x288xbf16>
    %cst_11 = arith.constant dense<0.000000e+00> : vector<64x376xf32>
    %37 = tpu.matmul %36, %35, %cst_11 {dimension_numbers = #tpu.dot_dimension_numbers<[1], [0], [0], [1], [0, 0, 1, 1], [], []>} : vector<64x288xbf16>, vector<288x376xbf16>, vector<64x376xf32> -> vector<64x376xf32>
    %38 = vector.broadcast %27 : vector<64x1xf32> to vector<64x376xf32>
    %39 = arith.addf %37, %38 : vector<64x376xf32>
    %cst_12 = arith.constant 0.000000e+00 : f32
    %40 = vector.broadcast %cst_12 : f32 to vector<64x376xf32>
    %41 = arith.maximumf %39, %40 : vector<64x376xf32>
    %42 = vector.extract_strided_slice %41 {offsets = [0, 0], sizes = [64, 351], strides = [1, 1]} : vector<64x376xf32> to vector<64x351xf32>
    %43 = vector.extract_strided_slice %41 {offsets = [0, 1], sizes = [64, 351], strides = [1, 1]} : vector<64x376xf32> to vector<64x351xf32>
    %44 = arith.maximumf %42, %43 : vector<64x351xf32>
    %45 = vector.extract_strided_slice %41 {offsets = [0, 24], sizes = [64, 351], strides = [1, 1]} : vector<64x376xf32> to vector<64x351xf32>
    %46 = vector.extract_strided_slice %41 {offsets = [0, 25], sizes = [64, 351], strides = [1, 1]} : vector<64x376xf32> to vector<64x351xf32>
    %47 = arith.maximumf %45, %46 : vector<64x351xf32>
    %48 = arith.maximumf %44, %47 : vector<64x351xf32>
    %49 = arith.truncf %48 : vector<64x351xf32> to vector<64x351xbf16>
    %c0_13 = arith.constant 0 : index
    %c0_14 = arith.constant 0 : index
    %50 = vector.load %arg8[%c0_13, %c0_14] : memref<351x64xbf16, #tpu.memory_space<vmem>>, vector<351x64xbf16>
    %cst_15 = arith.constant dense<0.000000e+00> : vector<64x64xf32>
    %51 = tpu.matmul %49, %50, %cst_15 {dimension_numbers = #tpu.dot_dimension_numbers<[1], [0], [0], [1], [0, 0, 1, 1], [], []>} : vector<64x351xbf16>, vector<351x64xbf16>, vector<64x64xf32> -> vector<64x64xf32>
    %52 = arith.truncf %51 : vector<64x64xf32> to vector<64x64xbf16>
    %c0_16 = arith.constant 0 : index
    %c0_17 = arith.constant 0 : index
    %53 = vector.load %arg7[%c0_16, %c0_17] : memref<128x1xf32, #tpu.memory_space<vmem>>, vector<128x1xf32>
    %54 = vector.extract_strided_slice %52 {offsets = [0, 0], sizes = [64, 48], strides = [1, 1]} : vector<64x64xbf16> to vector<64x48xbf16>
    %55 = vector.extract_strided_slice %52 {offsets = [0, 8], sizes = [64, 48], strides = [1, 1]} : vector<64x64xbf16> to vector<64x48xbf16>
    %56 = vector.extract_strided_slice %52 {offsets = [0, 16], sizes = [64, 48], strides = [1, 1]} : vector<64x64xbf16> to vector<64x48xbf16>
    %57 = tpu.concatenate %54, %55, %56 in 0 : vector<64x48xbf16>, vector<64x48xbf16>, vector<64x48xbf16> -> vector<192x48xbf16>
    %58 = vector.extract_strided_slice %57 {offsets = [0, 0], sizes = [192, 46], strides = [1, 1]} : vector<192x48xbf16> to vector<192x46xbf16>
    %59 = vector.extract_strided_slice %57 {offsets = [0, 1], sizes = [192, 46], strides = [1, 1]} : vector<192x48xbf16> to vector<192x46xbf16>
    %60 = vector.extract_strided_slice %57 {offsets = [0, 2], sizes = [192, 46], strides = [1, 1]} : vector<192x48xbf16> to vector<192x46xbf16>
    %61 = tpu.concatenate %58, %59, %60 in 0 : vector<192x46xbf16>, vector<192x46xbf16>, vector<192x46xbf16> -> vector<576x46xbf16>
    %c0_18 = arith.constant 0 : index
    %c0_19 = arith.constant 0 : index
    %62 = vector.load %arg6[%c0_18, %c0_19] : memref<128x576xbf16, #tpu.memory_space<vmem>>, vector<128x576xbf16>
    %cst_20 = arith.constant dense<0.000000e+00> : vector<128x46xf32>
    %63 = tpu.matmul %62, %61, %cst_20 {dimension_numbers = #tpu.dot_dimension_numbers<[1], [0], [0], [1], [0, 0, 1, 1], [], []>} : vector<128x576xbf16>, vector<576x46xbf16>, vector<128x46xf32> -> vector<128x46xf32>
    %64 = vector.broadcast %53 : vector<128x1xf32> to vector<128x46xf32>
    %65 = arith.addf %63, %64 : vector<128x46xf32>
    %cst_21 = arith.constant 0.000000e+00 : f32
    %66 = vector.broadcast %cst_21 : f32 to vector<128x46xf32>
    %67 = arith.maximumf %65, %66 : vector<128x46xf32>
    %68 = vector.extract_strided_slice %67 {offsets = [0, 0], sizes = [128, 37], strides = [1, 1]} : vector<128x46xf32> to vector<128x37xf32>
    %69 = vector.extract_strided_slice %67 {offsets = [0, 1], sizes = [128, 37], strides = [1, 1]} : vector<128x46xf32> to vector<128x37xf32>
    %70 = arith.maximumf %68, %69 : vector<128x37xf32>
    %71 = vector.extract_strided_slice %67 {offsets = [0, 8], sizes = [128, 37], strides = [1, 1]} : vector<128x46xf32> to vector<128x37xf32>
    %72 = vector.extract_strided_slice %67 {offsets = [0, 9], sizes = [128, 37], strides = [1, 1]} : vector<128x46xf32> to vector<128x37xf32>
    %73 = arith.maximumf %71, %72 : vector<128x37xf32>
    %74 = arith.maximumf %70, %73 : vector<128x37xf32>
    %75 = vector.extract_strided_slice %74 {offsets = [0, 0], sizes = [128, 1], strides = [1, 1]} : vector<128x37xf32> to vector<128x1xf32>
    %76 = vector.extract_strided_slice %74 {offsets = [0, 2], sizes = [128, 1], strides = [1, 1]} : vector<128x37xf32> to vector<128x1xf32>
    %77 = arith.addf %75, %76 : vector<128x1xf32>
    %78 = vector.extract_strided_slice %74 {offsets = [0, 4], sizes = [128, 1], strides = [1, 1]} : vector<128x37xf32> to vector<128x1xf32>
    %79 = arith.addf %77, %78 : vector<128x1xf32>
    %80 = vector.extract_strided_slice %74 {offsets = [0, 16], sizes = [128, 1], strides = [1, 1]} : vector<128x37xf32> to vector<128x1xf32>
    %81 = arith.addf %79, %80 : vector<128x1xf32>
    %82 = vector.extract_strided_slice %74 {offsets = [0, 18], sizes = [128, 1], strides = [1, 1]} : vector<128x37xf32> to vector<128x1xf32>
    %83 = arith.addf %81, %82 : vector<128x1xf32>
    %84 = vector.extract_strided_slice %74 {offsets = [0, 20], sizes = [128, 1], strides = [1, 1]} : vector<128x37xf32> to vector<128x1xf32>
    %85 = arith.addf %83, %84 : vector<128x1xf32>
    %86 = vector.extract_strided_slice %74 {offsets = [0, 32], sizes = [128, 1], strides = [1, 1]} : vector<128x37xf32> to vector<128x1xf32>
    %87 = arith.addf %85, %86 : vector<128x1xf32>
    %88 = vector.extract_strided_slice %74 {offsets = [0, 34], sizes = [128, 1], strides = [1, 1]} : vector<128x37xf32> to vector<128x1xf32>
    %89 = arith.addf %87, %88 : vector<128x1xf32>
    %90 = vector.extract_strided_slice %74 {offsets = [0, 36], sizes = [128, 1], strides = [1, 1]} : vector<128x37xf32> to vector<128x1xf32>
    %91 = arith.addf %89, %90 : vector<128x1xf32>
    %cst_22 = arith.constant 0.111111112 : f32
    %92 = vector.broadcast %cst_22 : f32 to vector<128x1xf32>
    %93 = arith.mulf %91, %92 : vector<128x1xf32>
    %c0_23 = arith.constant 0 : index
    %c0_24 = arith.constant 0 : index
    %94 = vector.load %arg9[%c0_23, %c0_24] : memref<128x128xf32, #tpu.memory_space<vmem>>, vector<128x128xf32>
    %95 = vector.broadcast %93 : vector<128x1xf32> to vector<128x128xf32>
    %96 = arith.mulf %95, %94 : vector<128x128xf32>
    %cst_25 = arith.constant dense<0.000000e+00> : vector<128xf32>
    %97 = vector.multi_reduction <add>, %96, %cst_25 [0] : vector<128x128xf32> to vector<128xf32>
    %98 = vector.shape_cast %97 : vector<128xf32> to vector<1x128xf32>
    %c0_26 = arith.constant 0 : index
    %c0_27 = arith.constant 0 : index
    %99 = vector.load %arg10[%c0_26, %c0_27] : memref<1x128xf32, #tpu.memory_space<vmem>>, vector<1x128xf32>
    %100 = arith.addf %98, %99 : vector<1x128xf32>
    %c0_28 = arith.constant 0 : index
    %c0_29 = arith.constant 0 : index
    %c0_30 = arith.constant 0 : index
    %101 = vector.load %arg11[%c0_28, %c0_29, %c0_30] : memref<1x1x128xf32, #tpu.memory_space<vmem>>, vector<1x1x128xf32>
    %102 = vector.shape_cast %101 : vector<1x1x128xf32> to vector<1x128xf32>
    %103 = vector.shape_cast %100 : vector<1x128xf32> to vector<1x1x128xf32>
    tpu.vector_store %arg11[%c0_28, %c0_29, %c0_30], %103 {strides = array<i32>} : memref<1x1x128xf32, #tpu.memory_space<vmem>>, vector<1x1x128xf32>,
    return
  }
  func.func @transform_0(%arg0: i32) -> (i32, i32, i32) {
    %c0_i32 = arith.constant 0 : i32
    %c0_i32_0 = arith.constant 0 : i32
    %c0_i32_1 = arith.constant 0 : i32
    return %arg0, %c0_i32, %c0_i32_0 : i32, i32, i32
  }
  func.func @transform_1(%arg0: i32) -> (i32, i32) {
    %c0_i32 = arith.constant 0 : i32
    %c0_i32_0 = arith.constant 0 : i32
    %c0_i32_1 = arith.constant 0 : i32
    return %c0_i32, %c0_i32_0 : i32, i32
  }
  func.func @transform_2(%arg0: i32) -> (i32, i32) {
    %c0_i32 = arith.constant 0 : i32
    %c0_i32_0 = arith.constant 0 : i32
    %c0_i32_1 = arith.constant 0 : i32
    return %c0_i32, %c0_i32_0 : i32, i32
  }
  func.func @transform_3(%arg0: i32) -> (i32, i32) {
    %c0_i32 = arith.constant 0 : i32
    %c0_i32_0 = arith.constant 0 : i32
    %c0_i32_1 = arith.constant 0 : i32
    return %c0_i32, %c0_i32_0 : i32, i32
  }
  func.func @transform_4(%arg0: i32) -> (i32, i32) {
    %c0_i32 = arith.constant 0 : i32
    %c0_i32_0 = arith.constant 0 : i32
    %c0_i32_1 = arith.constant 0 : i32
    return %c0_i32, %c0_i32_0 : i32, i32
  }
  func.func @transform_5(%arg0: i32) -> (i32, i32) {
    %c0_i32 = arith.constant 0 : i32
    %c0_i32_0 = arith.constant 0 : i32
    %c0_i32_1 = arith.constant 0 : i32
    return %c0_i32, %c0_i32_0 : i32, i32
  }
  func.func @transform_6(%arg0: i32) -> (i32, i32) {
    %c0_i32 = arith.constant 0 : i32
    %c0_i32_0 = arith.constant 0 : i32
    %c0_i32_1 = arith.constant 0 : i32
    return %c0_i32, %c0_i32_0 : i32, i32
  }
  func.func @transform_7(%arg0: i32) -> (i32, i32) {
    %c0_i32 = arith.constant 0 : i32
    %c0_i32_0 = arith.constant 0 : i32
    %c0_i32_1 = arith.constant 0 : i32
    return %c0_i32, %c0_i32_0 : i32, i32
  }
  func.func @transform_8(%arg0: i32) -> (i32, i32) {
    %c0_i32 = arith.constant 0 : i32
    %c0_i32_0 = arith.constant 0 : i32
    %c0_i32_1 = arith.constant 0 : i32
    return %c0_i32, %c0_i32_0 : i32, i32
  }
  func.func @transform_9(%arg0: i32) -> (i32, i32) {
    %c0_i32 = arith.constant 0 : i32
    %c0_i32_0 = arith.constant 0 : i32
    %c0_i32_1 = arith.constant 0 : i32
    return %c0_i32, %c0_i32_0 : i32, i32
  }
  func.func @transform_10(%arg0: i32) -> (i32, i32, i32) {
    %c0_i32 = arith.constant 0 : i32
    %c0_i32_0 = arith.constant 0 : i32
    %c0_i32_1 = arith.constant 0 : i32
    return %arg0, %c0_i32, %c0_i32_0 : i32, i32, i32
  }
}

</mosaic_0001>

<llo_original>
// kernel: base_model_forward.1
$region0: #{base_model_forward.1}
  #allocation0 [shape = 'u32[]', space=smem, size = 0x4, offset = 0x4, fixed_abs, tag = 'smem constant byte address 0x4 - core index']
  #allocation1 [shape = 'u32[144,128]{1,0:T(1,128)}', space=vmem, size = 0x12000, scoped, tag = 'internal scratch']
  %s0 = inlined_call_operand.vmem [shape: f32[2,3,576], index: 0, kind: input, shape index: {}]
  %s1 = inlined_call_operand.vmem [shape: bf16[32,147], index: 1, kind: input, shape index: {}]
  %s2 = inlined_call_operand.vmem [shape: f32[32,1], index: 2, kind: input, shape index: {}]
  %s3 = inlined_call_operand.vmem [shape: bf16[64,288], index: 3, kind: input, shape index: {}]
  %s4 = inlined_call_operand.vmem [shape: f32[64,1], index: 4, kind: input, shape index: {}]
  %s5 = inlined_call_operand.vmem [shape: bf16[128,576], index: 5, kind: input, shape index: {}]
  %s6 = inlined_call_operand.vmem [shape: f32[128,1], index: 6, kind: input, shape index: {}]
  %s7 = inlined_call_operand.vmem [shape: bf16[351,64], index: 7, kind: input, shape index: {}]
  %s8 = inlined_call_operand.vmem [shape: f32[128,128], index: 8, kind: input, shape index: {}]
  %s9 = inlined_call_operand.vmem [shape: f32[1,128], index: 9, kind: input, shape index: {}]
  %s10 = inlined_call_operand.hbm [shape: f32[2,1,128], index: 10, kind: output, shape index: {}]
  %s11 = sld [smem:[#allocation0]]
  $region73: #{base_model_forward.1} parent=0
    _
  %s13 = ssub.s32 1, %s11
  %s14 = scalar_select 0, %s13, %s11
  $region1: #{base_model_forward.1} parent=0
    #allocation2 [shape = 'u8[1024]{0}', space=vmem, size = 0x400, scoped, tag = 'output window, operand 0']
    #allocation3 [shape = 's32[2]{0}', space=sflag, size = 0x8, scoped, tag = 'scoped memory for base_model_forward.1']
    %15 = vsyncpa [#allocation3], 0
    %s16 = scalar_lea.sflag [#allocation3], 1
    %17 = vsyncpa %s16, 0
    loop: start=0, step=1, limit=4
    $region2: #{base_model_forward.1} parent=1 // loop_pre_header
      _
    $region3: #{base_model_forward.1} parent=1 // loop_header
      %s19 = sphi 0, %s23
      %p20 = scmp.ge.s32.totalorder %s19, 4
      %s29 = sphi 0, %s31
      %s32 = sphi 0, %s29
      %s33 = sphi 0, %s32
      %s49 = sphi 0, %s33
      %s53 = sphi 0, %s53
      %s55 = sphi 0, %s53
      %s56 = sphi 0, %s55
      %s70 = sphi 0, %s56
      %s74 = sphi 0, %s74
      %s76 = sphi 0, %s74
      %s77 = sphi 0, %s76
      %s91 = sphi 0, %s77
      %s95 = sphi 0, %s95
      %s97 = sphi 0, %s95
      %s98 = sphi 0, %s97
      %s112 = sphi 0, %s98
      %s116 = sphi 0, %s116
      %s118 = sphi 0, %s116
      %s119 = sphi 0, %s118
      %s133 = sphi 0, %s119
      %s137 = sphi 0, %s137
      %s139 = sphi 0, %s137
      %s140 = sphi 0, %s139
      %s154 = sphi 0, %s140
      %s158 = sphi 0, %s158
      %s160 = sphi 0, %s158
      %s161 = sphi 0, %s160
      %s175 = sphi 0, %s161
      %s179 = sphi 0, %s179
      %s181 = sphi 0, %s179
      %s182 = sphi 0, %s181
      %s196 = sphi 0, %s182
      %s200 = sphi 0, %s200
      %s202 = sphi 0, %s200
      %s203 = sphi 0, %s202
      %s217 = sphi 0, %s203
      %s221 = sphi 0, %s221
      %s223 = sphi 0, %s221
      %s224 = sphi 0, %s223
      %s238 = sphi 0, %s224
      %s244 = sphi 0, %s246
      %s247 = sphi 0, %s244
      %s248 = sphi 0, %s247
      %s264 = sphi 0, %s248
    $region4: #{base_model_forward.1} parent=1 // loop_header_branch
      %22 = sbr.rel (%p20) target = $region8
    $region5: #{base_model_forward.1} parent=1 // loop_body
      %s24 = ssub.s32 %s19, 1
      %s25 = ssub.s32 %s19, 2
      %s26 = sadd.s32 %s19, 1
      %s27 = ssub.s32 %s19, %s26
      %p28 = scmp.eq.s32.totalorder %s27, 0
      %s30 = sadd.s32 %s29, 1
      %s31 = scalar_select %p28, %s29, %s30
      %p34 = pneg %p28
      %p35 = scmp.eq.s32.totalorder %s19, 1
      %p36 = por %p34, %p35
      %p37 = scmp.ne.s32.totalorder %s29, %s32
      %p38 = scmp.eq.s32.totalorder %s19, 0
      %p39 = por %p37, %p38
      %p40 = scmp.ne.s32.totalorder %s29, %s32
      %p41 = scmp.eq.s32.totalorder %s24, 1
      %p42 = por %p40, %p41
      %p43 = scmp.ne.s32.totalorder %s32, %s33
      %p44 = scmp.eq.s32.totalorder %s24, 0
      %p45 = por %p43, %p44
      %p46 = scmp.ne.s32.totalorder %s32, %s33
      %p47 = scmp.eq.s32.totalorder %s25, 1
      %p48 = por %p46, %p47
      %p50 = scmp.ne.s32.totalorder %s33, %s49
      %p51 = scmp.eq.s32.totalorder %s25, 0
      %p52 = por %p50, %p51
      %s54 = sadd.s32 %s53, 1
      %p57 = scmp.eq.s32.totalorder %s19, 1
      %p58 = scmp.ne.s32.totalorder %s53, %s55
      %p59 = scmp.eq.s32.totalorder %s19, 0
      %p60 = por %p58, %p59
      %p61 = scmp.ne.s32.totalorder %s53, %s55
      %p62 = scmp.eq.s32.totalorder %s24, 1
      %p63 = por %p61, %p62
      %p64 = scmp.ne.s32.totalorder %s55, %s56
      %p65 = scmp.eq.s32.totalorder %s24, 0
      %p66 = por %p64, %p65
      %p67 = scmp.ne.s32.totalorder %s55, %s56
      %p68 = scmp.eq.s32.totalorder %s25, 1
      %p69 = por %p67, %p68
      %p71 = scmp.ne.s32.totalorder %s56, %s70
      %p72 = scmp.eq.s32.totalorder %s25, 0
      %p73 = por %p71, %p72
      %s75 = sadd.s32 %s74, 1
      %p78 = scmp.eq.s32.totalorder %s19, 1
      %p79 = scmp.ne.s32.totalorder %s74, %s76
      %p80 = scmp.eq.s32.totalorder %s19, 0
      %p81 = por %p79, %p80
      %p82 = scmp.ne.s32.totalorder %s74, %s76
      %p83 = scmp.eq.s32.totalorder %s24, 1
      %p84 = por %p82, %p83
      %p85 = scmp.ne.s32.totalorder %s76, %s77
      %p86 = scmp.eq.s32.totalorder %s24, 0
      %p87 = por %p85, %p86
      %p88 = scmp.ne.s32.totalorder %s76, %s77
      %p89 = scmp.eq.s32.totalorder %s25, 1
      %p90 = por %p88, %p89
      %p92 = scmp.ne.s32.totalorder %s77, %s91
      %p93 = scmp.eq.s32.totalorder %s25, 0
      %p94 = por %p92, %p93
      %s96 = sadd.s32 %s95, 1
      %p99 = scmp.eq.s32.totalorder %s19, 1
      %p100 = scmp.ne.s32.totalorder %s95, %s97
      %p101 = scmp.eq.s32.totalorder %s19, 0
      %p102 = por %p100, %p101
      %p103 = scmp.ne.s32.totalorder %s95, %s97
      %p104 = scmp.eq.s32.totalorder %s24, 1
      %p105 = por %p103, %p104
      %p106 = scmp.ne.s32.totalorder %s97, %s98
      %p107 = scmp.eq.s32.totalorder %s24, 0
      %p108 = por %p106, %p107
      %p109 = scmp.ne.s32.totalorder %s97, %s98
      %p110 = scmp.eq.s32.totalorder %s25, 1
      %p111 = por %p109, %p110
      %p113 = scmp.ne.s32.totalorder %s98, %s112
      %p114 = scmp.eq.s32.totalorder %s25, 0
      %p115 = por %p113, %p114
      %s117 = sadd.s32 %s116, 1
      %p120 = scmp.eq.s32.totalorder %s19, 1
      %p121 = scmp.ne.s32.totalorder %s116, %s118
      %p122 = scmp.eq.s32.totalorder %s19, 0
      %p123 = por %p121, %p122
      %p124 = scmp.ne.s32.totalorder %s116, %s118
      %p125 = scmp.eq.s32.totalorder %s24, 1
      %p126 = por %p124, %p125
      %p127 = scmp.ne.s32.totalorder %s118, %s119
      %p128 = scmp.eq.s32.totalorder %s24, 0
      %p129 = por %p127, %p128
      %p130 = scmp.ne.s32.totalorder %s118, %s119
      %p131 = scmp.eq.s32.totalorder %s25, 1
      %p132 = por %p130, %p131
      %p134 = scmp.ne.s32.totalorder %s119, %s133
      %p135 = scmp.eq.s32.totalorder %s25, 0
      %p136 = por %p134, %p135
      %s138 = sadd.s32 %s137, 1
      %p141 = scmp.eq.s32.totalorder %s19, 1
      %p142 = scmp.ne.s32.totalorder %s137, %s139
      %p143 = scmp.eq.s32.totalorder %s19, 0
      %p144 = por %p142, %p143
      %p145 = scmp.ne.s32.totalorder %s137, %s139
      %p146 = scmp.eq.s32.totalorder %s24, 1
      %p147 = por %p145, %p146
      %p148 = scmp.ne.s32.totalorder %s139, %s140
      %p149 = scmp.eq.s32.totalorder %s24, 0
      %p150 = por %p148, %p149
      %p151 = scmp.ne.s32.totalorder %s139, %s140
      %p152 = scmp.eq.s32.totalorder %s25, 1
      %p153 = por %p151, %p152
      %p155 = scmp.ne.s32.totalorder %s140, %s154
      %p156 = scmp.eq.s32.totalorder %s25, 0
      %p157 = por %p155, %p156
      %s159 = sadd.s32 %s158, 1
      %p162 = scmp.eq.s32.totalorder %s19, 1
      %p163 = scmp.ne.s32.totalorder %s158, %s160
      %p164 = scmp.eq.s32.totalorder %s19, 0
      %p165 = por %p163, %p164
      %p166 = scmp.ne.s32.totalorder %s158, %s160
      %p167 = scmp.eq.s32.totalorder %s24, 1
      %p168 = por %p166, %p167
      %p169 = scmp.ne.s32.totalorder %s160, %s161
      %p170 = scmp.eq.s32.totalorder %s24, 0
      %p171 = por %p169, %p170
      %p172 = scmp.ne.s32.totalorder %s160, %s161
      %p173 = scmp.eq.s32.totalorder %s25, 1
      %p174 = por %p172, %p173
      %p176 = scmp.ne.s32.totalorder %s161, %s175
      %p177 = scmp.eq.s32.totalorder %s25, 0
      %p178 = por %p176, %p177
      %s180 = sadd.s32 %s179, 1
      %p183 = scmp.eq.s32.totalorder %s19, 1
      %p184 = scmp.ne.s32.totalorder %s179, %s181
      %p185 = scmp.eq.s32.totalorder %s19, 0
      %p186 = por %p184, %p185
      %p187 = scmp.ne.s32.totalorder %s179, %s181
      %p188 = scmp.eq.s32.totalorder %s24, 1
      %p189 = por %p187, %p188
      %p190 = scmp.ne.s32.totalorder %s181, %s182
      %p191 = scmp.eq.s32.totalorder %s24, 0
      %p192 = por %p190, %p191
      %p193 = scmp.ne.s32.totalorder %s181, %s182
      %p194 = scmp.eq.s32.totalorder %s25, 1
      %p195 = por %p193, %p194
      %p197 = scmp.ne.s32.totalorder %s182, %s196
      %p198 = scmp.eq.s32.totalorder %s25, 0
      %p199 = por %p197, %p198
      %s201 = sadd.s32 %s200, 1
      %p204 = scmp.eq.s32.totalorder %s19, 1
      %p205 = scmp.ne.s32.totalorder %s200, %s202
      %p206 = scmp.eq.s32.totalorder %s19, 0
      %p207 = por %p205, %p206
      %p208 = scmp.ne.s32.totalorder %s200, %s202
      %p209 = scmp.eq.s32.totalorder %s24, 1
      %p210 = por %p208, %p209
      %p211 = scmp.ne.s32.totalorder %s202, %s203
      %p212 = scmp.eq.s32.totalorder %s24, 0
      %p213 = por %p211, %p212
      %p214 = scmp.ne.s32.totalorder %s202, %s203
      %p215 = scmp.eq.s32.totalorder %s25, 1
      %p216 = por %p214, %p215
      %p218 = scmp.ne.s32.totalorder %s203, %s217
      %p219 = scmp.eq.s32.totalorder %s25, 0
      %p220 = por %p218, %p219
      %s222 = sadd.s32 %s221, 1
      %p225 = scmp.eq.s32.totalorder %s19, 1
      %p226 = scmp.ne.s32.totalorder %s221, %s223
      %p227 = scmp.eq.s32.totalorder %s19, 0
      %p228 = por %p226, %p227
      %p229 = scmp.ne.s32.totalorder %s221, %s223
      %p230 = scmp.eq.s32.totalorder %s24, 1
      %p231 = por %p229, %p230
      %p232 = scmp.ne.s32.totalorder %s223, %s224
      %p233 = scmp.eq.s32.totalorder %s24, 0
      %p234 = por %p232, %p233
      %p235 = scmp.ne.s32.totalorder %s223, %s224
      %p236 = scmp.eq.s32.totalorder %s25, 1
      %p237 = por %p235, %p236
      %p239 = scmp.ne.s32.totalorder %s224, %s238
      %p240 = scmp.eq.s32.totalorder %s25, 0
      %p241 = por %p239, %p240
      %s242 = ssub.s32 %s19, %s26
      %p243 = scmp.eq.s32.totalorder %s242, 0
      %s245 = sadd.s32 %s244, 1
      %s246 = scalar_select %p243, %s244, %s245
      %p249 = pneg %p243
      %p250 = scmp.eq.s32.totalorder %s19, 1
      %p251 = por %p249, %p250
      %p252 = scmp.ne.s32.totalorder %s244, %s247
      %p253 = scmp.eq.s32.totalorder %s19, 0
      %p254 = por %p252, %p253
      %p255 = scmp.ne.s32.totalorder %s244, %s247
      %p256 = scmp.eq.s32.totalorder %s24, 1
      %p257 = por %p255, %p256
      %p258 = scmp.ne.s32.totalorder %s247, %s248
      %p259 = scmp.eq.s32.totalorder %s24, 0
      %p260 = por %p258, %p259
      %p261 = scmp.ne.s32.totalorder %s247, %s248
      %p262 = scmp.eq.s32.totalorder %s25, 1
      %p263 = por %p261, %p262
      %p265 = scmp.ne.s32.totalorder %s248, %s264
      %p266 = scmp.eq.s32.totalorder %s25, 0
      %p267 = por %p265, %p266
      %p268 = scmp.le.s32.totalorder 1, %s19
      %p269 = scmp.lt.s32.totalorder %s19, 3
      %p270 = pnand %p268, %p269
      %p271 = pneg %p270
      // Predicated region
      $region9: #{base_model_forward.1} parent=5 // pred_check
        _
      $region10: #{base_model_forward.1} parent=5 // pred_check_branch
        %273 = sbr.rel (%p270) target = $region12
      $region11: #{base_model_forward.1} parent=5 // pred_region
        %s274 = ssub.s32 %s19, 1
        // Predicated region
        $region13: #{base_model_forward.1} parent=11 // pred_check
          %p275 = pneg %p66
        $region14: #{base_model_forward.1} parent=11 // pred_check_branch
          %277 = sbr.rel (%p275) target = $region16
        $region15: #{base_model_forward.1} parent=11 // pred_region
          _
        $region16: #{base_model_forward.1} parent=11 // pred_fallthru
          _
        // Predicated region
        $region17: #{base_model_forward.1} parent=11 // pred_check
          %p278 = pneg %p87
        $region18: #{base_model_forward.1} parent=11 // pred_check_branch
          %280 = sbr.rel (%p278) target = $region20
        $region19: #{base_model_forward.1} parent=11 // pred_region
          _
        $region20: #{base_model_forward.1} parent=11 // pred_fallthru
          _
        // Predicated region
        $region21: #{base_model_forward.1} parent=11 // pred_check
          %p281 = pneg %p108
        $region22: #{base_model_forward.1} parent=11 // pred_check_branch
          %283 = sbr.rel (%p281) target = $region24
        $region23: #{base_model_forward.1} parent=11 // pred_region
          _
        $region24: #{base_model_forward.1} parent=11 // pred_fallthru
          _
        // Predicated region
        $region25: #{base_model_forward.1} parent=11 // pred_check
          %p284 = pneg %p129
        $region26: #{base_model_forward.1} parent=11 // pred_check_branch
          %286 = sbr.rel (%p284) target = $region28
        $region27: #{base_model_forward.1} parent=11 // pred_region
          _
        $region28: #{base_model_forward.1} parent=11 // pred_fallthru
          _
        // Predicated region
        $region29: #{base_model_forward.1} parent=11 // pred_check
          %p287 = pneg %p150
        $region30: #{base_model_forward.1} parent=11 // pred_check_branch
          %289 = sbr.rel (%p287) target = $region32
        $region31: #{base_model_forward.1} parent=11 // pred_region
          _
        $region32: #{base_model_forward.1} parent=11 // pred_fallthru
          _
        // Predicated region
        $region33: #{base_model_forward.1} parent=11 // pred_check
          %p290 = pneg %p171
        $region34: #{base_model_forward.1} parent=11 // pred_check_branch
          %292 = sbr.rel (%p290) target = $region36
        $region35: #{base_model_forward.1} parent=11 // pred_region
          _
        $region36: #{base_model_forward.1} parent=11 // pred_fallthru
          _
        // Predicated region
        $region37: #{base_model_forward.1} parent=11 // pred_check
          %p293 = pneg %p192
        $region38: #{base_model_forward.1} parent=11 // pred_check_branch
          %295 = sbr.rel (%p293) target = $region40
        $region39: #{base_model_forward.1} parent=11 // pred_region
          _
        $region40: #{base_model_forward.1} parent=11 // pred_fallthru
          _
        // Predicated region
        $region41: #{base_model_forward.1} parent=11 // pred_check
          %p296 = pneg %p213
        $region42: #{base_model_forward.1} parent=11 // pred_check_branch
          %298 = sbr.rel (%p296) target = $region44
        $region43: #{base_model_forward.1} parent=11 // pred_region
          _
        $region44: #{base_model_forward.1} parent=11 // pred_fallthru
          _
        // Predicated region
        $region45: #{base_model_forward.1} parent=11 // pred_check
          %p299 = pneg %p234
        $region46: #{base_model_forward.1} parent=11 // pred_check_branch
          %301 = sbr.rel (%p299) target = $region48
        $region47: #{base_model_forward.1} parent=11 // pred_region
          _
        $region48: #{base_model_forward.1} parent=11 // pred_fallthru
          _
      $region12: #{base_model_forward.1} parent=5 // pred_fallthru
        _
      %p302 = scmp.lt.s32.totalorder %s19, 2
      // Predicated region
      $region49: #{base_model_forward.1} parent=5 // pred_check
        %p303 = pneg %p302
      $region50: #{base_model_forward.1} parent=5 // pred_check_branch
        %305 = sbr.rel (%p303) target = $region52
      $region51: #{base_model_forward.1} parent=5 // pred_region
        // Predicated region
        $region53: #{base_model_forward.1} parent=51 // pred_check
          %p306 = pneg %p39
        $region54: #{base_model_forward.1} parent=51 // pred_check_branch
          %308 = sbr.rel (%p306) target = $region56
        $region55: #{base_model_forward.1} parent=51 // pred_region
          %p309 = scmp.lt.s32.totalorder %s19, 1
          %s310 = scalar_select %p309, %s19, 1
          %s311 = smul.addr %s310, 5
          %s312 = smul.addr %s311, 4
          %s313 = scalar_lea.vmem %s0, %s312
        $region56: #{base_model_forward.1} parent=51 // pred_fallthru
          _
      $region52: #{base_model_forward.1} parent=5 // pred_fallthru
        _
      %p314 = scmp.le.s32.totalorder 1, %s19
      %p315 = scmp.lt.s32.totalorder %s19, 3
      %p316 = pnand %p314, %p315
      %p317 = pneg %p316
      // Predicated region
      $region57: #{base_model_forward.1} parent=5 // pred_check
        _
      $region58: #{base_model_forward.1} parent=5 // pred_check_branch
        %319 = sbr.rel (%p316) target = $region60
      $region59: #{base_model_forward.1} parent=5 // pred_region
        %s320 = ssub.s32 %s19, 1
        %p321 = scmp.lt.s32.totalorder %s24, 1
        %s322 = scalar_select %p321, %s24, 1
        %s323 = smul.addr %s322, 5
        %s324 = smul.addr %s323, 4
        %s325 = scalar_lea.vmem %s0, %s324
        %p326 = pneg %p45
        %p327 = pneg %p42
        %p328 = pneg %p66
        %p329 = pneg %p63
        %p330 = pneg %p87
        %p331 = pneg %p84
        %p332 = pneg %p108
        %p333 = pneg %p105
        %p334 = pneg %p129
        %p335 = pneg %p126
        %p336 = pneg %p150
        %p337 = pneg %p147
        %p338 = pneg %p171
        %p339 = pneg %p168
        %p340 = pneg %p192
        %p341 = pneg %p189
        %p342 = pneg %p213
        %p343 = pneg %p210
        %p344 = pneg %p234
        %p345 = pneg %p231
        %p346 = pneg %p260
        %p347 = pneg %p257
        %s348 = sand.u32 %s247, 1
        %s349 = scalar_lea.sflag [#allocation3], %s348
        %s350 = sand.u32 %s247, 1
        %s351 = scalar_lea.vmem [#allocation2], %s350
        %p352 = scmp.lt.s32.totalorder %s24, 1
        %s353 = scalar_select %p352, %s24, 1
        %s354 = smul.addr %s353, 5
        %s355 = smul.addr %s354, 4
        %s356 = scalar_lea.vmem %s0, %s355
        %v358 = vld [vmem:[%s356] sm:$0x77]
        %v359 = vld [vmem:[%s356 + $0x8] sm:$0x77]
        %v360 = vld [vmem:[%s356 + $0x10] sm:$0x7]
        %v363 = vcombine.high %v358, %v358
        %v364 = vcombine.high %v359, %v359
        %v367 = vpack.c.bf16 %v358, %v358
        %v368 = vpack.c.bf16 %v363, %v363
        %v369 = vpack.c.bf16 %v359, %v359
        %v370 = vpack.c.bf16 %v364, %v364
        %v371 = vpack.c.bf16 %v360, %v360
        %v372 = vld [vmem:[%s2] sm:$0xff]
        %v373 = vld [vmem:[%s2 + $0x8] sm:$0xff]
        %v374 = vld [vmem:[%s2 + $0x10] sm:$0xff]
        %v375 = vld [vmem:[%s2 + $0x18] sm:$0xff]
        %v377 = vshrl.u32 %v367, 16
        %v379 = vrot.slane %v377, 6
        %v380 = vshll.u32 %v367, 16
        %v382 = vrot.slane %v380, 7
        %v383 = vor.u32 %v379, %v382
        %v385 = vshrl.u32 %v368, 16
        %v387 = vrot.slane %v385, 6
        %v388 = vshll.u32 %v368, 16
        %v390 = vrot.slane %v388, 7
        %v391 = vor.u32 %v387, %v390
        %v393 = vshrl.u32 %v369, 16
        %v395 = vrot.slane %v393, 6
        %v396 = vshll.u32 %v369, 16
        %v398 = vrot.slane %v396, 7
        %v399 = vor.u32 %v395, %v398
        %v401 = vshrl.u32 %v370, 16
        %v403 = vrot.slane %v401, 6
        %v404 = vshll.u32 %v370, 16
        %v406 = vrot.slane %v404, 7
        %v407 = vor.u32 %v403, %v406
        %408 = vrot.lane.b32.xlu0 %v383, 104
        %v409 = vpop.permute.xlu0 %408
        %410 = vrot.lane.b32.xlu0 %v391, 104
        %v411 = vpop.permute.xlu0 %410
        %412 = vrot.lane.b32.xlu0 %v399, 104
        %v413 = vpop.permute.xlu0 %412
        %414 = vrot.lane.b32.xlu0 %v407, 104
        %v415 = vpop.permute.xlu0 %414
        %vm416 = vcmask 850944
        %v417 = vsel %vm416, %v409, %v411
        %v418 = vsel %vm416, %v411, %v413
        %v419 = vsel %vm416, %v413, %v415
        %v428 = vrot.slane %v367, 5
        %v429 = vrot.slane %v368, 5
        %v430 = vrot.slane %v369, 5
        %v431 = vrot.slane %v370, 5
        %432 = vrot.lane.b32.xlu0 %v428, 80
        %v433 = vpop.permute.xlu0 %432
        %434 = vrot.lane.b32.xlu0 %v429, 80
        %v435 = vpop.permute.xlu0 %434
        %436 = vrot.lane.b32.xlu0 %v430, 80
        %v437 = vpop.permute.xlu0 %436
        %438 = vrot.lane.b32.xlu0 %v431, 80
        %v439 = vpop.permute.xlu0 %438
        %vm440 = vcmask 654336
        %v441 = vsel %vm440, %v433, %v435
        %v442 = vsel %vm440, %v435, %v437
        %v443 = vsel %vm440, %v437, %v439
        %v444 = vrot.slane %v377, 3
        %v445 = vrot.slane %v380, 4
        %v446 = vor.u32 %v444, %v445
        %v447 = vrot.slane %v385, 3
        %v448 = vrot.slane %v388, 4
        %v449 = vor.u32 %v447, %v448
        %v450 = vrot.slane %v393, 3
        %v451 = vrot.slane %v396, 4
        %v452 = vor.u32 %v450, %v451
        %v453 = vrot.slane %v401, 3
        %v454 = vrot.slane %v404, 4
        %v455 = vor.u32 %v453, %v454
        %456 = vrot.lane.b32.xlu0 %v446, 56
        %v457 = vpop.permute.xlu0 %456
        %458 = vrot.lane.b32.xlu0 %v449, 56
        %v459 = vpop.permute.xlu0 %458
        %460 = vrot.lane.b32.xlu0 %v452, 56
        %v461 = vpop.permute.xlu0 %460
        %462 = vrot.lane.b32.xlu0 %v455, 56
        %v463 = vpop.permute.xlu0 %462
        %vm464 = vcmask 457728
        %v465 = vsel %vm464, %v457, %v459
        %v466 = vsel %vm464, %v459, %v461
        %v467 = vsel %vm464, %v461, %v463
        %v473 = vrot.slane %v367, 2
        %v474 = vrot.slane %v368, 2
        %v475 = vrot.slane %v369, 2
        %v476 = vrot.slane %v370, 2
        %v477 = vrot.slane %v371, 2
        %478 = vrot.lane.b32.xlu0 %v473, 32
        %v479 = vpop.permute.xlu0 %478
        %480 = vrot.lane.b32.xlu0 %v474, 32
        %v481 = vpop.permute.xlu0 %480
        %482 = vrot.lane.b32.xlu0 %v475, 32
        %v483 = vpop.permute.xlu0 %482
        %484 = vrot.lane.b32.xlu0 %v476, 32
        %v485 = vpop.permute.xlu0 %484
        %486 = vrot.lane.b32.xlu0 %v477, 32
        %v487 = vpop.permute.xlu0 %486
        %vm488 = vcmask 261120
        %v489 = vsel %vm488, %v479, %v481
        %v490 = vsel %vm488, %v481, %v483
        %v491 = vsel %vm488, %v483, %v485
        %v492 = vsel %vm488, %v485, %v487
        %v493 = vrot.slane %v380, 1
        %v494 = vrot.slane %v388, 1
        %v495 = vrot.slane %v396, 1
        %v496 = vrot.slane %v404, 1
        %v498 = vshll.u32 %v371, 16
        %v500 = vrot.slane %v498, 1
        %v501 = vor.u32 %v377, %v493
        %v502 = vor.u32 %v385, %v494
        %v503 = vor.u32 %v393, %v495
        %v504 = vor.u32 %v401, %v496
        %v505 = vshrl.u32 %v371, 16
        %v507 = vor.u32 %v505, %v500
        %508 = vrot.lane.b32.xlu0 %v493, 8
        %v509 = vpop.permute.xlu0 %508
        %510 = vrot.lane.b32.xlu0 %v494, 8
        %v511 = vpop.permute.xlu0 %510
        %512 = vrot.lane.b32.xlu0 %v495, 8
        %v513 = vpop.permute.xlu0 %512
        %514 = vrot.lane.b32.xlu0 %v496, 8
        %v515 = vpop.permute.xlu0 %514
        %516 = vrot.lane.b32.xlu0 %v500, 8
        %v517 = vpop.permute.xlu0 %516
        %518 = vrot.lane.b32.xlu0 %v501, 8
        %v519 = vpop.permute.xlu0 %518
        %520 = vrot.lane.b32.xlu0 %v502, 8
        %v521 = vpop.permute.xlu0 %520
        %522 = vrot.lane.b32.xlu0 %v503, 8
        %v523 = vpop.permute.xlu0 %522
        %524 = vrot.lane.b32.xlu0 %v504, 8
        %v525 = vpop.permute.xlu0 %524
        %526 = vrot.lane.b32.xlu0 %v507, 8
        %v527 = vpop.permute.xlu0 %526
        %vm528 = vcmask 64512
        %v529 = vsel %vm528, %v509, %v511
        %v530 = vsel %vm528, %v511, %v513
        %v531 = vsel %vm528, %v513, %v515
        %v532 = vsel %vm528, %v515, %v517
        %v533 = vsel %vm528, %v519, %v521
        %v534 = vsel %vm528, %v521, %v523
        %v535 = vsel %vm528, %v523, %v525
        %v536 = vsel %vm528, %v525, %v527
        %v541 = vrot.slane %v368, 7
        %v542 = vrot.slane %v369, 7
        %v543 = vrot.slane %v370, 7
        %v544 = vrot.slane %v371, 7
        %545 = vrot.lane.b32.xlu0 %v541, 112
        %v546 = vpop.permute.xlu0 %545
        %547 = vrot.lane.b32.xlu0 %v542, 112
        %v548 = vpop.permute.xlu0 %547
        %549 = vrot.lane.b32.xlu0 %v543, 112
        %v550 = vpop.permute.xlu0 %549
        %551 = vrot.lane.b32.xlu0 %v544, 112
        %v552 = vpop.permute.xlu0 %551
        %vm553 = vcmask 916480
        %v554 = vsel %vm553, %v546, %v548
        %v555 = vsel %vm553, %v548, %v550
        %v556 = vsel %vm553, %v550, %v552
        %vm557 = vcmask 1041408
        %vm558 = vsmask.f32 1280
        %vm559 = vmand %vm557, %vm558
        %v560 = vsel %vm559, %v367, %v417
        %v561 = vsel %vm559, %v368, %v418
        %v562 = vsel %vm559, %v369, %v419
        %v563 = vsel %vm559, %v370, %v415
        %vm564 = vcmask 1042432
        %v567 = vsel %vm564, %v560, %v441
        %v571 = vsel %vm564, %v561, %v442
        %v575 = vsel %vm564, %v562, %v443
        %v579 = vsel %vm564, %v563, %v439
        %vm581 = vcmask 1044480
        %vm582 = vsmask.f32 4352
        %vm583 = vmand %vm581, %vm582
        %v584 = vsel %vm583, %v567, %v465
        %v585 = vsel %vm583, %v571, %v466
        %v586 = vsel %vm583, %v575, %v467
        %v587 = vsel %vm583, %v579, %v463
        %vm588 = vcmask 1045504
        %v591 = vsel %vm588, %v584, %v489
        %v595 = vsel %vm588, %v585, %v490
        %v599 = vsel %vm588, %v586, %v491
        %v603 = vsel %vm588, %v587, %v492
        %vm605 = vcmask 1047552
        %vm606 = vsmask.f32 7424
        %vm607 = vmand %vm605, %vm606
        %v608 = vsel %vm607, %v591, %v529
        %v609 = vsel %vm607, %v595, %v530
        %v610 = vsel %vm607, %v599, %v531
        %v611 = vsel %vm607, %v603, %v532
        %vm612 = vcmask 1040384
        %v615 = vsel %vm612, %v533, %v554
        %v619 = vsel %vm612, %v534, %v555
        %v623 = vsel %vm612, %v535, %v556
        %v627 = vsel %vm612, %v536, %v552
        %vm629 = vsmask.f32 2304
        %v631 = vshrl.u32 %v608, 16
        %v633 = vrot.slane %v631, 5
        %v634 = vshll.u32 %v608, 16
        %v636 = vrot.slane %v634, 6
        %v637 = vor.u32 %v633, %v636
        %v639 = vshrl.u32 %v609, 16
        %v641 = vrot.slane %v639, 5
        %v642 = vshll.u32 %v609, 16
        %v644 = vrot.slane %v642, 6
        %v645 = vor.u32 %v641, %v644
        %v647 = vshrl.u32 %v610, 16
        %v649 = vrot.slane %v647, 5
        %v650 = vshll.u32 %v610, 16
        %v652 = vrot.slane %v650, 6
        %v653 = vor.u32 %v649, %v652
        %v655 = vshrl.u32 %v611, 16
        %v657 = vrot.slane %v655, 5
        %v658 = vshll.u32 %v611, 16
        %v660 = vrot.slane %v658, 6
        %v661 = vor.u32 %v657, %v660
        %v662 = vshrl.u32 %v615, 16
        %v664 = vrot.slane %v662, 5
        %v665 = vshll.u32 %v615, 16
        %v667 = vrot.slane %v665, 6
        %v668 = vor.u32 %v664, %v667
        %v669 = vsel %vm629, %v637, %v668
        %v670 = vshrl.u32 %v619, 16
        %v672 = vrot.slane %v670, 5
        %v673 = vshll.u32 %v619, 16
        %v675 = vrot.slane %v673, 6
        %v676 = vor.u32 %v672, %v675
        %v677 = vsel %vm629, %v645, %v676
        %v678 = vshrl.u32 %v623, 16
        %v680 = vrot.slane %v678, 5
        %v681 = vshll.u32 %v623, 16
        %v683 = vrot.slane %v681, 6
        %v684 = vor.u32 %v680, %v683
        %v685 = vsel %vm629, %v653, %v684
        %v686 = vshrl.u32 %v627, 16
        %v688 = vrot.slane %v686, 5
        %v689 = vshll.u32 %v627, 16
        %v691 = vrot.slane %v689, 6
        %v692 = vor.u32 %v688, %v691
        %v693 = vsel %vm629, %v661, %v692
        %694 = vrot.lane.b32.xlu0 %v637, 127
        %v695 = vpop.permute.xlu0 %694
        %696 = vrot.lane.b32.xlu0 %v645, 127
        %v697 = vpop.permute.xlu0 %696
        %698 = vrot.lane.b32.xlu0 %v653, 127
        %v699 = vpop.permute.xlu0 %698
        %700 = vrot.lane.b32.xlu0 %v661, 127
        %v701 = vpop.permute.xlu0 %700
        %702 = vrot.lane.b32.xlu0 %v669, 127
        %v703 = vpop.permute.xlu0 %702
        %704 = vrot.lane.b32.xlu0 %v677, 127
        %v705 = vpop.permute.xlu0 %704
        %706 = vrot.lane.b32.xlu0 %v685, 127
        %v707 = vpop.permute.xlu0 %706
        %708 = vrot.lane.b32.xlu0 %v693, 127
        %v709 = vpop.permute.xlu0 %708
        %vm710 = vcmask 1039360
        %v711 = vsel %vm710, %v695, %v697
        %v712 = vsel %vm710, %v697, %v699
        %v713 = vsel %vm710, %v699, %v701
        %v714 = vsel %vm710, %v703, %v705
        %v715 = vsel %vm710, %v705, %v707
        %v716 = vsel %vm710, %v707, %v709
        %v729 = vrot.slane %v608, 3
        %v730 = vrot.slane %v609, 3
        %v731 = vrot.slane %v610, 3
        %v732 = vrot.slane %v611, 3
        %v733 = vrot.slane %v615, 3
        %v734 = vsel %vm581, %v729, %v733
        %v735 = vrot.slane %v619, 3
        %v736 = vsel %vm581, %v730, %v735
        %v737 = vrot.slane %v623, 3
        %v738 = vsel %vm581, %v731, %v737
        %v739 = vrot.slane %v627, 3
        %v740 = vsel %vm581, %v732, %v739
        %741 = vrot.lane.b32.xlu0 %v729, 126
        %v742 = vpop.permute.xlu0 %741
        %743 = vrot.lane.b32.xlu0 %v730, 126
        %v744 = vpop.permute.xlu0 %743
        %745 = vrot.lane.b32.xlu0 %v731, 126
        %v746 = vpop.permute.xlu0 %745
        %747 = vrot.lane.b32.xlu0 %v732, 126
        %v748 = vpop.permute.xlu0 %747
        %749 = vrot.lane.b32.xlu0 %v734, 126
        %v750 = vpop.permute.xlu0 %749
        %751 = vrot.lane.b32.xlu0 %v736, 126
        %v752 = vpop.permute.xlu0 %751
        %753 = vrot.lane.b32.xlu0 %v738, 126
        %v754 = vpop.permute.xlu0 %753
        %755 = vrot.lane.b32.xlu0 %v740, 126
        %v756 = vpop.permute.xlu0 %755
        %vm757 = vcmask 1031168
        %v758 = vsel %vm757, %v742, %v744
        %v759 = vsel %vm757, %v744, %v746
        %v760 = vsel %vm757, %v746, %v748
        %v761 = vsel %vm757, %v750, %v752
        %v762 = vsel %vm757, %v752, %v754
        %v763 = vsel %vm757, %v754, %v756
        %v768 = vrot.slane %v634, 1
        %v769 = vrot.slane %v642, 1
        %v770 = vrot.slane %v650, 1
        %v771 = vrot.slane %v658, 1
        %v772 = vor.u32 %v631, %v768
        %v773 = vrot.slane %v665, 1
        %v774 = vsel %vm606, %v772, %v773
        %v775 = vor.u32 %v639, %v769
        %v776 = vrot.slane %v673, 1
        %v777 = vsel %vm606, %v775, %v776
        %v778 = vor.u32 %v647, %v770
        %v779 = vrot.slane %v681, 1
        %v780 = vsel %vm606, %v778, %v779
        %v781 = vor.u32 %v655, %v771
        %v782 = vrot.slane %v689, 1
        %v783 = vsel %vm606, %v781, %v782
        %v784 = vor.u32 %v662, %v773
        %v785 = vor.u32 %v670, %v776
        %v786 = vor.u32 %v678, %v779
        %v787 = vor.u32 %v686, %v782
        %788 = vrot.lane.b32.xlu0 %v768, 125
        %v789 = vpop.permute.xlu0 %788
        %790 = vrot.lane.b32.xlu0 %v769, 125
        %v791 = vpop.permute.xlu0 %790
        %792 = vrot.lane.b32.xlu0 %v770, 125
        %v793 = vpop.permute.xlu0 %792
        %794 = vrot.lane.b32.xlu0 %v771, 125
        %v795 = vpop.permute.xlu0 %794
        %796 = vrot.lane.b32.xlu0 %v774, 125
        %v797 = vpop.permute.xlu0 %796
        %798 = vrot.lane.b32.xlu0 %v777, 125
        %v799 = vpop.permute.xlu0 %798
        %800 = vrot.lane.b32.xlu0 %v780, 125
        %v801 = vpop.permute.xlu0 %800
        %802 = vrot.lane.b32.xlu0 %v783, 125
        %v803 = vpop.permute.xlu0 %802
        %804 = vrot.lane.b32.xlu0 %v784, 125
        %v805 = vpop.permute.xlu0 %804
        %806 = vrot.lane.b32.xlu0 %v785, 125
        %v807 = vpop.permute.xlu0 %806
        %808 = vrot.lane.b32.xlu0 %v786, 125
        %v809 = vpop.permute.xlu0 %808
        %810 = vrot.lane.b32.xlu0 %v787, 125
        %v811 = vpop.permute.xlu0 %810
        %vm812 = vcmask 1022976
        %v813 = vsel %vm812, %v789, %v791
        %v814 = vsel %vm812, %v791, %v793
        %v815 = vsel %vm812, %v793, %v795
        %v816 = vsel %vm812, %v797, %v799
        %v817 = vsel %vm812, %v799, %v801
        %v818 = vsel %vm812, %v801, %v803
        %v819 = vsel %vm812, %v805, %v807
        %v820 = vsel %vm812, %v807, %v809
        %v821 = vsel %vm812, %v809, %v811
        %v830 = vrot.slane %v608, 6
        %v831 = vrot.slane %v609, 6
        %v832 = vrot.slane %v610, 6
        %v833 = vrot.slane %v611, 6
        %v834 = vrot.slane %v615, 6
        %v835 = vsel %vm557, %v830, %v834
        %v836 = vrot.slane %v619, 6
        %v837 = vsel %vm557, %v831, %v836
        %v838 = vrot.slane %v623, 6
        %v839 = vsel %vm557, %v832, %v838
        %v840 = vrot.slane %v627, 6
        %v841 = vsel %vm557, %v833, %v840
        %842 = vrot.lane.b32.xlu0 %v830, 124
        %v843 = vpop.permute.xlu0 %842
        %844 = vrot.lane.b32.xlu0 %v831, 124
        %v845 = vpop.permute.xlu0 %844
        %846 = vrot.lane.b32.xlu0 %v832, 124
        %v847 = vpop.permute.xlu0 %846
        %848 = vrot.lane.b32.xlu0 %v833, 124
        %v849 = vpop.permute.xlu0 %848
        %850 = vrot.lane.b32.xlu0 %v835, 124
        %v851 = vpop.permute.xlu0 %850
        %852 = vrot.lane.b32.xlu0 %v837, 124
        %v853 = vpop.permute.xlu0 %852
        %854 = vrot.lane.b32.xlu0 %v839, 124
        %v855 = vpop.permute.xlu0 %854
        %856 = vrot.lane.b32.xlu0 %v841, 124
        %v857 = vpop.permute.xlu0 %856
        %vm858 = vcmask 1014784
        %v859 = vsel %vm858, %v843, %v845
        %v860 = vsel %vm858, %v845, %v847
        %v861 = vsel %vm858, %v847, %v849
        %v862 = vsel %vm858, %v851, %v853
        %v863 = vsel %vm858, %v853, %v855
        %v864 = vsel %vm858, %v855, %v857
        %v869 = vrot.slane %v631, 3
        %v870 = vrot.slane %v634, 4
        %v871 = vor.u32 %v869, %v870
        %v872 = vrot.slane %v639, 3
        %v873 = vrot.slane %v642, 4
        %v874 = vor.u32 %v872, %v873
        %v875 = vrot.slane %v647, 3
        %v876 = vrot.slane %v650, 4
        %v877 = vor.u32 %v875, %v876
        %v878 = vrot.slane %v655, 3
        %v879 = vrot.slane %v658, 4
        %v880 = vor.u32 %v878, %v879
        %v881 = vrot.slane %v662, 3
        %v882 = vrot.slane %v665, 4
        %v883 = vor.u32 %v881, %v882
        %v884 = vsel %vm582, %v871, %v883
        %v885 = vrot.slane %v670, 3
        %v886 = vrot.slane %v673, 4
        %v887 = vor.u32 %v885, %v886
        %v888 = vsel %vm582, %v874, %v887
        %v889 = vrot.slane %v678, 3
        %v890 = vrot.slane %v681, 4
        %v891 = vor.u32 %v889, %v890
        %v892 = vsel %vm582, %v877, %v891
        %v893 = vrot.slane %v686, 3
        %v894 = vrot.slane %v689, 4
        %v895 = vor.u32 %v893, %v894
        %v896 = vsel %vm582, %v880, %v895
        %897 = vrot.lane.b32.xlu0 %v871, 123
        %v898 = vpop.permute.xlu0 %897
        %899 = vrot.lane.b32.xlu0 %v874, 123
        %v900 = vpop.permute.xlu0 %899
        %901 = vrot.lane.b32.xlu0 %v877, 123
        %v902 = vpop.permute.xlu0 %901
        %903 = vrot.lane.b32.xlu0 %v880, 123
        %v904 = vpop.permute.xlu0 %903
        %905 = vrot.lane.b32.xlu0 %v884, 123
        %v906 = vpop.permute.xlu0 %905
        %907 = vrot.lane.b32.xlu0 %v888, 123
        %v908 = vpop.permute.xlu0 %907
        %909 = vrot.lane.b32.xlu0 %v892, 123
        %v910 = vpop.permute.xlu0 %909
        %911 = vrot.lane.b32.xlu0 %v896, 123
        %v912 = vpop.permute.xlu0 %911
        %vm913 = vcmask 1006592
        %v914 = vsel %vm913, %v898, %v900
        %v915 = vsel %vm913, %v900, %v902
        %v916 = vsel %vm913, %v902, %v904
        %v917 = vsel %vm913, %v906, %v908
        %v918 = vsel %vm913, %v908, %v910
        %v919 = vsel %vm913, %v910, %v912
        %vm924 = vcmask 1046528
        %v925 = vrot.slane %v608, 1
        %v926 = vrot.slane %v609, 1
        %v927 = vrot.slane %v610, 1
        %v928 = vrot.slane %v611, 1
        %v929 = vrot.slane %v615, 1
        %v930 = vsel %vm924, %v925, %v929
        %v931 = vrot.slane %v619, 1
        %v932 = vsel %vm924, %v926, %v931
        %v933 = vrot.slane %v623, 1
        %v934 = vsel %vm924, %v927, %v933
        %v935 = vrot.slane %v627, 1
        %v936 = vsel %vm924, %v928, %v935
        %937 = vrot.lane.b32.xlu0 %v925, 122
        %v938 = vpop.permute.xlu0 %937
        %939 = vrot.lane.b32.xlu0 %v926, 122
        %v940 = vpop.permute.xlu0 %939
        %941 = vrot.lane.b32.xlu0 %v927, 122
        %v942 = vpop.permute.xlu0 %941
        %943 = vrot.lane.b32.xlu0 %v928, 122
        %v944 = vpop.permute.xlu0 %943
        %945 = vrot.lane.b32.xlu0 %v930, 122
        %v946 = vpop.permute.xlu0 %945
        %947 = vrot.lane.b32.xlu0 %v932, 122
        %v948 = vpop.permute.xlu0 %947
        %949 = vrot.lane.b32.xlu0 %v934, 122
        %v950 = vpop.permute.xlu0 %949
        %951 = vrot.lane.b32.xlu0 %v936, 122
        %v952 = vpop.permute.xlu0 %951
        %953 = vrot.lane.b32.xlu0 %v929, 122
        %v954 = vpop.permute.xlu0 %953
        %955 = vrot.lane.b32.xlu0 %v931, 122
        %v956 = vpop.permute.xlu0 %955
        %957 = vrot.lane.b32.xlu0 %v933, 122
        %v958 = vpop.permute.xlu0 %957
        %959 = vrot.lane.b32.xlu0 %v935, 122
        %v960 = vpop.permute.xlu0 %959
        %vm961 = vcmask 998400
        %v962 = vsel %vm961, %v938, %v940
        %v963 = vsel %vm961, %v940, %v942
        %v964 = vsel %vm961, %v942, %v944
        %v965 = vsel %vm961, %v946, %v948
        %v966 = vsel %vm961, %v948, %v950
        %v967 = vsel %vm961, %v950, %v952
        %v968 = vsel %vm961, %v954, %v956
        %v969 = vsel %vm961, %v956, %v958
        %v970 = vsel %vm961, %v958, %v960
        %vm975 = vcmask 1042432
        %vm976 = vmand %vm975, %vm629
        %v977 = vsel %vm976, %v615, %v711
        %v978 = vsel %vm976, %v619, %v712
        %v979 = vsel %vm976, %v623, %v713
        %v980 = vsel %vm976, %v627, %v701
        %vm981 = vcmask 1044480
        %v984 = vsel %vm981, %v714, %v758
        %v988 = vsel %vm981, %v715, %v759
        %v992 = vsel %vm981, %v716, %v760
        %v996 = vsel %vm981, %v709, %v748
        %v998 = vsel %vm607, %v761, %v813
        %v999 = vsel %vm607, %v762, %v814
        %v1000 = vsel %vm607, %v763, %v815
        %v1001 = vsel %vm607, %v756, %v795
        %vm1002 = vcmask 1041408
        %v1005 = vsel %vm1002, %v819, %v859
        %v1009 = vsel %vm1002, %v820, %v860
        %v1013 = vsel %vm1002, %v821, %v861
        %v1017 = vsel %vm1002, %v811, %v849
        %v1019 = vsel %vm583, %v862, %v914
        %v1020 = vsel %vm583, %v863, %v915
        %v1021 = vsel %vm583, %v864, %v916
        %v1022 = vsel %vm583, %v857, %v904
        %vm1023 = vcmask 1046528
        %v1026 = vsel %vm1023, %v917, %v962
        %v1030 = vsel %vm1023, %v918, %v963
        %v1034 = vsel %vm1023, %v919, %v964
        %v1038 = vsel %vm1023, %v912, %v944
        %v1040 = vld [vmem:[%s1] sm:$0xff]
        %v1041 = vld [vmem:[%s1 + $0x8] sm:$0xff]
        %v1042 = vld [vmem:[%s1 + $0x10] sm:$0xff]
        %v1043 = vld [vmem:[%s1 + $0x18] sm:$0xff]
        %1045 = vset.pattern.permute.xlu0 0
        %1046 = vperm.xlu0 %1045, %v372
        %v1047 = vpop.permute.xlu0 %1046
        %1050 = vset.pattern.permute.xlu0 0
        %1051 = vperm.xlu0 %1050, %v373
        %v1052 = vpop.permute.xlu0 %1051
        %1055 = vset.pattern.permute.xlu0 0
        %1056 = vperm.xlu0 %1055, %v374
        %v1057 = vpop.permute.xlu0 %1056
        %1060 = vset.pattern.permute.xlu0 0
        %1061 = vperm.xlu0 %1060, %v375
        %v1062 = vpop.permute.xlu0 %1061
        %v1068 = vunpack.c.l.b16 %v1040
        %v1069 = vunpack.c.h.b16 %v1040
        %v1070 = vunpack.c.l.b16 %v1041
        %v1071 = vunpack.c.h.b16 %v1041
        %v1072 = vunpack.c.l.b16 %v1042
        %v1073 = vunpack.c.h.b16 %v1042
        %v1074 = vunpack.c.l.b16 %v1043
        %v1075 = vunpack.c.h.b16 %v1043
        %v1076 = vpack.c.b16 %v1070, %v1068
        %v1077 = vpack.c.b16 %v1071, %v1069
        %v1078 = vpack.c.b16 %v1074, %v1072
        %v1079 = vpack.c.b16 %v1075, %v1073
        %vm1082 = vcmask 154624
        %v1084 = vsel %vm1082, %v1077, 0
        %v1087 = vsel %vm1082, %v1079, 0
        %v1089 = vsel %vm612, 4294967295, 65535
        %v1090 = vsel %vm1002, %v1089, 0
        %v1092 = vand.u32 %v968, %v1090
        %v1095 = vand.u32 %v969, %v1090
        %v1098 = vand.u32 %v970, %v1090
        %v1101 = vand.u32 %v960, %v1090
        %1103 = vmatprep.subr.bf16.mxu0 %v609
        %1104 = vmatpush1.bf16.msra.mxu0 %v608
        %1105 = vmatprep.subr.bf16.mxu0 %v978
        %1106 = vmatpush1.bf16.msra.mxu0 %v977
        %1107 = vmatprep.subr.bf16.mxu0 %v988
        %1108 = vmatpush1.bf16.msra.mxu0 %v984
        %1109 = vmatprep.subr.bf16.mxu0 %v999
        %1110 = vmatpush1.bf16.msra.mxu0 %v998
        %1111 = vmatprep.subr.bf16.mxu0 %v817
        %1112 = vmatpush1.bf16.msra.mxu0 %v816
        %1113 = vmatprep.subr.bf16.mxu0 %v1009
        %1114 = vmatpush1.bf16.msra.mxu0 %v1005
        %1115 = vmatprep.subr.bf16.mxu0 %v1020
        %1116 = vmatpush1.bf16.msra.mxu0 %v1019
        %1117 = vmatprep.subr.bf16.mxu0 %v1030
        %1118 = vmatpush1.bf16.msra.mxu0 %v1026
        %1119 = vmatprep.subr.bf16.mxu0 %v966
        %1120 = vmatpush1.bf16.msra.mxu0 %v965
        %1121 = vmatprep.subr.bf16.mxu0 %v1095
        %1122 = vmatpush1.bf16.msra.mxu0 %v1092
        %1123 = vmatprep.subr.bf16.mxu0 0
        %1124 = vmatpush1.bf16.msra.mxu0 0
        %1125 = vmatprep.subr.bf16.mxu0 0
        %1126 = vmatpush1.bf16.msra.mxu0 0
        %1127 = vmatprep.subr.bf16.mxu0 0
        %1128 = vmatpush1.bf16.msra.mxu0 0
        %1129 = vmatprep.subr.bf16.mxu0 0
        %1130 = vmatpush1.bf16.msra.mxu0 0
        %1131 = vmatprep.subr.bf16.mxu0 0
        %1132 = vmatpush1.bf16.msra.mxu0 0
        %1133 = vmatprep.subr.bf16.mxu0 0
        %1134 = vmatpush1.bf16.msra.mxu0 0
        %1135 = vmatprep.mubr.bf16.mxu0 %v1084
        %1136 = vmatmul.mubr.bf16.gmra.mrb[0].mxu0 %v1076
        %v1137 = vpop.f32.mrb[0].mxu0
        %v1138 = vadd.f32 %v1047, %v1137
        %v1139 = vpop.f32.mrb[0].mxu0
        %v1140 = vadd.f32 %v1047, %v1139
        %v1141 = vpop.f32.mrb[0].mxu0
        %v1142 = vadd.f32 %v1052, %v1141
        %v1143 = vpop.f32.mrb[0].mxu0
        %v1144 = vadd.f32 %v1052, %v1143
        %1145 = vmatprep.mubr.bf16.mxu0 %v1087
        %1146 = vmatmul.mubr.bf16.gmra.mrb[0].mxu0 %v1078
        %v1147 = vpop.f32.mrb[0].mxu0
        %v1148 = vadd.f32 %v1057, %v1147
        %v1149 = vpop.f32.mrb[0].mxu0
        %v1150 = vadd.f32 %v1057, %v1149
        %v1151 = vpop.f32.mrb[0].mxu0
        %v1152 = vadd.f32 %v1062, %v1151
        %v1153 = vpop.f32.mrb[0].mxu0
        %v1154 = vadd.f32 %v1062, %v1153
        %1155 = vdwg.mxu0
        %1156 = vmatprep.subr.bf16.mxu0 %v611
        %1157 = vmatpush1.bf16.msra.mxu0 %v610
        %1158 = vmatprep.subr.bf16.mxu0 %v980
        %1159 = vmatpush1.bf16.msra.mxu0 %v979
        %1160 = vmatprep.subr.bf16.mxu0 %v996
        %1161 = vmatpush1.bf16.msra.mxu0 %v992
        %1162 = vmatprep.subr.bf16.mxu0 %v1001
        %1163 = vmatpush1.bf16.msra.mxu0 %v1000
        %1164 = vmatprep.subr.bf16.mxu0 %v803
        %1165 = vmatpush1.bf16.msra.mxu0 %v818
        %1166 = vmatprep.subr.bf16.mxu0 %v1017
        %1167 = vmatpush1.bf16.msra.mxu0 %v1013
        %1168 = vmatprep.subr.bf16.mxu0 %v1022
        %1169 = vmatpush1.bf16.msra.mxu0 %v1021
        %1170 = vmatprep.subr.bf16.mxu0 %v1038
        %1171 = vmatpush1.bf16.msra.mxu0 %v1034
        %1172 = vmatprep.subr.bf16.mxu0 %v952
        %1173 = vmatpush1.bf16.msra.mxu0 %v967
        %1174 = vmatprep.subr.bf16.mxu0 %v1101
        %1175 = vmatpush1.bf16.msra.mxu0 %v1098
        %1176 = vmatprep.subr.bf16.mxu0 0
        %1177 = vmatpush1.bf16.msra.mxu0 0
        %1178 = vmatprep.subr.bf16.mxu0 0
        %1179 = vmatpush1.bf16.msra.mxu0 0
        %1180 = vmatprep.subr.bf16.mxu0 0
        %1181 = vmatpush1.bf16.msra.mxu0 0
        %1182 = vmatprep.subr.bf16.mxu0 0
        %1183 = vmatpush1.bf16.msra.mxu0 0
        %1184 = vmatprep.subr.bf16.mxu0 0
        %1185 = vmatpush1.bf16.msra.mxu0 0
        %1186 = vmatprep.subr.bf16.mxu0 0
        %1187 = vmatpush1.bf16.msra.mxu0 0
        %1188 = vmatprep.mubr.bf16.mxu0 %v1084
        %1189 = vmatmul.mubr.bf16.gmra.mrb[0].mxu0 %v1076
        %v1190 = vpop.f32.mrb[0].mxu0
        %v1191 = vadd.f32 %v1047, %v1190
        %v1192 = vpop.f32.mrb[0].mxu0
        %v1193 = vadd.f32 %v1047, %v1192
        %v1194 = vpop.f32.mrb[0].mxu0
        %v1195 = vadd.f32 %v1052, %v1194
        %v1196 = vpop.f32.mrb[0].mxu0
        %v1197 = vadd.f32 %v1052, %v1196
        %1198 = vmatprep.mubr.bf16.mxu0 %v1087
        %1199 = vmatmul.mubr.bf16.gmra.mrb[0].mxu0 %v1078
        %v1200 = vpop.f32.mrb[0].mxu0
        %v1201 = vadd.f32 %v1057, %v1200
        %v1202 = vpop.f32.mrb[0].mxu0
        %v1203 = vadd.f32 %v1057, %v1202
        %v1204 = vpop.f32.mrb[0].mxu0
        %v1205 = vadd.f32 %v1062, %v1204
        %v1206 = vpop.f32.mrb[0].mxu0
        %v1207 = vadd.f32 %v1062, %v1206
        %1208 = vdwg.mxu0
        %v1209 = vmax.f32 %v1138, 0.0
        %v1210 = vmax.f32 %v1140, 0.0
        %v1211 = vmax.f32 %v1191, 0.0
        %v1212 = vmax.f32 %v1193, 0.0
        %v1213 = vmax.f32 %v1142, 0.0
        %v1214 = vmax.f32 %v1144, 0.0
        %v1215 = vmax.f32 %v1195, 0.0
        %v1216 = vmax.f32 %v1197, 0.0
        %v1217 = vmax.f32 %v1148, 0.0
        %v1218 = vmax.f32 %v1150, 0.0
        %v1219 = vmax.f32 %v1201, 0.0
        %v1220 = vmax.f32 %v1203, 0.0
        %v1221 = vmax.f32 %v1152, 0.0
        %v1222 = vmax.f32 %v1154, 0.0
        %v1223 = vmax.f32 %v1205, 0.0
        %v1224 = vmax.f32 %v1207, 0.0
        %v1225 = vpack.c.bf16 %v1213, %v1209
        %v1226 = vpack.c.bf16 %v1214, %v1210
        %v1227 = vpack.c.bf16 %v1215, %v1211
        %v1228 = vpack.c.bf16 %v1216, %v1212
        %v1229 = vpack.c.bf16 %v1221, %v1217
        %v1230 = vpack.c.bf16 %v1222, %v1218
        %v1231 = vpack.c.bf16 %v1223, %v1219
        %v1232 = vpack.c.bf16 %v1224, %v1220
        %v1233 = vld [vmem:[%s4] sm:$0xff]
        %v1234 = vld [vmem:[%s4 + $0x8] sm:$0xff]
        %v1235 = vld [vmem:[%s4 + $0x10] sm:$0xff]
        %v1236 = vld [vmem:[%s4 + $0x18] sm:$0xff]
        %v1237 = vld [vmem:[%s4 + $0x20] sm:$0xff]
        %v1238 = vld [vmem:[%s4 + $0x28] sm:$0xff]
        %v1239 = vld [vmem:[%s4 + $0x30] sm:$0xff]
        %v1240 = vld [vmem:[%s4 + $0x38] sm:$0xff]
        %1249 = vrot.lane.b32.xlu0 %v1225, 104
        %v1250 = vpop.permute.xlu0 %1249
        %1251 = vrot.lane.b32.xlu0 %v1226, 104
        %v1252 = vpop.permute.xlu0 %1251
        %1253 = vrot.lane.b32.xlu0 %v1227, 104
        %v1254 = vpop.permute.xlu0 %1253
        %1255 = vrot.lane.b32.xlu0 %v1228, 104
        %v1256 = vpop.permute.xlu0 %1255
        %1257 = vrot.lane.b32.xlu0 %v1229, 104
        %v1258 = vpop.permute.xlu0 %1257
        %1259 = vrot.lane.b32.xlu0 %v1230, 104
        %v1260 = vpop.permute.xlu0 %1259
        %1261 = vrot.lane.b32.xlu0 %v1231, 104
        %v1262 = vpop.permute.xlu0 %1261
        %1263 = vrot.lane.b32.xlu0 %v1232, 104
        %v1264 = vpop.permute.xlu0 %1263
        %v1265 = vsel %vm416, %v1250, %v1252
        %v1266 = vsel %vm416, %v1252, %v1254
        %v1267 = vsel %vm416, %v1254, %v1256
        %v1268 = vsel %vm416, %v1258, %v1260
        %v1269 = vsel %vm416, %v1260, %v1262
        %v1270 = vsel %vm416, %v1262, %v1264
        %1277 = vrot.lane.b32.xlu0 %v1225, 80
        %v1278 = vpop.permute.xlu0 %1277
        %1279 = vrot.lane.b32.xlu0 %v1226, 80
        %v1280 = vpop.permute.xlu0 %1279
        %1281 = vrot.lane.b32.xlu0 %v1227, 80
        %v1282 = vpop.permute.xlu0 %1281
        %1283 = vrot.lane.b32.xlu0 %v1228, 80
        %v1284 = vpop.permute.xlu0 %1283
        %1285 = vrot.lane.b32.xlu0 %v1229, 80
        %v1286 = vpop.permute.xlu0 %1285
        %1287 = vrot.lane.b32.xlu0 %v1230, 80
        %v1288 = vpop.permute.xlu0 %1287
        %1289 = vrot.lane.b32.xlu0 %v1231, 80
        %v1290 = vpop.permute.xlu0 %1289
        %1291 = vrot.lane.b32.xlu0 %v1232, 80
        %v1292 = vpop.permute.xlu0 %1291
        %v1293 = vsel %vm440, %v1278, %v1280
        %v1294 = vsel %vm440, %v1280, %v1282
        %v1295 = vsel %vm440, %v1282, %v1284
        %v1296 = vsel %vm440, %v1286, %v1288
        %v1297 = vsel %vm440, %v1288, %v1290
        %v1298 = vsel %vm440, %v1290, %v1292
        %1305 = vrot.lane.b32.xlu0 %v1225, 127
        %v1306 = vpop.permute.xlu0 %1305
        %1307 = vrot.lane.b32.xlu0 %v1226, 127
        %v1308 = vpop.permute.xlu0 %1307
        %1309 = vrot.lane.b32.xlu0 %v1227, 127
        %v1310 = vpop.permute.xlu0 %1309
        %1311 = vrot.lane.b32.xlu0 %v1229, 127
        %v1312 = vpop.permute.xlu0 %1311
        %1313 = vrot.lane.b32.xlu0 %v1230, 127
        %v1314 = vpop.permute.xlu0 %1313
        %1315 = vrot.lane.b32.xlu0 %v1231, 127
        %v1316 = vpop.permute.xlu0 %1315
        %1317 = vrot.lane.b32.xlu0 %v1265, 127
        %v1318 = vpop.permute.xlu0 %1317
        %1319 = vrot.lane.b32.xlu0 %v1266, 127
        %v1320 = vpop.permute.xlu0 %1319
        %1321 = vrot.lane.b32.xlu0 %v1267, 127
        %v1322 = vpop.permute.xlu0 %1321
        %1323 = vrot.lane.b32.xlu0 %v1268, 127
        %v1324 = vpop.permute.xlu0 %1323
        %1325 = vrot.lane.b32.xlu0 %v1269, 127
        %v1326 = vpop.permute.xlu0 %1325
        %1327 = vrot.lane.b32.xlu0 %v1270, 127
        %v1328 = vpop.permute.xlu0 %1327
        %1329 = vrot.lane.b32.xlu0 %v1293, 127
        %v1330 = vpop.permute.xlu0 %1329
        %1331 = vrot.lane.b32.xlu0 %v1294, 127
        %v1332 = vpop.permute.xlu0 %1331
        %1333 = vrot.lane.b32.xlu0 %v1295, 127
        %v1334 = vpop.permute.xlu0 %1333
        %1335 = vrot.lane.b32.xlu0 %v1296, 127
        %v1336 = vpop.permute.xlu0 %1335
        %1337 = vrot.lane.b32.xlu0 %v1297, 127
        %v1338 = vpop.permute.xlu0 %1337
        %1339 = vrot.lane.b32.xlu0 %v1298, 127
        %v1340 = vpop.permute.xlu0 %1339
        %v1341 = vsel %vm710, %v1306, %v1308
        %v1342 = vsel %vm710, %v1308, %v1310
        %v1343 = vsel %vm710, %v1312, %v1314
        %v1344 = vsel %vm710, %v1314, %v1316
        %v1345 = vsel %vm710, %v1318, %v1320
        %v1346 = vsel %vm710, %v1320, %v1322
        %v1347 = vsel %vm710, %v1324, %v1326
        %v1348 = vsel %vm710, %v1326, %v1328
        %v1349 = vsel %vm710, %v1330, %v1332
        %v1350 = vsel %vm710, %v1332, %v1334
        %v1351 = vsel %vm710, %v1336, %v1338
        %v1352 = vsel %vm710, %v1338, %v1340
        %1371 = vrot.lane.b32.xlu0 %v1225, 126
        %v1372 = vpop.permute.xlu0 %1371
        %1373 = vrot.lane.b32.xlu0 %v1226, 126
        %v1374 = vpop.permute.xlu0 %1373
        %1375 = vrot.lane.b32.xlu0 %v1227, 126
        %v1376 = vpop.permute.xlu0 %1375
        %1377 = vrot.lane.b32.xlu0 %v1229, 126
        %v1378 = vpop.permute.xlu0 %1377
        %1379 = vrot.lane.b32.xlu0 %v1230, 126
        %v1380 = vpop.permute.xlu0 %1379
        %1381 = vrot.lane.b32.xlu0 %v1231, 126
        %v1382 = vpop.permute.xlu0 %1381
        %1383 = vrot.lane.b32.xlu0 %v1265, 126
        %v1384 = vpop.permute.xlu0 %1383
        %1385 = vrot.lane.b32.xlu0 %v1266, 126
        %v1386 = vpop.permute.xlu0 %1385
        %1387 = vrot.lane.b32.xlu0 %v1267, 126
        %v1388 = vpop.permute.xlu0 %1387
        %1389 = vrot.lane.b32.xlu0 %v1268, 126
        %v1390 = vpop.permute.xlu0 %1389
        %1391 = vrot.lane.b32.xlu0 %v1269, 126
        %v1392 = vpop.permute.xlu0 %1391
        %1393 = vrot.lane.b32.xlu0 %v1270, 126
        %v1394 = vpop.permute.xlu0 %1393
        %1395 = vrot.lane.b32.xlu0 %v1293, 126
        %v1396 = vpop.permute.xlu0 %1395
        %1397 = vrot.lane.b32.xlu0 %v1294, 126
        %v1398 = vpop.permute.xlu0 %1397
        %1399 = vrot.lane.b32.xlu0 %v1295, 126
        %v1400 = vpop.permute.xlu0 %1399
        %1401 = vrot.lane.b32.xlu0 %v1296, 126
        %v1402 = vpop.permute.xlu0 %1401
        %1403 = vrot.lane.b32.xlu0 %v1297, 126
        %v1404 = vpop.permute.xlu0 %1403
        %1405 = vrot.lane.b32.xlu0 %v1298, 126
        %v1406 = vpop.permute.xlu0 %1405
        %v1407 = vsel %vm757, %v1372, %v1374
        %v1408 = vsel %vm757, %v1374, %v1376
        %v1409 = vsel %vm757, %v1378, %v1380
        %v1410 = vsel %vm757, %v1380, %v1382
        %v1411 = vsel %vm757, %v1384, %v1386
        %v1412 = vsel %vm757, %v1386, %v1388
        %v1413 = vsel %vm757, %v1390, %v1392
        %v1414 = vsel %vm757, %v1392, %v1394
        %v1415 = vsel %vm757, %v1396, %v1398
        %v1416 = vsel %vm757, %v1398, %v1400
        %v1417 = vsel %vm757, %v1402, %v1404
        %v1418 = vsel %vm757, %v1404, %v1406
        %v1437 = vld [vmem:[%s3] sm:$0xff]
        %v1438 = vld [vmem:[%s3 + $0x8] sm:$0xf]
        %v1439 = vld [vmem:[%s3 + $0xc] sm:$0xff]
        %v1440 = vld [vmem:[%s3 + $0x14] sm:$0xf]
        %v1441 = vld [vmem:[%s3 + $0x18] sm:$0xff]
        %v1442 = vld [vmem:[%s3 + $0x20] sm:$0xf]
        %v1443 = vld [vmem:[%s3 + $0x24] sm:$0xff]
        %v1444 = vld [vmem:[%s3 + $0x2c] sm:$0xf]
        %v1445 = vld [vmem:[%s3 + $0x30] sm:$0xff]
        %v1446 = vld [vmem:[%s3 + $0x38] sm:$0xf]
        %v1447 = vld [vmem:[%s3 + $0x3c] sm:$0xff]
        %v1448 = vld [vmem:[%s3 + $0x44] sm:$0xf]
        %v1449 = vld [vmem:[%s3 + $0x48] sm:$0xff]
        %v1450 = vld [vmem:[%s3 + $0x50] sm:$0xf]
        %v1451 = vld [vmem:[%s3 + $0x54] sm:$0xff]
        %v1452 = vld [vmem:[%s3 + $0x5c] sm:$0xf]
        %1454 = vset.pattern.permute.xlu0 0
        %1455 = vperm.xlu0 %1454, %v1233
        %v1456 = vpop.permute.xlu0 %1455
        %1459 = vset.pattern.permute.xlu0 0
        %1460 = vperm.xlu0 %1459, %v1234
        %v1461 = vpop.permute.xlu0 %1460
        %1464 = vset.pattern.permute.xlu0 0
        %1465 = vperm.xlu0 %1464, %v1235
        %v1466 = vpop.permute.xlu0 %1465
        %1469 = vset.pattern.permute.xlu0 0
        %1470 = vperm.xlu0 %1469, %v1236
        %v1471 = vpop.permute.xlu0 %1470
        %1474 = vset.pattern.permute.xlu0 0
        %1475 = vperm.xlu0 %1474, %v1237
        %v1476 = vpop.permute.xlu0 %1475
        %1479 = vset.pattern.permute.xlu0 0
        %1480 = vperm.xlu0 %1479, %v1238
        %v1481 = vpop.permute.xlu0 %1480
        %1484 = vset.pattern.permute.xlu0 0
        %1485 = vperm.xlu0 %1484, %v1239
        %v1486 = vpop.permute.xlu0 %1485
        %1489 = vset.pattern.permute.xlu0 0
        %1490 = vperm.xlu0 %1489, %v1240
        %v1491 = vpop.permute.xlu0 %1490
        %v1509 = vunpack.c.l.b16 %v1437
        %v1510 = vunpack.c.h.b16 %v1437
        %v1511 = vunpack.c.l.b16 %v1438
        %v1512 = vunpack.c.l.b16 %v1439
        %v1513 = vunpack.c.h.b16 %v1439
        %v1514 = vunpack.c.l.b16 %v1440
        %v1515 = vunpack.c.l.b16 %v1441
        %v1516 = vunpack.c.h.b16 %v1441
        %v1517 = vunpack.c.l.b16 %v1442
        %v1518 = vunpack.c.l.b16 %v1443
        %v1519 = vunpack.c.h.b16 %v1443
        %v1520 = vunpack.c.l.b16 %v1444
        %v1521 = vunpack.c.l.b16 %v1445
        %v1522 = vunpack.c.h.b16 %v1445
        %v1523 = vunpack.c.l.b16 %v1446
        %v1524 = vunpack.c.l.b16 %v1447
        %v1525 = vunpack.c.h.b16 %v1447
        %v1526 = vunpack.c.l.b16 %v1448
        %v1527 = vunpack.c.l.b16 %v1449
        %v1528 = vunpack.c.h.b16 %v1449
        %v1529 = vunpack.c.l.b16 %v1450
        %v1530 = vunpack.c.l.b16 %v1451
        %v1531 = vunpack.c.h.b16 %v1451
        %v1532 = vunpack.c.l.b16 %v1452
        %v1533 = vpack.c.b16 %v1512, %v1509
        %v1534 = vpack.c.b16 %v1513, %v1510
        %v1535 = vpack.c.b16 %v1514, %v1511
        %v1536 = vpack.c.b16 %v1518, %v1515
        %v1537 = vpack.c.b16 %v1519, %v1516
        %v1538 = vpack.c.b16 %v1520, %v1517
        %v1539 = vpack.c.b16 %v1524, %v1521
        %v1540 = vpack.c.b16 %v1525, %v1522
        %v1541 = vpack.c.b16 %v1526, %v1523
        %v1542 = vpack.c.b16 %v1530, %v1527
        %v1543 = vpack.c.b16 %v1531, %v1528
        %v1544 = vpack.c.b16 %v1532, %v1529
        %vm1553 = vcmask 261120
        %v1555 = vsel %vm1553, %v1535, 0
        %v1558 = vsel %vm1553, %v1538, 0
        %v1561 = vsel %vm1553, %v1541, 0
        %v1564 = vsel %vm1553, %v1544, 0
        %1566 = vmatprep.subr.bf16.mxu0 %v1226
        %1567 = vmatpush1.bf16.msra.mxu0 %v1225
        %1568 = vmatprep.subr.bf16.mxu0 %v1230
        %1569 = vmatpush1.bf16.msra.mxu0 %v1229
        %1570 = vmatprep.subr.bf16.mxu0 %v1266
        %1571 = vmatpush1.bf16.msra.mxu0 %v1265
        %1572 = vmatprep.subr.bf16.mxu0 %v1269
        %1573 = vmatpush1.bf16.msra.mxu0 %v1268
        %1574 = vmatprep.subr.bf16.mxu0 %v1294
        %1575 = vmatpush1.bf16.msra.mxu0 %v1293
        %1576 = vmatprep.subr.bf16.mxu0 %v1297
        %1577 = vmatpush1.bf16.msra.mxu0 %v1296
        %1578 = vmatprep.subr.bf16.mxu0 %v1342
        %1579 = vmatpush1.bf16.msra.mxu0 %v1341
        %1580 = vmatprep.subr.bf16.mxu0 %v1344
        %1581 = vmatpush1.bf16.msra.mxu0 %v1343
        %1582 = vmatprep.subr.bf16.mxu0 %v1346
        %1583 = vmatpush1.bf16.msra.mxu0 %v1345
        %1584 = vmatprep.subr.bf16.mxu0 %v1348
        %1585 = vmatpush1.bf16.msra.mxu0 %v1347
        %1586 = vmatprep.subr.bf16.mxu0 %v1350
        %1587 = vmatpush1.bf16.msra.mxu0 %v1349
        %1588 = vmatprep.subr.bf16.mxu0 %v1352
        %1589 = vmatpush1.bf16.msra.mxu0 %v1351
        %1590 = vmatprep.subr.bf16.mxu0 %v1408
        %1591 = vmatpush1.bf16.msra.mxu0 %v1407
        %1592 = vmatprep.subr.bf16.mxu0 %v1410
        %1593 = vmatpush1.bf16.msra.mxu0 %v1409
        %1594 = vmatprep.subr.bf16.mxu0 %v1412
        %1595 = vmatpush1.bf16.msra.mxu0 %v1411
        %1596 = vmatprep.subr.bf16.mxu0 %v1414
        %1597 = vmatpush1.bf16.msra.mxu0 %v1413
        %1598 = vmatprep.mubr.bf16.mxu0 %v1534
        %1599 = vmatmul.mubr.bf16.gmra.mrb[0].mxu0 %v1533
        %v1600 = vpop.f32.mrb[0].mxu0
        %v1601 = vadd.f32 %v1456, %v1600
        %v1602 = vpop.f32.mrb[0].mxu0
        %v1603 = vadd.f32 %v1456, %v1602
        %v1604 = vpop.f32.mrb[0].mxu0
        %v1605 = vadd.f32 %v1461, %v1604
        %v1606 = vpop.f32.mrb[0].mxu0
        %v1607 = vadd.f32 %v1461, %v1606
        %1608 = vmatprep.mubr.bf16.mxu0 %v1537
        %1609 = vmatmul.mubr.bf16.gmra.mrb[0].mxu0 %v1536
        %v1610 = vpop.f32.mrb[0].mxu0
        %v1611 = vadd.f32 %v1466, %v1610
        %v1612 = vpop.f32.mrb[0].mxu0
        %v1613 = vadd.f32 %v1466, %v1612
        %v1614 = vpop.f32.mrb[0].mxu0
        %v1615 = vadd.f32 %v1471, %v1614
        %v1616 = vpop.f32.mrb[0].mxu0
        %v1617 = vadd.f32 %v1471, %v1616
        %1618 = vmatprep.mubr.bf16.mxu0 %v1540
        %1619 = vmatmul.mubr.bf16.gmra.mrb[0].mxu0 %v1539
        %v1620 = vpop.f32.mrb[0].mxu0
        %v1621 = vadd.f32 %v1476, %v1620
        %v1622 = vpop.f32.mrb[0].mxu0
        %v1623 = vadd.f32 %v1476, %v1622
        %v1624 = vpop.f32.mrb[0].mxu0
        %v1625 = vadd.f32 %v1481, %v1624
        %v1626 = vpop.f32.mrb[0].mxu0
        %v1627 = vadd.f32 %v1481, %v1626
        %1628 = vmatprep.mubr.bf16.mxu0 %v1543
        %1629 = vmatmul.mubr.bf16.gmra.mrb[0].mxu0 %v1542
        %v1630 = vpop.f32.mrb[0].mxu0
        %v1631 = vadd.f32 %v1486, %v1630
        %v1632 = vpop.f32.mrb[0].mxu0
        %v1633 = vadd.f32 %v1486, %v1632
        %v1634 = vpop.f32.mrb[0].mxu0
        %v1635 = vadd.f32 %v1491, %v1634
        %v1636 = vpop.f32.mrb[0].mxu0
        %v1637 = vadd.f32 %v1491, %v1636
        %1638 = vdwg.mxu0
        %1639 = vmatprep.subr.bf16.mxu0 %v1416
        %1640 = vmatpush1.bf16.msra.mxu0 %v1415
        %1641 = vmatprep.subr.bf16.mxu0 %v1418
        %1642 = vmatpush1.bf16.msra.mxu0 %v1417
        %1643 = vmatprep.subr.bf16.mxu0 0
        %1644 = vmatpush1.bf16.msra.mxu0 0
        %1645 = vmatprep.subr.bf16.mxu0 0
        %1646 = vmatpush1.bf16.msra.mxu0 0
        %1647 = vmatprep.subr.bf16.mxu0 0
        %1648 = vmatpush1.bf16.msra.mxu0 0
        %1649 = vmatprep.subr.bf16.mxu0 0
        %1650 = vmatpush1.bf16.msra.mxu0 0
        %1651 = vmatprep.subr.bf16.mxu0 0
        %1652 = vmatpush1.bf16.msra.mxu0 0
        %1653 = vmatprep.subr.bf16.mxu0 0
        %1654 = vmatpush1.bf16.msra.mxu0 0
        %1655 = vmatprep.subr.bf16.mxu0 0
        %1656 = vmatpush1.bf16.msra.mxu0 0
        %1657 = vmatprep.subr.bf16.mxu0 0
        %1658 = vmatpush1.bf16.msra.mxu0 0
        %1659 = vmatprep.subr.bf16.mxu0 0
        %1660 = vmatpush1.bf16.msra.mxu0 0
        %1661 = vmatprep.subr.bf16.mxu0 0
        %1662 = vmatpush1.bf16.msra.mxu0 0
        %1663 = vmatprep.subr.bf16.mxu0 0
        %1664 = vmatpush1.bf16.msra.mxu0 0
        %1665 = vmatprep.subr.bf16.mxu0 0
        %1666 = vmatpush1.bf16.msra.mxu0 0
        %1667 = vmatprep.subr.bf16.mxu0 0
        %1668 = vmatpush1.bf16.msra.mxu0 0
        %1669 = vmatprep.subr.bf16.mxu0 0
        %1670 = vmatpush1.bf16.msra.mxu0 0
        %1671 = vmatprep.mubr.bf16.mxu0 0
        %1672 = vmatmul.mubr.bf16.gmra.mrb[0].mxu0 %v1555
        %v1673 = vpop.f32.mrb[0].mxu0
        %v1674 = vadd.f32 %v1601, %v1673
        %v1675 = vpop.f32.mrb[0].mxu0
        %v1676 = vadd.f32 %v1603, %v1675
        %v1677 = vpop.f32.mrb[0].mxu0
        %v1678 = vadd.f32 %v1605, %v1677
        %v1679 = vpop.f32.mrb[0].mxu0
        %v1680 = vadd.f32 %v1607, %v1679
        %1681 = vmatprep.mubr.bf16.mxu0 0
        %1682 = vmatmul.mubr.bf16.gmra.mrb[0].mxu0 %v1558
        %v1683 = vpop.f32.mrb[0].mxu0
        %v1684 = vadd.f32 %v1611, %v1683
        %v1685 = vpop.f32.mrb[0].mxu0
        %v1686 = vadd.f32 %v1613, %v1685
        %v1687 = vpop.f32.mrb[0].mxu0
        %v1688 = vadd.f32 %v1615, %v1687
        %v1689 = vpop.f32.mrb[0].mxu0
        %v1690 = vadd.f32 %v1617, %v1689
        %1691 = vmatprep.mubr.bf16.mxu0 0
        %1692 = vmatmul.mubr.bf16.gmra.mrb[0].mxu0 %v1561
        %v1693 = vpop.f32.mrb[0].mxu0
        %v1694 = vadd.f32 %v1621, %v1693
        %v1695 = vpop.f32.mrb[0].mxu0
        %v1696 = vadd.f32 %v1623, %v1695
        %v1697 = vpop.f32.mrb[0].mxu0
        %v1698 = vadd.f32 %v1625, %v1697
        %v1699 = vpop.f32.mrb[0].mxu0
        %v1700 = vadd.f32 %v1627, %v1699
        %1701 = vmatprep.mubr.bf16.mxu0 0
        %1702 = vmatmul.mubr.bf16.gmra.mrb[0].mxu0 %v1564
        %v1703 = vpop.f32.mrb[0].mxu0
        %v1704 = vadd.f32 %v1631, %v1703
        %v1705 = vpop.f32.mrb[0].mxu0
        %v1706 = vadd.f32 %v1633, %v1705
        %v1707 = vpop.f32.mrb[0].mxu0
        %v1708 = vadd.f32 %v1635, %v1707
        %v1709 = vpop.f32.mrb[0].mxu0
        %v1710 = vadd.f32 %v1637, %v1709
        %1711 = vdwg.mxu0
        %1712 = vmatprep.subr.bf16.mxu0 0
        %1713 = vmatpush1.bf16.msra.mxu0 %v1227
        %1714 = vmatprep.subr.bf16.mxu0 0
        %1715 = vmatpush1.bf16.msra.mxu0 %v1231
        %1716 = vmatprep.subr.bf16.mxu0 0
        %1717 = vmatpush1.bf16.msra.mxu0 %v1267
        %1718 = vmatprep.subr.bf16.mxu0 0
        %1719 = vmatpush1.bf16.msra.mxu0 %v1270
        %1720 = vmatprep.subr.bf16.mxu0 0
        %1721 = vmatpush1.bf16.msra.mxu0 %v1295
        %1722 = vmatprep.subr.bf16.mxu0 0
        %1723 = vmatpush1.bf16.msra.mxu0 %v1298
        %1724 = vmatprep.subr.bf16.mxu0 0
        %1725 = vmatpush1.bf16.msra.mxu0 %v1310
        %1726 = vmatprep.subr.bf16.mxu0 0
        %1727 = vmatpush1.bf16.msra.mxu0 %v1316
        %1728 = vmatprep.subr.bf16.mxu0 0
        %1729 = vmatpush1.bf16.msra.mxu0 %v1322
        %1730 = vmatprep.subr.bf16.mxu0 0
        %1731 = vmatpush1.bf16.msra.mxu0 %v1328
        %1732 = vmatprep.subr.bf16.mxu0 0
        %1733 = vmatpush1.bf16.msra.mxu0 %v1334
        %1734 = vmatprep.subr.bf16.mxu0 0
        %1735 = vmatpush1.bf16.msra.mxu0 %v1340
        %1736 = vmatprep.subr.bf16.mxu0 0
        %1737 = vmatpush1.bf16.msra.mxu0 %v1376
        %1738 = vmatprep.subr.bf16.mxu0 0
        %1739 = vmatpush1.bf16.msra.mxu0 %v1382
        %1740 = vmatprep.subr.bf16.mxu0 0
        %1741 = vmatpush1.bf16.msra.mxu0 %v1388
        %1742 = vmatprep.subr.bf16.mxu0 0
        %1743 = vmatpush1.bf16.msra.mxu0 %v1394
        %1744 = vmatprep.mubr.bf16.mxu0 %v1534
        %1745 = vmatmul.mubr.bf16.gmra.mrb[0].mxu0 %v1533
        %v1746 = vpop.f32.mrb[0].mxu0
        %v1747 = vadd.f32 %v1456, %v1746
        %v1748 = vpop.f32.mrb[0].mxu0
        %v1749 = vpop.f32.mrb[0].mxu0
        %v1750 = vadd.f32 %v1461, %v1749
        %v1751 = vpop.f32.mrb[0].mxu0
        %1752 = vmatprep.mubr.bf16.mxu0 %v1537
        %1753 = vmatmul.mubr.bf16.gmra.mrb[0].mxu0 %v1536
        %v1754 = vpop.f32.mrb[0].mxu0
        %v1755 = vadd.f32 %v1466, %v1754
        %v1756 = vpop.f32.mrb[0].mxu0
        %v1757 = vpop.f32.mrb[0].mxu0
        %v1758 = vadd.f32 %v1471, %v1757
        %v1759 = vpop.f32.mrb[0].mxu0
        %1760 = vmatprep.mubr.bf16.mxu0 %v1540
        %1761 = vmatmul.mubr.bf16.gmra.mrb[0].mxu0 %v1539
        %v1762 = vpop.f32.mrb[0].mxu0
        %v1763 = vadd.f32 %v1476, %v1762
        %v1764 = vpop.f32.mrb[0].mxu0
        %v1765 = vpop.f32.mrb[0].mxu0
        %v1766 = vadd.f32 %v1481, %v1765
        %v1767 = vpop.f32.mrb[0].mxu0
        %1768 = vmatprep.mubr.bf16.mxu0 %v1543
        %1769 = vmatmul.mubr.bf16.gmra.mrb[0].mxu0 %v1542
        %v1770 = vpop.f32.mrb[0].mxu0
        %v1771 = vadd.f32 %v1486, %v1770
        %v1772 = vpop.f32.mrb[0].mxu0
        %v1773 = vpop.f32.mrb[0].mxu0
        %v1774 = vadd.f32 %v1491, %v1773
        %v1775 = vpop.f32.mrb[0].mxu0
        %1776 = vdwg.mxu0
        %1777 = vmatprep.subr.bf16.mxu0 0
        %1778 = vmatpush1.bf16.msra.mxu0 %v1400
        %1779 = vmatprep.subr.bf16.mxu0 0
        %1780 = vmatpush1.bf16.msra.mxu0 %v1406
        %1781 = vmatprep.subr.bf16.mxu0 0
        %1782 = vmatpush1.bf16.msra.mxu0 0
        %1783 = vmatprep.subr.bf16.mxu0 0
        %1784 = vmatpush1.bf16.msra.mxu0 0
        %1785 = vmatprep.subr.bf16.mxu0 0
        %1786 = vmatpush1.bf16.msra.mxu0 0
        %1787 = vmatprep.subr.bf16.mxu0 0
        %1788 = vmatpush1.bf16.msra.mxu0 0
        %1789 = vmatprep.subr.bf16.mxu0 0
        %1790 = vmatpush1.bf16.msra.mxu0 0
        %1791 = vmatprep.subr.bf16.mxu0 0
        %1792 = vmatpush1.bf16.msra.mxu0 0
        %1793 = vmatprep.subr.bf16.mxu0 0
        %1794 = vmatpush1.bf16.msra.mxu0 0
        %1795 = vmatprep.subr.bf16.mxu0 0
        %1796 = vmatpush1.bf16.msra.mxu0 0
        %1797 = vmatprep.subr.bf16.mxu0 0
        %1798 = vmatpush1.bf16.msra.mxu0 0
        %1799 = vmatprep.subr.bf16.mxu0 0
        %1800 = vmatpush1.bf16.msra.mxu0 0
        %1801 = vmatprep.subr.bf16.mxu0 0
        %1802 = vmatpush1.bf16.msra.mxu0 0
        %1803 = vmatprep.subr.bf16.mxu0 0
        %1804 = vmatpush1.bf16.msra.mxu0 0
        %1805 = vmatprep.subr.bf16.mxu0 0
        %1806 = vmatpush1.bf16.msra.mxu0 0
        %1807 = vmatprep.subr.bf16.mxu0 0
        %1808 = vmatpush1.bf16.msra.mxu0 0
        %1809 = vmatprep.mubr.bf16.mxu0 0
        %1810 = vmatmul.mubr.bf16.gmra.mrb[0].mxu0 %v1555
        %v1811 = vpop.f32.mrb[0].mxu0
        %v1812 = vadd.f32 %v1747, %v1811
        %v1813 = vpop.f32.mrb[0].mxu0
        %v1814 = vpop.f32.mrb[0].mxu0
        %v1815 = vadd.f32 %v1750, %v1814
        %v1816 = vpop.f32.mrb[0].mxu0
        %1817 = vmatprep.mubr.bf16.mxu0 0
        %1818 = vmatmul.mubr.bf16.gmra.mrb[0].mxu0 %v1558
        %v1819 = vpop.f32.mrb[0].mxu0
        %v1820 = vadd.f32 %v1755, %v1819
        %v1821 = vpop.f32.mrb[0].mxu0
        %v1822 = vpop.f32.mrb[0].mxu0
        %v1823 = vadd.f32 %v1758, %v1822
        %v1824 = vpop.f32.mrb[0].mxu0
        %1825 = vmatprep.mubr.bf16.mxu0 0
        %1826 = vmatmul.mubr.bf16.gmra.mrb[0].mxu0 %v1561
        %v1827 = vpop.f32.mrb[0].mxu0
        %v1828 = vadd.f32 %v1763, %v1827
        %v1829 = vpop.f32.mrb[0].mxu0
        %v1830 = vpop.f32.mrb[0].mxu0
        %v1831 = vadd.f32 %v1766, %v1830
        %v1832 = vpop.f32.mrb[0].mxu0
        %1833 = vmatprep.mubr.bf16.mxu0 0
        %1834 = vmatmul.mubr.bf16.gmra.mrb[0].mxu0 %v1564
        %v1835 = vpop.f32.mrb[0].mxu0
        %v1836 = vadd.f32 %v1771, %v1835
        %v1837 = vpop.f32.mrb[0].mxu0
        %v1838 = vpop.f32.mrb[0].mxu0
        %v1839 = vadd.f32 %v1774, %v1838
        %v1840 = vpop.f32.mrb[0].mxu0
        %1841 = vdwg.mxu0
        %v1842 = vmax.f32 %v1674, 0.0
        %v1843 = vmax.f32 %v1676, 0.0
        %v1844 = vmax.f32 %v1812, 0.0
        %v1845 = vmax.f32 %v1678, 0.0
        %v1846 = vmax.f32 %v1680, 0.0
        %v1847 = vmax.f32 %v1815, 0.0
        %v1848 = vmax.f32 %v1684, 0.0
        %v1849 = vmax.f32 %v1686, 0.0
        %v1850 = vmax.f32 %v1820, 0.0
        %v1851 = vmax.f32 %v1688, 0.0
        %v1852 = vmax.f32 %v1690, 0.0
        %v1853 = vmax.f32 %v1823, 0.0
        %v1854 = vmax.f32 %v1694, 0.0
        %v1855 = vmax.f32 %v1696, 0.0
        %v1856 = vmax.f32 %v1828, 0.0
        %v1857 = vmax.f32 %v1698, 0.0
        %v1858 = vmax.f32 %v1700, 0.0
        %v1859 = vmax.f32 %v1831, 0.0
        %v1860 = vmax.f32 %v1704, 0.0
        %v1861 = vmax.f32 %v1706, 0.0
        %v1862 = vmax.f32 %v1836, 0.0
        %v1863 = vmax.f32 %v1708, 0.0
        %v1864 = vmax.f32 %v1710, 0.0
        %v1865 = vmax.f32 %v1839, 0.0
        %1890 = vrot.lane.b32.xlu0 %v1842, 127
        %v1891 = vpop.permute.xlu0 %1890
        %1892 = vrot.lane.b32.xlu0 %v1843, 127
        %v1893 = vpop.permute.xlu0 %1892
        %1894 = vrot.lane.b32.xlu0 %v1844, 127
        %v1895 = vpop.permute.xlu0 %1894
        %1896 = vrot.lane.b32.xlu0 %v1845, 127
        %v1897 = vpop.permute.xlu0 %1896
        %1898 = vrot.lane.b32.xlu0 %v1846, 127
        %v1899 = vpop.permute.xlu0 %1898
        %1900 = vrot.lane.b32.xlu0 %v1847, 127
        %v1901 = vpop.permute.xlu0 %1900
        %1902 = vrot.lane.b32.xlu0 %v1848, 127
        %v1903 = vpop.permute.xlu0 %1902
        %1904 = vrot.lane.b32.xlu0 %v1849, 127
        %v1905 = vpop.permute.xlu0 %1904
        %1906 = vrot.lane.b32.xlu0 %v1850, 127
        %v1907 = vpop.permute.xlu0 %1906
        %1908 = vrot.lane.b32.xlu0 %v1851, 127
        %v1909 = vpop.permute.xlu0 %1908
        %1910 = vrot.lane.b32.xlu0 %v1852, 127
        %v1911 = vpop.permute.xlu0 %1910
        %1912 = vrot.lane.b32.xlu0 %v1853, 127
        %v1913 = vpop.permute.xlu0 %1912
        %1914 = vrot.lane.b32.xlu0 %v1854, 127
        %v1915 = vpop.permute.xlu0 %1914
        %1916 = vrot.lane.b32.xlu0 %v1855, 127
        %v1917 = vpop.permute.xlu0 %1916
        %1918 = vrot.lane.b32.xlu0 %v1856, 127
        %v1919 = vpop.permute.xlu0 %1918
        %1920 = vrot.lane.b32.xlu0 %v1857, 127
        %v1921 = vpop.permute.xlu0 %1920
        %1922 = vrot.lane.b32.xlu0 %v1858, 127
        %v1923 = vpop.permute.xlu0 %1922
        %1924 = vrot.lane.b32.xlu0 %v1859, 127
        %v1925 = vpop.permute.xlu0 %1924
        %1926 = vrot.lane.b32.xlu0 %v1860, 127
        %v1927 = vpop.permute.xlu0 %1926
        %1928 = vrot.lane.b32.xlu0 %v1861, 127
        %v1929 = vpop.permute.xlu0 %1928
        %1930 = vrot.lane.b32.xlu0 %v1862, 127
        %v1931 = vpop.permute.xlu0 %1930
        %1932 = vrot.lane.b32.xlu0 %v1863, 127
        %v1933 = vpop.permute.xlu0 %1932
        %1934 = vrot.lane.b32.xlu0 %v1864, 127
        %v1935 = vpop.permute.xlu0 %1934
        %1936 = vrot.lane.b32.xlu0 %v1865, 127
        %v1937 = vpop.permute.xlu0 %1936
        %vm1938 = vcmask 1039360
        %v1939 = vsel %vm1938, %v1891, %v1893
        %v1940 = vsel %vm1938, %v1893, %v1895
        %v1941 = vsel %vm1938, %v1897, %v1899
        %v1942 = vsel %vm1938, %v1899, %v1901
        %v1943 = vsel %vm1938, %v1903, %v1905
        %v1944 = vsel %vm1938, %v1905, %v1907
        %v1945 = vsel %vm1938, %v1909, %v1911
        %v1946 = vsel %vm1938, %v1911, %v1913
        %v1947 = vsel %vm1938, %v1915, %v1917
        %v1948 = vsel %vm1938, %v1917, %v1919
        %v1949 = vsel %vm1938, %v1921, %v1923
        %v1950 = vsel %vm1938, %v1923, %v1925
        %v1951 = vsel %vm1938, %v1927, %v1929
        %v1952 = vsel %vm1938, %v1929, %v1931
        %v1953 = vsel %vm1938, %v1933, %v1935
        %v1954 = vsel %vm1938, %v1935, %v1937
        %v1979 = vmax.f32 %v1842, %v1939
        %v1980 = vmax.f32 %v1843, %v1940
        %v1981 = vmax.f32 %v1844, %v1895
        %v1982 = vmax.f32 %v1845, %v1941
        %v1983 = vmax.f32 %v1846, %v1942
        %v1984 = vmax.f32 %v1847, %v1901
        %v1985 = vmax.f32 %v1848, %v1943
        %v1986 = vmax.f32 %v1849, %v1944
        %v1987 = vmax.f32 %v1850, %v1907
        %v1988 = vmax.f32 %v1851, %v1945
        %v1989 = vmax.f32 %v1852, %v1946
        %v1990 = vmax.f32 %v1853, %v1913
        %v1991 = vmax.f32 %v1854, %v1947
        %v1992 = vmax.f32 %v1855, %v1948
        %v1993 = vmax.f32 %v1856, %v1919
        %v1994 = vmax.f32 %v1857, %v1949
        %v1995 = vmax.f32 %v1858, %v1950
        %v1996 = vmax.f32 %v1859, %v1925
        %v1997 = vmax.f32 %v1860, %v1951
        %v1998 = vmax.f32 %v1861, %v1952
        %v1999 = vmax.f32 %v1862, %v1931
        %v2000 = vmax.f32 %v1863, %v1953
        %v2001 = vmax.f32 %v1864, %v1954
        %v2002 = vmax.f32 %v1865, %v1937
        %2027 = vrot.lane.b32.xlu0 %v1979, 104
        %v2028 = vpop.permute.xlu0 %2027
        %2029 = vrot.lane.b32.xlu0 %v1980, 104
        %v2030 = vpop.permute.xlu0 %2029
        %2031 = vrot.lane.b32.xlu0 %v1981, 104
        %v2032 = vpop.permute.xlu0 %2031
        %2033 = vrot.lane.b32.xlu0 %v1982, 104
        %v2034 = vpop.permute.xlu0 %2033
        %2035 = vrot.lane.b32.xlu0 %v1983, 104
        %v2036 = vpop.permute.xlu0 %2035
        %2037 = vrot.lane.b32.xlu0 %v1984, 104
        %v2038 = vpop.permute.xlu0 %2037
        %2039 = vrot.lane.b32.xlu0 %v1985, 104
        %v2040 = vpop.permute.xlu0 %2039
        %2041 = vrot.lane.b32.xlu0 %v1986, 104
        %v2042 = vpop.permute.xlu0 %2041
        %2043 = vrot.lane.b32.xlu0 %v1987, 104
        %v2044 = vpop.permute.xlu0 %2043
        %2045 = vrot.lane.b32.xlu0 %v1988, 104
        %v2046 = vpop.permute.xlu0 %2045
        %2047 = vrot.lane.b32.xlu0 %v1989, 104
        %v2048 = vpop.permute.xlu0 %2047
        %2049 = vrot.lane.b32.xlu0 %v1990, 104
        %v2050 = vpop.permute.xlu0 %2049
        %2051 = vrot.lane.b32.xlu0 %v1991, 104
        %v2052 = vpop.permute.xlu0 %2051
        %2053 = vrot.lane.b32.xlu0 %v1992, 104
        %v2054 = vpop.permute.xlu0 %2053
        %2055 = vrot.lane.b32.xlu0 %v1993, 104
        %v2056 = vpop.permute.xlu0 %2055
        %2057 = vrot.lane.b32.xlu0 %v1994, 104
        %v2058 = vpop.permute.xlu0 %2057
        %2059 = vrot.lane.b32.xlu0 %v1995, 104
        %v2060 = vpop.permute.xlu0 %2059
        %2061 = vrot.lane.b32.xlu0 %v1996, 104
        %v2062 = vpop.permute.xlu0 %2061
        %2063 = vrot.lane.b32.xlu0 %v1997, 104
        %v2064 = vpop.permute.xlu0 %2063
        %2065 = vrot.lane.b32.xlu0 %v1998, 104
        %v2066 = vpop.permute.xlu0 %2065
        %2067 = vrot.lane.b32.xlu0 %v1999, 104
        %v2068 = vpop.permute.xlu0 %2067
        %2069 = vrot.lane.b32.xlu0 %v2000, 104
        %v2070 = vpop.permute.xlu0 %2069
        %2071 = vrot.lane.b32.xlu0 %v2001, 104
        %v2072 = vpop.permute.xlu0 %2071
        %2073 = vrot.lane.b32.xlu0 %v2002, 104
        %v2074 = vpop.permute.xlu0 %2073
        %vm2075 = vcmask 850944
        %v2076 = vsel %vm2075, %v2028, %v2030
        %v2077 = vsel %vm2075, %v2030, %v2032
        %v2078 = vsel %vm2075, %v2034, %v2036
        %v2079 = vsel %vm2075, %v2036, %v2038
        %v2080 = vsel %vm2075, %v2040, %v2042
        %v2081 = vsel %vm2075, %v2042, %v2044
        %v2082 = vsel %vm2075, %v2046, %v2048
        %v2083 = vsel %vm2075, %v2048, %v2050
        %v2084 = vsel %vm2075, %v2052, %v2054
        %v2085 = vsel %vm2075, %v2054, %v2056
        %v2086 = vsel %vm2075, %v2058, %v2060
        %v2087 = vsel %vm2075, %v2060, %v2062
        %v2088 = vsel %vm2075, %v2064, %v2066
        %v2089 = vsel %vm2075, %v2066, %v2068
        %v2090 = vsel %vm2075, %v2070, %v2072
        %v2091 = vsel %vm2075, %v2072, %v2074
        %v2116 = vmax.f32 %v1979, %v2076
        %v2117 = vmax.f32 %v1980, %v2077
        %v2118 = vmax.f32 %v1981, %v2032
        %v2119 = vmax.f32 %v1982, %v2078
        %v2120 = vmax.f32 %v1983, %v2079
        %v2121 = vmax.f32 %v1984, %v2038
        %v2122 = vmax.f32 %v1985, %v2080
        %v2123 = vmax.f32 %v1986, %v2081
        %v2124 = vmax.f32 %v1987, %v2044
        %v2125 = vmax.f32 %v1988, %v2082
        %v2126 = vmax.f32 %v1989, %v2083
        %v2127 = vmax.f32 %v1990, %v2050
        %v2128 = vmax.f32 %v1991, %v2084
        %v2129 = vmax.f32 %v1992, %v2085
        %v2130 = vmax.f32 %v1993, %v2056
        %v2131 = vmax.f32 %v1994, %v2086
        %v2132 = vmax.f32 %v1995, %v2087
        %v2133 = vmax.f32 %v1996, %v2062
        %v2134 = vmax.f32 %v1997, %v2088
        %v2135 = vmax.f32 %v1998, %v2089
        %v2136 = vmax.f32 %v1999, %v2068
        %v2137 = vmax.f32 %v2000, %v2090
        %v2138 = vmax.f32 %v2001, %v2091
        %v2139 = vmax.f32 %v2002, %v2074
        %v2140 = vpack.c.bf16 %v2119, %v2116
        %v2141 = vpack.c.bf16 %v2120, %v2117
        %v2142 = vpack.c.bf16 %v2121, %v2118
        %v2143 = vpack.c.bf16 %v2125, %v2122
        %v2144 = vpack.c.bf16 %v2126, %v2123
        %v2145 = vpack.c.bf16 %v2127, %v2124
        %v2146 = vpack.c.bf16 %v2131, %v2128
        %v2147 = vpack.c.bf16 %v2132, %v2129
        %v2148 = vpack.c.bf16 %v2133, %v2130
        %v2149 = vpack.c.bf16 %v2137, %v2134
        %v2150 = vpack.c.bf16 %v2138, %v2135
        %v2151 = vpack.c.bf16 %v2139, %v2136
        %v2152 = vld [vmem:[%s7] sm:$0xf]
        %v2153 = vld [vmem:[%s7 + $0x4] sm:$0xf]
        %v2154 = vld [vmem:[%s7 + $0x8] sm:$0xf]
        %v2155 = vld [vmem:[%s7 + $0xc] sm:$0xf]
        %v2156 = vld [vmem:[%s7 + $0x10] sm:$0xf]
        %v2157 = vld [vmem:[%s7 + $0x14] sm:$0xf]
        %v2158 = vld [vmem:[%s7 + $0x18] sm:$0xf]
        %v2159 = vld [vmem:[%s7 + $0x1c] sm:$0xf]
        %v2160 = vld [vmem:[%s7 + $0x20] sm:$0xf]
        %v2161 = vld [vmem:[%s7 + $0x24] sm:$0xf]
        %v2162 = vld [vmem:[%s7 + $0x28] sm:$0xf]
        %v2163 = vld [vmem:[%s7 + $0x2c] sm:$0xf]
        %v2164 = vld [vmem:[%s7 + $0x30] sm:$0xf]
        %v2165 = vld [vmem:[%s7 + $0x34] sm:$0xf]
        %v2166 = vld [vmem:[%s7 + $0x38] sm:$0xf]
        %v2167 = vld [vmem:[%s7 + $0x3c] sm:$0xf]
        %v2168 = vld [vmem:[%s7 + $0x40] sm:$0xf]
        %v2169 = vld [vmem:[%s7 + $0x44] sm:$0xf]
        %v2170 = vld [vmem:[%s7 + $0x48] sm:$0xf]
        %v2171 = vld [vmem:[%s7 + $0x4c] sm:$0xf]
        %v2172 = vld [vmem:[%s7 + $0x50] sm:$0xf]
        %v2173 = vld [vmem:[%s7 + $0x54] sm:$0xf]
        %v2174 = vld [vmem:[%s7 + $0x58] sm:$0xf]
        %v2175 = vld [vmem:[%s7 + $0x5c] sm:$0xf]
        %v2176 = vld [vmem:[%s7 + $0x60] sm:$0xf]
        %v2177 = vld [vmem:[%s7 + $0x64] sm:$0xf]
        %v2178 = vld [vmem:[%s7 + $0x68] sm:$0xf]
        %v2179 = vld [vmem:[%s7 + $0x6c] sm:$0xf]
        %v2180 = vld [vmem:[%s7 + $0x70] sm:$0xf]
        %v2181 = vld [vmem:[%s7 + $0x74] sm:$0xf]
        %v2182 = vld [vmem:[%s7 + $0x78] sm:$0xf]
        %v2183 = vld [vmem:[%s7 + $0x7c] sm:$0xf]
        %v2184 = vld [vmem:[%s7 + $0x80] sm:$0xf]
        %v2185 = vld [vmem:[%s7 + $0x84] sm:$0xf]
        %v2186 = vld [vmem:[%s7 + $0x88] sm:$0xf]
        %v2187 = vld [vmem:[%s7 + $0x8c] sm:$0xf]
        %v2188 = vld [vmem:[%s7 + $0x90] sm:$0xf]
        %v2189 = vld [vmem:[%s7 + $0x94] sm:$0xf]
        %v2190 = vld [vmem:[%s7 + $0x98] sm:$0xf]
        %v2191 = vld [vmem:[%s7 + $0x9c] sm:$0xf]
        %v2192 = vld [vmem:[%s7 + $0xa0] sm:$0xf]
        %v2193 = vld [vmem:[%s7 + $0xa4] sm:$0xf]
        %v2194 = vld [vmem:[%s7 + $0xa8] sm:$0xf]
        %v2195 = vld [vmem:[%s7 + $0xac] sm:$0xf]
        %v2240 = vunpack.c.l.b16 %v2152
        %v2241 = vunpack.c.l.b16 %v2153
        %v2242 = vunpack.c.l.b16 %v2154
        %v2243 = vunpack.c.l.b16 %v2155
        %v2244 = vunpack.c.l.b16 %v2156
        %v2245 = vunpack.c.l.b16 %v2157
        %v2246 = vunpack.c.l.b16 %v2158
        %v2247 = vunpack.c.l.b16 %v2159
        %v2248 = vunpack.c.l.b16 %v2160
        %v2249 = vunpack.c.l.b16 %v2161
        %v2250 = vunpack.c.l.b16 %v2162
        %v2251 = vunpack.c.l.b16 %v2163
        %v2252 = vunpack.c.l.b16 %v2164
        %v2253 = vunpack.c.l.b16 %v2165
        %v2254 = vunpack.c.l.b16 %v2166
        %v2255 = vunpack.c.l.b16 %v2167
        %v2256 = vunpack.c.l.b16 %v2168
        %v2257 = vunpack.c.l.b16 %v2169
        %v2258 = vunpack.c.l.b16 %v2170
        %v2259 = vunpack.c.l.b16 %v2171
        %v2260 = vunpack.c.l.b16 %v2172
        %v2261 = vunpack.c.l.b16 %v2173
        %v2262 = vunpack.c.l.b16 %v2174
        %v2263 = vunpack.c.l.b16 %v2175
        %v2264 = vunpack.c.l.b16 %v2176
        %v2265 = vunpack.c.l.b16 %v2177
        %v2266 = vunpack.c.l.b16 %v2178
        %v2267 = vunpack.c.l.b16 %v2179
        %v2268 = vunpack.c.l.b16 %v2180
        %v2269 = vunpack.c.l.b16 %v2181
        %v2270 = vunpack.c.l.b16 %v2182
        %v2271 = vunpack.c.l.b16 %v2183
        %v2272 = vunpack.c.l.b16 %v2184
        %v2273 = vunpack.c.l.b16 %v2185
        %v2274 = vunpack.c.l.b16 %v2186
        %v2275 = vunpack.c.l.b16 %v2187
        %v2276 = vunpack.c.l.b16 %v2188
        %v2277 = vunpack.c.l.b16 %v2189
        %v2278 = vunpack.c.l.b16 %v2190
        %v2279 = vunpack.c.l.b16 %v2191
        %v2280 = vunpack.c.l.b16 %v2192
        %v2281 = vunpack.c.l.b16 %v2193
        %v2282 = vunpack.c.l.b16 %v2194
        %v2283 = vunpack.c.l.b16 %v2195
        %v2284 = vpack.c.b16 %v2241, %v2240
        %v2285 = vpack.c.b16 %v2243, %v2242
        %v2286 = vpack.c.b16 %v2245, %v2244
        %v2287 = vpack.c.b16 %v2247, %v2246
        %v2288 = vpack.c.b16 %v2249, %v2248
        %v2289 = vpack.c.b16 %v2251, %v2250
        %v2290 = vpack.c.b16 %v2253, %v2252
        %v2291 = vpack.c.b16 %v2255, %v2254
        %v2292 = vpack.c.b16 %v2257, %v2256
        %v2293 = vpack.c.b16 %v2259, %v2258
        %v2294 = vpack.c.b16 %v2261, %v2260
        %v2295 = vpack.c.b16 %v2263, %v2262
        %v2296 = vpack.c.b16 %v2265, %v2264
        %v2297 = vpack.c.b16 %v2267, %v2266
        %v2298 = vpack.c.b16 %v2269, %v2268
        %v2299 = vpack.c.b16 %v2271, %v2270
        %v2300 = vpack.c.b16 %v2273, %v2272
        %v2301 = vpack.c.b16 %v2275, %v2274
        %v2302 = vpack.c.b16 %v2277, %v2276
        %v2303 = vpack.c.b16 %v2279, %v2278
        %v2304 = vpack.c.b16 %v2281, %v2280
        %v2305 = vpack.c.b16 %v2283, %v2282
        %vm2327 = vcmask 777216
        %v2329 = vsel %vm2327, %v2142, 0
        %v2332 = vsel %vm2327, %v2145, 0
        %v2335 = vsel %vm2327, %v2148, 0
        %v2338 = vsel %vm2327, %v2151, 0
        %vm2340 = vcmask 1047552
        %v2341 = vsel %vm1023, 4294967295, 65535
        %v2342 = vsel %vm2340, %v2341, 0
        %v2344 = vand.u32 %v2305, %v2342
        %2346 = vmatprep.subr.bf16.mxu0 0
        %2347 = vmatpush1.bf16.msra.mxu0 %v2284
        %2348 = vmatprep.subr.bf16.mxu0 0
        %2349 = vmatpush1.bf16.msra.mxu0 %v2285
        %2350 = vmatprep.subr.bf16.mxu0 0
        %2351 = vmatpush1.bf16.msra.mxu0 %v2286
        %2352 = vmatprep.subr.bf16.mxu0 0
        %2353 = vmatpush1.bf16.msra.mxu0 %v2287
        %2354 = vmatprep.subr.bf16.mxu0 0
        %2355 = vmatpush1.bf16.msra.mxu0 %v2288
        %2356 = vmatprep.subr.bf16.mxu0 0
        %2357 = vmatpush1.bf16.msra.mxu0 %v2289
        %2358 = vmatprep.subr.bf16.mxu0 0
        %2359 = vmatpush1.bf16.msra.mxu0 %v2290
        %2360 = vmatprep.subr.bf16.mxu0 0
        %2361 = vmatpush1.bf16.msra.mxu0 %v2291
        %2362 = vmatprep.subr.bf16.mxu0 0
        %2363 = vmatpush1.bf16.msra.mxu0 %v2292
        %2364 = vmatprep.subr.bf16.mxu0 0
        %2365 = vmatpush1.bf16.msra.mxu0 %v2293
        %2366 = vmatprep.subr.bf16.mxu0 0
        %2367 = vmatpush1.bf16.msra.mxu0 %v2294
        %2368 = vmatprep.subr.bf16.mxu0 0
        %2369 = vmatpush1.bf16.msra.mxu0 %v2295
        %2370 = vmatprep.subr.bf16.mxu0 0
        %2371 = vmatpush1.bf16.msra.mxu0 %v2296
        %2372 = vmatprep.subr.bf16.mxu0 0
        %2373 = vmatpush1.bf16.msra.mxu0 %v2297
        %2374 = vmatprep.subr.bf16.mxu0 0
        %2375 = vmatpush1.bf16.msra.mxu0 %v2298
        %2376 = vmatprep.subr.bf16.mxu0 0
        %2377 = vmatpush1.bf16.msra.mxu0 %v2299
        %2378 = vmatprep.mubr.bf16.mxu0 %v2141
        %2379 = vmatmul.mubr.bf16.gmra.mrb[0].mxu0 %v2140
        %v2380 = vpop.f32.mrb[0].mxu0
        %v2381 = vadd.f32 0.0, %v2380
        %v2382 = vpop.f32.mrb[0].mxu0
        %v2383 = vpop.f32.mrb[0].mxu0
        %v2384 = vadd.f32 0.0, %v2383
        %v2385 = vpop.f32.mrb[0].mxu0
        %2386 = vmatprep.mubr.bf16.mxu0 %v2144
        %2387 = vmatmul.mubr.bf16.gmra.mrb[0].mxu0 %v2143
        %v2388 = vpop.f32.mrb[0].mxu0
        %v2389 = vadd.f32 0.0, %v2388
        %v2390 = vpop.f32.mrb[0].mxu0
        %v2391 = vpop.f32.mrb[0].mxu0
        %v2392 = vadd.f32 0.0, %v2391
        %v2393 = vpop.f32.mrb[0].mxu0
        %2394 = vmatprep.mubr.bf16.mxu0 %v2147
        %2395 = vmatmul.mubr.bf16.gmra.mrb[0].mxu0 %v2146
        %v2396 = vpop.f32.mrb[0].mxu0
        %v2397 = vadd.f32 0.0, %v2396
        %v2398 = vpop.f32.mrb[0].mxu0
        %v2399 = vpop.f32.mrb[0].mxu0
        %v2400 = vadd.f32 0.0, %v2399
        %v2401 = vpop.f32.mrb[0].mxu0
        %2402 = vmatprep.mubr.bf16.mxu0 %v2150
        %2403 = vmatmul.mubr.bf16.gmra.mrb[0].mxu0 %v2149
        %v2404 = vpop.f32.mrb[0].mxu0
        %v2405 = vadd.f32 0.0, %v2404
        %v2406 = vpop.f32.mrb[0].mxu0
        %v2407 = vpop.f32.mrb[0].mxu0
        %v2408 = vadd.f32 0.0, %v2407
        %v2409 = vpop.f32.mrb[0].mxu0
        %2410 = vdwg.mxu0
        %2411 = vmatprep.subr.bf16.mxu0 0
        %2412 = vmatpush1.bf16.msra.mxu0 %v2300
        %2413 = vmatprep.subr.bf16.mxu0 0
        %2414 = vmatpush1.bf16.msra.mxu0 %v2301
        %2415 = vmatprep.subr.bf16.mxu0 0
        %2416 = vmatpush1.bf16.msra.mxu0 %v2302
        %2417 = vmatprep.subr.bf16.mxu0 0
        %2418 = vmatpush1.bf16.msra.mxu0 %v2303
        %2419 = vmatprep.subr.bf16.mxu0 0
        %2420 = vmatpush1.bf16.msra.mxu0 %v2304
        %2421 = vmatprep.subr.bf16.mxu0 0
        %2422 = vmatpush1.bf16.msra.mxu0 %v2344
        %2423 = vmatprep.subr.bf16.mxu0 0
        %2424 = vmatpush1.bf16.msra.mxu0 0
        %2425 = vmatprep.subr.bf16.mxu0 0
        %2426 = vmatpush1.bf16.msra.mxu0 0
        %2427 = vmatprep.subr.bf16.mxu0 0
        %2428 = vmatpush1.bf16.msra.mxu0 0
        %2429 = vmatprep.subr.bf16.mxu0 0
        %2430 = vmatpush1.bf16.msra.mxu0 0
        %2431 = vmatprep.subr.bf16.mxu0 0
        %2432 = vmatpush1.bf16.msra.mxu0 0
        %2433 = vmatprep.subr.bf16.mxu0 0
        %2434 = vmatpush1.bf16.msra.mxu0 0
        %2435 = vmatprep.subr.bf16.mxu0 0
        %2436 = vmatpush1.bf16.msra.mxu0 0
        %2437 = vmatprep.subr.bf16.mxu0 0
        %2438 = vmatpush1.bf16.msra.mxu0 0
        %2439 = vmatprep.subr.bf16.mxu0 0
        %2440 = vmatpush1.bf16.msra.mxu0 0
        %2441 = vmatprep.subr.bf16.mxu0 0
        %2442 = vmatpush1.bf16.msra.mxu0 0
        %2443 = vmatprep.mubr.bf16.mxu0 0
        %2444 = vmatmul.mubr.bf16.gmra.mrb[0].mxu0 %v2329
        %v2445 = vpop.f32.mrb[0].mxu0
        %v2446 = vadd.f32 %v2381, %v2445
        %v2447 = vpop.f32.mrb[0].mxu0
        %v2448 = vpop.f32.mrb[0].mxu0
        %v2449 = vadd.f32 %v2384, %v2448
        %v2450 = vpop.f32.mrb[0].mxu0
        %2451 = vmatprep.mubr.bf16.mxu0 0
        %2452 = vmatmul.mubr.bf16.gmra.mrb[0].mxu0 %v2332
        %v2453 = vpop.f32.mrb[0].mxu0
        %v2454 = vadd.f32 %v2389, %v2453
        %v2455 = vpop.f32.mrb[0].mxu0
        %v2456 = vpop.f32.mrb[0].mxu0
        %v2457 = vadd.f32 %v2392, %v2456
        %v2458 = vpop.f32.mrb[0].mxu0
        %2459 = vmatprep.mubr.bf16.mxu0 0
        %2460 = vmatmul.mubr.bf16.gmra.mrb[0].mxu0 %v2335
        %v2461 = vpop.f32.mrb[0].mxu0
        %v2462 = vadd.f32 %v2397, %v2461
        %v2463 = vpop.f32.mrb[0].mxu0
        %v2464 = vpop.f32.mrb[0].mxu0
        %v2465 = vadd.f32 %v2400, %v2464
        %v2466 = vpop.f32.mrb[0].mxu0
        %2467 = vmatprep.mubr.bf16.mxu0 0
        %2468 = vmatmul.mubr.bf16.gmra.mrb[0].mxu0 %v2338
        %v2469 = vpop.f32.mrb[0].mxu0
        %v2470 = vadd.f32 %v2405, %v2469
        %v2471 = vpop.f32.mrb[0].mxu0
        %v2472 = vpop.f32.mrb[0].mxu0
        %v2473 = vadd.f32 %v2408, %v2472
        %v2474 = vpop.f32.mrb[0].mxu0
        %2475 = vdwg.mxu0
        %v2476 = vpack.c.bf16 %v2449, %v2446
        %v2477 = vpack.c.bf16 %v2457, %v2454
        %v2478 = vpack.c.bf16 %v2465, %v2462
        %v2479 = vpack.c.bf16 %v2473, %v2470
        %v2480 = vld [vmem:[%s6] sm:$0xff]
        %v2481 = vld [vmem:[%s6 + $0x8] sm:$0xff]
        %v2482 = vld [vmem:[%s6 + $0x10] sm:$0xff]
        %v2483 = vld [vmem:[%s6 + $0x18] sm:$0xff]
        %v2484 = vld [vmem:[%s6 + $0x20] sm:$0xff]
        %v2485 = vld [vmem:[%s6 + $0x28] sm:$0xff]
        %v2486 = vld [vmem:[%s6 + $0x30] sm:$0xff]
        %v2487 = vld [vmem:[%s6 + $0x38] sm:$0xff]
        %v2488 = vld [vmem:[%s6 + $0x40] sm:$0xff]
        %v2489 = vld [vmem:[%s6 + $0x48] sm:$0xff]
        %v2490 = vld [vmem:[%s6 + $0x50] sm:$0xff]
        %v2491 = vld [vmem:[%s6 + $0x58] sm:$0xff]
        %v2492 = vld [vmem:[%s6 + $0x60] sm:$0xff]
        %v2493 = vld [vmem:[%s6 + $0x68] sm:$0xff]
        %v2494 = vld [vmem:[%s6 + $0x70] sm:$0xff]
        %v2495 = vld [vmem:[%s6 + $0x78] sm:$0xff]
        %2500 = vrot.lane.b32.xlu0 %v2476, 120
        %v2501 = vpop.permute.xlu0 %2500
        %2502 = vrot.lane.b32.xlu0 %v2477, 120
        %v2503 = vpop.permute.xlu0 %2502
        %2504 = vrot.lane.b32.xlu0 %v2478, 120
        %v2505 = vpop.permute.xlu0 %2504
        %2506 = vrot.lane.b32.xlu0 %v2479, 120
        %v2507 = vpop.permute.xlu0 %2506
        %2512 = vrot.lane.b32.xlu0 %v2476, 112
        %v2513 = vpop.permute.xlu0 %2512
        %2514 = vrot.lane.b32.xlu0 %v2477, 112
        %v2515 = vpop.permute.xlu0 %2514
        %2516 = vrot.lane.b32.xlu0 %v2478, 112
        %v2517 = vpop.permute.xlu0 %2516
        %2518 = vrot.lane.b32.xlu0 %v2479, 112
        %v2519 = vpop.permute.xlu0 %2518
        %2524 = vrot.lane.b32.xlu0 %v2476, 127
        %v2525 = vpop.permute.xlu0 %2524
        %2526 = vrot.lane.b32.xlu0 %v2477, 127
        %v2527 = vpop.permute.xlu0 %2526
        %2528 = vrot.lane.b32.xlu0 %v2478, 127
        %v2529 = vpop.permute.xlu0 %2528
        %2530 = vrot.lane.b32.xlu0 %v2479, 127
        %v2531 = vpop.permute.xlu0 %2530
        %2532 = vrot.lane.b32.xlu0 %v2501, 127
        %v2533 = vpop.permute.xlu0 %2532
        %2534 = vrot.lane.b32.xlu0 %v2503, 127
        %v2535 = vpop.permute.xlu0 %2534
        %2536 = vrot.lane.b32.xlu0 %v2505, 127
        %v2537 = vpop.permute.xlu0 %2536
        %2538 = vrot.lane.b32.xlu0 %v2507, 127
        %v2539 = vpop.permute.xlu0 %2538
        %2540 = vrot.lane.b32.xlu0 %v2513, 127
        %v2541 = vpop.permute.xlu0 %2540
        %2542 = vrot.lane.b32.xlu0 %v2515, 127
        %v2543 = vpop.permute.xlu0 %2542
        %2544 = vrot.lane.b32.xlu0 %v2517, 127
        %v2545 = vpop.permute.xlu0 %2544
        %2546 = vrot.lane.b32.xlu0 %v2519, 127
        %v2547 = vpop.permute.xlu0 %2546
        %2560 = vrot.lane.b32.xlu0 %v2476, 126
        %v2561 = vpop.permute.xlu0 %2560
        %2562 = vrot.lane.b32.xlu0 %v2477, 126
        %v2563 = vpop.permute.xlu0 %2562
        %2564 = vrot.lane.b32.xlu0 %v2478, 126
        %v2565 = vpop.permute.xlu0 %2564
        %2566 = vrot.lane.b32.xlu0 %v2479, 126
        %v2567 = vpop.permute.xlu0 %2566
        %2568 = vrot.lane.b32.xlu0 %v2501, 126
        %v2569 = vpop.permute.xlu0 %2568
        %2570 = vrot.lane.b32.xlu0 %v2503, 126
        %v2571 = vpop.permute.xlu0 %2570
        %2572 = vrot.lane.b32.xlu0 %v2505, 126
        %v2573 = vpop.permute.xlu0 %2572
        %2574 = vrot.lane.b32.xlu0 %v2507, 126
        %v2575 = vpop.permute.xlu0 %2574
        %2576 = vrot.lane.b32.xlu0 %v2513, 126
        %v2577 = vpop.permute.xlu0 %2576
        %2578 = vrot.lane.b32.xlu0 %v2515, 126
        %v2579 = vpop.permute.xlu0 %2578
        %2580 = vrot.lane.b32.xlu0 %v2517, 126
        %v2581 = vpop.permute.xlu0 %2580
        %2582 = vrot.lane.b32.xlu0 %v2519, 126
        %v2583 = vpop.permute.xlu0 %2582
        %v2596 = vld [vmem:[%s5] sm:$0xff]
        %v2597 = vld [vmem:[%s5 + $0x8] sm:$0xff]
        %v2598 = vld [vmem:[%s5 + $0x10] sm:$0xf]
        %v2599 = vld [vmem:[%s5 + $0x14] sm:$0xff]
        %v2600 = vld [vmem:[%s5 + $0x1c] sm:$0xff]
        %v2601 = vld [vmem:[%s5 + $0x24] sm:$0xf]
        %v2602 = vld [vmem:[%s5 + $0x28] sm:$0xff]
        %v2603 = vld [vmem:[%s5 + $0x30] sm:$0xff]
        %v2604 = vld [vmem:[%s5 + $0x38] sm:$0xf]
        %v2605 = vld [vmem:[%s5 + $0x3c] sm:$0xff]
        %v2606 = vld [vmem:[%s5 + $0x44] sm:$0xff]
        %v2607 = vld [vmem:[%s5 + $0x4c] sm:$0xf]
        %v2608 = vld [vmem:[%s5 + $0x50] sm:$0xff]
        %v2609 = vld [vmem:[%s5 + $0x58] sm:$0xff]
        %v2610 = vld [vmem:[%s5 + $0x60] sm:$0xf]
        %v2611 = vld [vmem:[%s5 + $0x64] sm:$0xff]
        %v2612 = vld [vmem:[%s5 + $0x6c] sm:$0xff]
        %v2613 = vld [vmem:[%s5 + $0x74] sm:$0xf]
        %v2614 = vld [vmem:[%s5 + $0x78] sm:$0xff]
        %v2615 = vld [vmem:[%s5 + $0x80] sm:$0xff]
        %v2616 = vld [vmem:[%s5 + $0x88] sm:$0xf]
        %v2617 = vld [vmem:[%s5 + $0x8c] sm:$0xff]
        %v2618 = vld [vmem:[%s5 + $0x94] sm:$0xff]
        %v2619 = vld [vmem:[%s5 + $0x9c] sm:$0xf]
        %v2620 = vld [vmem:[%s5 + $0xa0] sm:$0xff]
        %v2621 = vld [vmem:[%s5 + $0xa8] sm:$0xff]
        %v2622 = vld [vmem:[%s5 + $0xb0] sm:$0xf]
        %v2623 = vld [vmem:[%s5 + $0xb4] sm:$0xff]
        %v2624 = vld [vmem:[%s5 + $0xbc] sm:$0xff]
        %v2625 = vld [vmem:[%s5 + $0xc4] sm:$0xf]
        %v2626 = vld [vmem:[%s5 + $0xc8] sm:$0xff]
        %v2627 = vld [vmem:[%s5 + $0xd0] sm:$0xff]
        %v2628 = vld [vmem:[%s5 + $0xd8] sm:$0xf]
        %v2629 = vld [vmem:[%s5 + $0xdc] sm:$0xff]
        %v2630 = vld [vmem:[%s5 + $0xe4] sm:$0xff]
        %v2631 = vld [vmem:[%s5 + $0xec] sm:$0xf]
        %v2632 = vld [vmem:[%s5 + $0xf0] sm:$0xff]
        %v2633 = vld [vmem:[%s5 + $0xf8] sm:$0xff]
        %v2634 = vld [vmem:[%s5 + $0x100] sm:$0xf]
        %v2635 = vld [vmem:[%s5 + $0x104] sm:$0xff]
        %v2636 = vld [vmem:[%s5 + $0x10c] sm:$0xff]
        %v2637 = vld [vmem:[%s5 + $0x114] sm:$0xf]
        %v2638 = vld [vmem:[%s5 + $0x118] sm:$0xff]
        %v2639 = vld [vmem:[%s5 + $0x120] sm:$0xff]
        %v2640 = vld [vmem:[%s5 + $0x128] sm:$0xf]
        %v2641 = vld [vmem:[%s5 + $0x12c] sm:$0xff]
        %v2642 = vld [vmem:[%s5 + $0x134] sm:$0xff]
        %v2643 = vld [vmem:[%s5 + $0x13c] sm:$0xf]
        %2645 = vset.pattern.permute.xlu0 0
        %2646 = vperm.xlu0 %2645, %v2480
        %v2647 = vpop.permute.xlu0 %2646
        %2650 = vset.pattern.permute.xlu0 0
        %2651 = vperm.xlu0 %2650, %v2481
        %v2652 = vpop.permute.xlu0 %2651
        %2655 = vset.pattern.permute.xlu0 0
        %2656 = vperm.xlu0 %2655, %v2482
        %v2657 = vpop.permute.xlu0 %2656
        %2660 = vset.pattern.permute.xlu0 0
        %2661 = vperm.xlu0 %2660, %v2483
        %v2662 = vpop.permute.xlu0 %2661
        %2665 = vset.pattern.permute.xlu0 0
        %2666 = vperm.xlu0 %2665, %v2484
        %v2667 = vpop.permute.xlu0 %2666
        %2670 = vset.pattern.permute.xlu0 0
        %2671 = vperm.xlu0 %2670, %v2485
        %v2672 = vpop.permute.xlu0 %2671
        %2675 = vset.pattern.permute.xlu0 0
        %2676 = vperm.xlu0 %2675, %v2486
        %v2677 = vpop.permute.xlu0 %2676
        %2680 = vset.pattern.permute.xlu0 0
        %2681 = vperm.xlu0 %2680, %v2487
        %v2682 = vpop.permute.xlu0 %2681
        %2685 = vset.pattern.permute.xlu0 0
        %2686 = vperm.xlu0 %2685, %v2488
        %v2687 = vpop.permute.xlu0 %2686
        %2690 = vset.pattern.permute.xlu0 0
        %2691 = vperm.xlu0 %2690, %v2489
        %v2692 = vpop.permute.xlu0 %2691
        %2695 = vset.pattern.permute.xlu0 0
        %2696 = vperm.xlu0 %2695, %v2490
        %v2697 = vpop.permute.xlu0 %2696
        %2700 = vset.pattern.permute.xlu0 0
        %2701 = vperm.xlu0 %2700, %v2491
        %v2702 = vpop.permute.xlu0 %2701
        %2705 = vset.pattern.permute.xlu0 0
        %2706 = vperm.xlu0 %2705, %v2492
        %v2707 = vpop.permute.xlu0 %2706
        %2710 = vset.pattern.permute.xlu0 0
        %2711 = vperm.xlu0 %2710, %v2493
        %v2712 = vpop.permute.xlu0 %2711
        %2715 = vset.pattern.permute.xlu0 0
        %2716 = vperm.xlu0 %2715, %v2494
        %v2717 = vpop.permute.xlu0 %2716
        %2720 = vset.pattern.permute.xlu0 0
        %2721 = vperm.xlu0 %2720, %v2495
        %v2722 = vpop.permute.xlu0 %2721
        %v2772 = vunpack.c.l.b16 %v2596
        %v2773 = vunpack.c.h.b16 %v2596
        %v2774 = vunpack.c.l.b16 %v2597
        %v2775 = vunpack.c.h.b16 %v2597
        %v2776 = vunpack.c.l.b16 %v2598
        %v2777 = vunpack.c.l.b16 %v2599
        %v2778 = vunpack.c.h.b16 %v2599
        %v2779 = vunpack.c.l.b16 %v2600
        %v2780 = vunpack.c.h.b16 %v2600
        %v2781 = vunpack.c.l.b16 %v2601
        %v2782 = vunpack.c.l.b16 %v2602
        %v2783 = vunpack.c.h.b16 %v2602
        %v2784 = vunpack.c.l.b16 %v2603
        %v2785 = vunpack.c.h.b16 %v2603
        %v2786 = vunpack.c.l.b16 %v2604
        %v2787 = vunpack.c.l.b16 %v2605
        %v2788 = vunpack.c.h.b16 %v2605
        %v2789 = vunpack.c.l.b16 %v2606
        %v2790 = vunpack.c.h.b16 %v2606
        %v2791 = vunpack.c.l.b16 %v2607
        %v2792 = vunpack.c.l.b16 %v2608
        %v2793 = vunpack.c.h.b16 %v2608
        %v2794 = vunpack.c.l.b16 %v2609
        %v2795 = vunpack.c.h.b16 %v2609
        %v2796 = vunpack.c.l.b16 %v2610
        %v2797 = vunpack.c.l.b16 %v2611
        %v2798 = vunpack.c.h.b16 %v2611
        %v2799 = vunpack.c.l.b16 %v2612
        %v2800 = vunpack.c.h.b16 %v2612
        %v2801 = vunpack.c.l.b16 %v2613
        %v2802 = vunpack.c.l.b16 %v2614
        %v2803 = vunpack.c.h.b16 %v2614
        %v2804 = vunpack.c.l.b16 %v2615
        %v2805 = vunpack.c.h.b16 %v2615
        %v2806 = vunpack.c.l.b16 %v2616
        %v2807 = vunpack.c.l.b16 %v2617
        %v2808 = vunpack.c.h.b16 %v2617
        %v2809 = vunpack.c.l.b16 %v2618
        %v2810 = vunpack.c.h.b16 %v2618
        %v2811 = vunpack.c.l.b16 %v2619
        %v2812 = vunpack.c.l.b16 %v2620
        %v2813 = vunpack.c.h.b16 %v2620
        %v2814 = vunpack.c.l.b16 %v2621
        %v2815 = vunpack.c.h.b16 %v2621
        %v2816 = vunpack.c.l.b16 %v2622
        %v2817 = vunpack.c.l.b16 %v2623
        %v2818 = vunpack.c.h.b16 %v2623
        %v2819 = vunpack.c.l.b16 %v2624
        %v2820 = vunpack.c.h.b16 %v2624
        %v2821 = vunpack.c.l.b16 %v2625
        %v2822 = vunpack.c.l.b16 %v2626
        %v2823 = vunpack.c.h.b16 %v2626
        %v2824 = vunpack.c.l.b16 %v2627
        %v2825 = vunpack.c.h.b16 %v2627
        %v2826 = vunpack.c.l.b16 %v2628
        %v2827 = vunpack.c.l.b16 %v2629
        %v2828 = vunpack.c.h.b16 %v2629
        %v2829 = vunpack.c.l.b16 %v2630
        %v2830 = vunpack.c.h.b16 %v2630
        %v2831 = vunpack.c.l.b16 %v2631
        %v2832 = vunpack.c.l.b16 %v2632
        %v2833 = vunpack.c.h.b16 %v2632
        %v2834 = vunpack.c.l.b16 %v2633
        %v2835 = vunpack.c.h.b16 %v2633
        %v2836 = vunpack.c.l.b16 %v2634
        %v2837 = vunpack.c.l.b16 %v2635
        %v2838 = vunpack.c.h.b16 %v2635
        %v2839 = vunpack.c.l.b16 %v2636
        %v2840 = vunpack.c.h.b16 %v2636
        %v2841 = vunpack.c.l.b16 %v2637
        %v2842 = vunpack.c.l.b16 %v2638
        %v2843 = vunpack.c.h.b16 %v2638
        %v2844 = vunpack.c.l.b16 %v2639
        %v2845 = vunpack.c.h.b16 %v2639
        %v2846 = vunpack.c.l.b16 %v2640
        %v2847 = vunpack.c.l.b16 %v2641
        %v2848 = vunpack.c.h.b16 %v2641
        %v2849 = vunpack.c.l.b16 %v2642
        %v2850 = vunpack.c.h.b16 %v2642
        %v2851 = vunpack.c.l.b16 %v2643
        %v2852 = vpack.c.b16 %v2777, %v2772
        %v2853 = vpack.c.b16 %v2778, %v2773
        %v2854 = vpack.c.b16 %v2779, %v2774
        %v2855 = vpack.c.b16 %v2780, %v2775
        %v2856 = vpack.c.b16 %v2781, %v2776
        %v2857 = vpack.c.b16 %v2787, %v2782
        %v2858 = vpack.c.b16 %v2788, %v2783
        %v2859 = vpack.c.b16 %v2789, %v2784
        %v2860 = vpack.c.b16 %v2790, %v2785
        %v2861 = vpack.c.b16 %v2791, %v2786
        %v2862 = vpack.c.b16 %v2797, %v2792
        %v2863 = vpack.c.b16 %v2798, %v2793
        %v2864 = vpack.c.b16 %v2799, %v2794
        %v2865 = vpack.c.b16 %v2800, %v2795
        %v2866 = vpack.c.b16 %v2801, %v2796
        %v2867 = vpack.c.b16 %v2807, %v2802
        %v2868 = vpack.c.b16 %v2808, %v2803
        %v2869 = vpack.c.b16 %v2809, %v2804
        %v2870 = vpack.c.b16 %v2810, %v2805
        %v2871 = vpack.c.b16 %v2811, %v2806
        %v2872 = vpack.c.b16 %v2817, %v2812
        %v2873 = vpack.c.b16 %v2818, %v2813
        %v2874 = vpack.c.b16 %v2819, %v2814
        %v2875 = vpack.c.b16 %v2820, %v2815
        %v2876 = vpack.c.b16 %v2821, %v2816
        %v2877 = vpack.c.b16 %v2827, %v2822
        %v2878 = vpack.c.b16 %v2828, %v2823
        %v2879 = vpack.c.b16 %v2829, %v2824
        %v2880 = vpack.c.b16 %v2830, %v2825
        %v2881 = vpack.c.b16 %v2831, %v2826
        %v2882 = vpack.c.b16 %v2837, %v2832
        %v2883 = vpack.c.b16 %v2838, %v2833
        %v2884 = vpack.c.b16 %v2839, %v2834
        %v2885 = vpack.c.b16 %v2840, %v2835
        %v2886 = vpack.c.b16 %v2841, %v2836
        %v2887 = vpack.c.b16 %v2847, %v2842
        %v2888 = vpack.c.b16 %v2848, %v2843
        %v2889 = vpack.c.b16 %v2849, %v2844
        %v2890 = vpack.c.b16 %v2850, %v2845
        %v2891 = vpack.c.b16 %v2851, %v2846
        %vm2924 = vcmask 523264
        %v2926 = vsel %vm2924, %v2856, 0
        %v2929 = vsel %vm2924, %v2861, 0
        %v2932 = vsel %vm2924, %v2866, 0
        %v2935 = vsel %vm2924, %v2871, 0
        %v2938 = vsel %vm2924, %v2876, 0
        %v2941 = vsel %vm2924, %v2881, 0
        %v2944 = vsel %vm2924, %v2886, 0
        %v2947 = vsel %vm2924, %v2891, 0
        %2949 = vmatprep.subr.bf16.mxu0 0
        %2950 = vmatpush1.bf16.msra.mxu0 %v2476
        %2951 = vmatprep.subr.bf16.mxu0 0
        %2952 = vmatpush1.bf16.msra.mxu0 %v2477
        %2953 = vmatprep.subr.bf16.mxu0 0
        %2954 = vmatpush1.bf16.msra.mxu0 %v2478
        %2955 = vmatprep.subr.bf16.mxu0 0
        %2956 = vmatpush1.bf16.msra.mxu0 %v2479
        %2957 = vmatprep.subr.bf16.mxu0 0
        %2958 = vmatpush1.bf16.msra.mxu0 %v2501
        %2959 = vmatprep.subr.bf16.mxu0 0
        %2960 = vmatpush1.bf16.msra.mxu0 %v2503
        %2961 = vmatprep.subr.bf16.mxu0 0
        %2962 = vmatpush1.bf16.msra.mxu0 %v2505
        %2963 = vmatprep.subr.bf16.mxu0 0
        %2964 = vmatpush1.bf16.msra.mxu0 %v2507
        %2965 = vmatprep.subr.bf16.mxu0 0
        %2966 = vmatpush1.bf16.msra.mxu0 %v2513
        %2967 = vmatprep.subr.bf16.mxu0 0
        %2968 = vmatpush1.bf16.msra.mxu0 %v2515
        %2969 = vmatprep.subr.bf16.mxu0 0
        %2970 = vmatpush1.bf16.msra.mxu0 %v2517
        %2971 = vmatprep.subr.bf16.mxu0 0
        %2972 = vmatpush1.bf16.msra.mxu0 %v2519
        %2973 = vmatprep.subr.bf16.mxu0 0
        %2974 = vmatpush1.bf16.msra.mxu0 %v2525
        %2975 = vmatprep.subr.bf16.mxu0 0
        %2976 = vmatpush1.bf16.msra.mxu0 %v2527
        %2977 = vmatprep.subr.bf16.mxu0 0
        %2978 = vmatpush1.bf16.msra.mxu0 %v2529
        %2979 = vmatprep.subr.bf16.mxu0 0
        %2980 = vmatpush1.bf16.msra.mxu0 %v2531
        %2981 = vmatprep.mubr.bf16.mxu0 %v2853
        %2982 = vmatmul.mubr.bf16.gmra.mrb[0].mxu0 %v2852
        %v2983 = vpop.f32.mrb[0].mxu0
        %v2984 = vadd.f32 %v2647, %v2983
        %v2985 = vpop.f32.mrb[0].mxu0
        %v2986 = vpop.f32.mrb[0].mxu0
        %v2987 = vadd.f32 %v2652, %v2986
        %v2988 = vpop.f32.mrb[0].mxu0
        %2989 = vmatprep.mubr.bf16.mxu0 %v2858
        %2990 = vmatmul.mubr.bf16.gmra.mrb[0].mxu0 %v2857
        %v2991 = vpop.f32.mrb[0].mxu0
        %v2992 = vadd.f32 %v2657, %v2991
        %v2993 = vpop.f32.mrb[0].mxu0
        %v2994 = vpop.f32.mrb[0].mxu0
        %v2995 = vadd.f32 %v2662, %v2994
        %v2996 = vpop.f32.mrb[0].mxu0
        %2997 = vmatprep.mubr.bf16.mxu0 %v2863
        %2998 = vmatmul.mubr.bf16.gmra.mrb[0].mxu0 %v2862
        %v2999 = vpop.f32.mrb[0].mxu0
        %v3000 = vadd.f32 %v2667, %v2999
        %v3001 = vpop.f32.mrb[0].mxu0
        %v3002 = vpop.f32.mrb[0].mxu0
        %v3003 = vadd.f32 %v2672, %v3002
        %v3004 = vpop.f32.mrb[0].mxu0
        %3005 = vmatprep.mubr.bf16.mxu0 %v2868
        %3006 = vmatmul.mubr.bf16.gmra.mrb[0].mxu0 %v2867
        %v3007 = vpop.f32.mrb[0].mxu0
        %v3008 = vadd.f32 %v2677, %v3007
        %v3009 = vpop.f32.mrb[0].mxu0
        %v3010 = vpop.f32.mrb[0].mxu0
        %v3011 = vadd.f32 %v2682, %v3010
        %v3012 = vpop.f32.mrb[0].mxu0
        %3013 = vmatprep.mubr.bf16.mxu0 %v2873
        %3014 = vmatmul.mubr.bf16.gmra.mrb[0].mxu0 %v2872
        %v3015 = vpop.f32.mrb[0].mxu0
        %v3016 = vadd.f32 %v2687, %v3015
        %v3017 = vpop.f32.mrb[0].mxu0
        %v3018 = vpop.f32.mrb[0].mxu0
        %v3019 = vadd.f32 %v2692, %v3018
        %v3020 = vpop.f32.mrb[0].mxu0
        %3021 = vmatprep.mubr.bf16.mxu0 %v2878
        %3022 = vmatmul.mubr.bf16.gmra.mrb[0].mxu0 %v2877
        %v3023 = vpop.f32.mrb[0].mxu0
        %v3024 = vadd.f32 %v2697, %v3023
        %v3025 = vpop.f32.mrb[0].mxu0
        %v3026 = vpop.f32.mrb[0].mxu0
        %v3027 = vadd.f32 %v2702, %v3026
        %v3028 = vpop.f32.mrb[0].mxu0
        %3029 = vmatprep.mubr.bf16.mxu0 %v2883
        %3030 = vmatmul.mubr.bf16.gmra.mrb[0].mxu0 %v2882
        %v3031 = vpop.f32.mrb[0].mxu0
        %v3032 = vadd.f32 %v2707, %v3031
        %v3033 = vpop.f32.mrb[0].mxu0
        %v3034 = vpop.f32.mrb[0].mxu0
        %v3035 = vadd.f32 %v2712, %v3034
        %v3036 = vpop.f32.mrb[0].mxu0
        %3037 = vmatprep.mubr.bf16.mxu0 %v2888
        %3038 = vmatmul.mubr.bf16.gmra.mrb[0].mxu0 %v2887
        %v3039 = vpop.f32.mrb[0].mxu0
        %v3040 = vadd.f32 %v2717, %v3039
        %v3041 = vpop.f32.mrb[0].mxu0
        %v3042 = vpop.f32.mrb[0].mxu0
        %v3043 = vadd.f32 %v2722, %v3042
        %v3044 = vpop.f32.mrb[0].mxu0
        %3045 = vdwg.mxu0
        %3046 = vmatprep.subr.bf16.mxu0 0
        %3047 = vmatpush1.bf16.msra.mxu0 %v2533
        %3048 = vmatprep.subr.bf16.mxu0 0
        %3049 = vmatpush1.bf16.msra.mxu0 %v2535
        %3050 = vmatprep.subr.bf16.mxu0 0
        %3051 = vmatpush1.bf16.msra.mxu0 %v2537
        %3052 = vmatprep.subr.bf16.mxu0 0
        %3053 = vmatpush1.bf16.msra.mxu0 %v2539
        %3054 = vmatprep.subr.bf16.mxu0 0
        %3055 = vmatpush1.bf16.msra.mxu0 %v2541
        %3056 = vmatprep.subr.bf16.mxu0 0
        %3057 = vmatpush1.bf16.msra.mxu0 %v2543
        %3058 = vmatprep.subr.bf16.mxu0 0
        %3059 = vmatpush1.bf16.msra.mxu0 %v2545
        %3060 = vmatprep.subr.bf16.mxu0 0
        %3061 = vmatpush1.bf16.msra.mxu0 %v2547
        %3062 = vmatprep.subr.bf16.mxu0 0
        %3063 = vmatpush1.bf16.msra.mxu0 %v2561
        %3064 = vmatprep.subr.bf16.mxu0 0
        %3065 = vmatpush1.bf16.msra.mxu0 %v2563
        %3066 = vmatprep.subr.bf16.mxu0 0
        %3067 = vmatpush1.bf16.msra.mxu0 %v2565
        %3068 = vmatprep.subr.bf16.mxu0 0
        %3069 = vmatpush1.bf16.msra.mxu0 %v2567
        %3070 = vmatprep.subr.bf16.mxu0 0
        %3071 = vmatpush1.bf16.msra.mxu0 %v2569
        %3072 = vmatprep.subr.bf16.mxu0 0
        %3073 = vmatpush1.bf16.msra.mxu0 %v2571
        %3074 = vmatprep.subr.bf16.mxu0 0
        %3075 = vmatpush1.bf16.msra.mxu0 %v2573
        %3076 = vmatprep.subr.bf16.mxu0 0
        %3077 = vmatpush1.bf16.msra.mxu0 %v2575
        %3078 = vmatprep.mubr.bf16.mxu0 %v2855
        %3079 = vmatmul.mubr.bf16.gmra.mrb[0].mxu0 %v2854
        %v3080 = vpop.f32.mrb[0].mxu0
        %v3081 = vadd.f32 %v2984, %v3080
        %v3082 = vpop.f32.mrb[0].mxu0
        %v3083 = vpop.f32.mrb[0].mxu0
        %v3084 = vadd.f32 %v2987, %v3083
        %v3085 = vpop.f32.mrb[0].mxu0
        %3086 = vmatprep.mubr.bf16.mxu0 %v2860
        %3087 = vmatmul.mubr.bf16.gmra.mrb[0].mxu0 %v2859
        %v3088 = vpop.f32.mrb[0].mxu0
        %v3089 = vadd.f32 %v2992, %v3088
        %v3090 = vpop.f32.mrb[0].mxu0
        %v3091 = vpop.f32.mrb[0].mxu0
        %v3092 = vadd.f32 %v2995, %v3091
        %v3093 = vpop.f32.mrb[0].mxu0
        %3094 = vmatprep.mubr.bf16.mxu0 %v2865
        %3095 = vmatmul.mubr.bf16.gmra.mrb[0].mxu0 %v2864
        %v3096 = vpop.f32.mrb[0].mxu0
        %v3097 = vadd.f32 %v3000, %v3096
        %v3098 = vpop.f32.mrb[0].mxu0
        %v3099 = vpop.f32.mrb[0].mxu0
        %v3100 = vadd.f32 %v3003, %v3099
        %v3101 = vpop.f32.mrb[0].mxu0
        %3102 = vmatprep.mubr.bf16.mxu0 %v2870
        %3103 = vmatmul.mubr.bf16.gmra.mrb[0].mxu0 %v2869
        %v3104 = vpop.f32.mrb[0].mxu0
        %v3105 = vadd.f32 %v3008, %v3104
        %v3106 = vpop.f32.mrb[0].mxu0
        %v3107 = vpop.f32.mrb[0].mxu0
        %v3108 = vadd.f32 %v3011, %v3107
        %v3109 = vpop.f32.mrb[0].mxu0
        %3110 = vmatprep.mubr.bf16.mxu0 %v2875
        %3111 = vmatmul.mubr.bf16.gmra.mrb[0].mxu0 %v2874
        %v3112 = vpop.f32.mrb[0].mxu0
        %v3113 = vadd.f32 %v3016, %v3112
        %v3114 = vpop.f32.mrb[0].mxu0
        %v3115 = vpop.f32.mrb[0].mxu0
        %v3116 = vadd.f32 %v3019, %v3115
        %v3117 = vpop.f32.mrb[0].mxu0
        %3118 = vmatprep.mubr.bf16.mxu0 %v2880
        %3119 = vmatmul.mubr.bf16.gmra.mrb[0].mxu0 %v2879
        %v3120 = vpop.f32.mrb[0].mxu0
        %v3121 = vadd.f32 %v3024, %v3120
        %v3122 = vpop.f32.mrb[0].mxu0
        %v3123 = vpop.f32.mrb[0].mxu0
        %v3124 = vadd.f32 %v3027, %v3123
        %v3125 = vpop.f32.mrb[0].mxu0
        %3126 = vmatprep.mubr.bf16.mxu0 %v2885
        %3127 = vmatmul.mubr.bf16.gmra.mrb[0].mxu0 %v2884
        %v3128 = vpop.f32.mrb[0].mxu0
        %v3129 = vadd.f32 %v3032, %v3128
        %v3130 = vpop.f32.mrb[0].mxu0
        %v3131 = vpop.f32.mrb[0].mxu0
        %v3132 = vadd.f32 %v3035, %v3131
        %v3133 = vpop.f32.mrb[0].mxu0
        %3134 = vmatprep.mubr.bf16.mxu0 %v2890
        %3135 = vmatmul.mubr.bf16.gmra.mrb[0].mxu0 %v2889
        %v3136 = vpop.f32.mrb[0].mxu0
        %v3137 = vadd.f32 %v3040, %v3136
        %v3138 = vpop.f32.mrb[0].mxu0
        %v3139 = vpop.f32.mrb[0].mxu0
        %v3140 = vadd.f32 %v3043, %v3139
        %v3141 = vpop.f32.mrb[0].mxu0
        %3142 = vdwg.mxu0
        %3143 = vmatprep.subr.bf16.mxu0 0
        %3144 = vmatpush1.bf16.msra.mxu0 %v2577
        %3145 = vmatprep.subr.bf16.mxu0 0
        %3146 = vmatpush1.bf16.msra.mxu0 %v2579
        %3147 = vmatprep.subr.bf16.mxu0 0
        %3148 = vmatpush1.bf16.msra.mxu0 %v2581
        %3149 = vmatprep.subr.bf16.mxu0 0
        %3150 = vmatpush1.bf16.msra.mxu0 %v2583
        %3151 = vmatprep.subr.bf16.mxu0 0
        %3152 = vmatpush1.bf16.msra.mxu0 0
        %3153 = vmatprep.subr.bf16.mxu0 0
        %3154 = vmatpush1.bf16.msra.mxu0 0
        %3155 = vmatprep.subr.bf16.mxu0 0
        %3156 = vmatpush1.bf16.msra.mxu0 0
        %3157 = vmatprep.subr.bf16.mxu0 0
        %3158 = vmatpush1.bf16.msra.mxu0 0
        %3159 = vmatprep.subr.bf16.mxu0 0
        %3160 = vmatpush1.bf16.msra.mxu0 0
        %3161 = vmatprep.subr.bf16.mxu0 0
        %3162 = vmatpush1.bf16.msra.mxu0 0
        %3163 = vmatprep.subr.bf16.mxu0 0
        %3164 = vmatpush1.bf16.msra.mxu0 0
        %3165 = vmatprep.subr.bf16.mxu0 0
        %3166 = vmatpush1.bf16.msra.mxu0 0
        %3167 = vmatprep.subr.bf16.mxu0 0
        %3168 = vmatpush1.bf16.msra.mxu0 0
        %3169 = vmatprep.subr.bf16.mxu0 0
        %3170 = vmatpush1.bf16.msra.mxu0 0
        %3171 = vmatprep.subr.bf16.mxu0 0
        %3172 = vmatpush1.bf16.msra.mxu0 0
        %3173 = vmatprep.subr.bf16.mxu0 0
        %3174 = vmatpush1.bf16.msra.mxu0 0
        %3175 = vmatprep.mubr.bf16.mxu0 0
        %3176 = vmatmul.mubr.bf16.gmra.mrb[0].mxu0 %v2926
        %v3177 = vpop.f32.mrb[0].mxu0
        %v3178 = vadd.f32 %v3081, %v3177
        %v3179 = vpop.f32.mrb[0].mxu0
        %v3180 = vpop.f32.mrb[0].mxu0
        %v3181 = vadd.f32 %v3084, %v3180
        %v3182 = vpop.f32.mrb[0].mxu0
        %3183 = vmatprep.mubr.bf16.mxu0 0
        %3184 = vmatmul.mubr.bf16.gmra.mrb[0].mxu0 %v2929
        %v3185 = vpop.f32.mrb[0].mxu0
        %v3186 = vadd.f32 %v3089, %v3185
        %v3187 = vpop.f32.mrb[0].mxu0
        %v3188 = vpop.f32.mrb[0].mxu0
        %v3189 = vadd.f32 %v3092, %v3188
        %v3190 = vpop.f32.mrb[0].mxu0
        %3191 = vmatprep.mubr.bf16.mxu0 0
        %3192 = vmatmul.mubr.bf16.gmra.mrb[0].mxu0 %v2932
        %v3193 = vpop.f32.mrb[0].mxu0
        %v3194 = vadd.f32 %v3097, %v3193
        %v3195 = vpop.f32.mrb[0].mxu0
        %v3196 = vpop.f32.mrb[0].mxu0
        %v3197 = vadd.f32 %v3100, %v3196
        %v3198 = vpop.f32.mrb[0].mxu0
        %3199 = vmatprep.mubr.bf16.mxu0 0
        %3200 = vmatmul.mubr.bf16.gmra.mrb[0].mxu0 %v2935
        %v3201 = vpop.f32.mrb[0].mxu0
        %v3202 = vadd.f32 %v3105, %v3201
        %v3203 = vpop.f32.mrb[0].mxu0
        %v3204 = vpop.f32.mrb[0].mxu0
        %v3205 = vadd.f32 %v3108, %v3204
        %v3206 = vpop.f32.mrb[0].mxu0
        %3207 = vmatprep.mubr.bf16.mxu0 0
        %3208 = vmatmul.mubr.bf16.gmra.mrb[0].mxu0 %v2938
        %v3209 = vpop.f32.mrb[0].mxu0
        %v3210 = vadd.f32 %v3113, %v3209
        %v3211 = vpop.f32.mrb[0].mxu0
        %v3212 = vpop.f32.mrb[0].mxu0
        %v3213 = vadd.f32 %v3116, %v3212
        %v3214 = vpop.f32.mrb[0].mxu0
        %3215 = vmatprep.mubr.bf16.mxu0 0
        %3216 = vmatmul.mubr.bf16.gmra.mrb[0].mxu0 %v2941
        %v3217 = vpop.f32.mrb[0].mxu0
        %v3218 = vadd.f32 %v3121, %v3217
        %v3219 = vpop.f32.mrb[0].mxu0
        %v3220 = vpop.f32.mrb[0].mxu0
        %v3221 = vadd.f32 %v3124, %v3220
        %v3222 = vpop.f32.mrb[0].mxu0
        %3223 = vmatprep.mubr.bf16.mxu0 0
        %3224 = vmatmul.mubr.bf16.gmra.mrb[0].mxu0 %v2944
        %v3225 = vpop.f32.mrb[0].mxu0
        %v3226 = vadd.f32 %v3129, %v3225
        %v3227 = vpop.f32.mrb[0].mxu0
        %v3228 = vpop.f32.mrb[0].mxu0
        %v3229 = vadd.f32 %v3132, %v3228
        %v3230 = vpop.f32.mrb[0].mxu0
        %3231 = vmatprep.mubr.bf16.mxu0 0
        %3232 = vmatmul.mubr.bf16.gmra.mrb[0].mxu0 %v2947
        %v3233 = vpop.f32.mrb[0].mxu0
        %v3234 = vadd.f32 %v3137, %v3233
        %v3235 = vpop.f32.mrb[0].mxu0
        %v3236 = vpop.f32.mrb[0].mxu0
        %v3237 = vadd.f32 %v3140, %v3236
        %v3238 = vpop.f32.mrb[0].mxu0
        %3239 = vdwg.mxu0
        %v3240 = vmax.f32 %v3178, 0.0
        %v3241 = vmax.f32 %v3181, 0.0
        %v3242 = vmax.f32 %v3186, 0.0
        %v3243 = vmax.f32 %v3189, 0.0
        %v3244 = vmax.f32 %v3194, 0.0
        %v3245 = vmax.f32 %v3197, 0.0
        %v3246 = vmax.f32 %v3202, 0.0
        %v3247 = vmax.f32 %v3205, 0.0
        %v3248 = vmax.f32 %v3210, 0.0
        %v3249 = vmax.f32 %v3213, 0.0
        %v3250 = vmax.f32 %v3218, 0.0
        %v3251 = vmax.f32 %v3221, 0.0
        %v3252 = vmax.f32 %v3226, 0.0
        %v3253 = vmax.f32 %v3229, 0.0
        %v3254 = vmax.f32 %v3234, 0.0
        %v3255 = vmax.f32 %v3237, 0.0
        %3272 = vrot.lane.b32.xlu0 %v3240, 127
        %v3273 = vpop.permute.xlu0 %3272
        %3274 = vrot.lane.b32.xlu0 %v3241, 127
        %v3275 = vpop.permute.xlu0 %3274
        %3276 = vrot.lane.b32.xlu0 %v3242, 127
        %v3277 = vpop.permute.xlu0 %3276
        %3278 = vrot.lane.b32.xlu0 %v3243, 127
        %v3279 = vpop.permute.xlu0 %3278
        %3280 = vrot.lane.b32.xlu0 %v3244, 127
        %v3281 = vpop.permute.xlu0 %3280
        %3282 = vrot.lane.b32.xlu0 %v3245, 127
        %v3283 = vpop.permute.xlu0 %3282
        %3284 = vrot.lane.b32.xlu0 %v3246, 127
        %v3285 = vpop.permute.xlu0 %3284
        %3286 = vrot.lane.b32.xlu0 %v3247, 127
        %v3287 = vpop.permute.xlu0 %3286
        %3288 = vrot.lane.b32.xlu0 %v3248, 127
        %v3289 = vpop.permute.xlu0 %3288
        %3290 = vrot.lane.b32.xlu0 %v3249, 127
        %v3291 = vpop.permute.xlu0 %3290
        %3292 = vrot.lane.b32.xlu0 %v3250, 127
        %v3293 = vpop.permute.xlu0 %3292
        %3294 = vrot.lane.b32.xlu0 %v3251, 127
        %v3295 = vpop.permute.xlu0 %3294
        %3296 = vrot.lane.b32.xlu0 %v3252, 127
        %v3297 = vpop.permute.xlu0 %3296
        %3298 = vrot.lane.b32.xlu0 %v3253, 127
        %v3299 = vpop.permute.xlu0 %3298
        %3300 = vrot.lane.b32.xlu0 %v3254, 127
        %v3301 = vpop.permute.xlu0 %3300
        %3302 = vrot.lane.b32.xlu0 %v3255, 127
        %v3303 = vpop.permute.xlu0 %3302
        %v3320 = vmax.f32 %v3240, %v3273
        %v3321 = vmax.f32 %v3241, %v3275
        %v3322 = vmax.f32 %v3242, %v3277
        %v3323 = vmax.f32 %v3243, %v3279
        %v3324 = vmax.f32 %v3244, %v3281
        %v3325 = vmax.f32 %v3245, %v3283
        %v3326 = vmax.f32 %v3246, %v3285
        %v3327 = vmax.f32 %v3247, %v3287
        %v3328 = vmax.f32 %v3248, %v3289
        %v3329 = vmax.f32 %v3249, %v3291
        %v3330 = vmax.f32 %v3250, %v3293
        %v3331 = vmax.f32 %v3251, %v3295
        %v3332 = vmax.f32 %v3252, %v3297
        %v3333 = vmax.f32 %v3253, %v3299
        %v3334 = vmax.f32 %v3254, %v3301
        %v3335 = vmax.f32 %v3255, %v3303
        %3352 = vrot.lane.b32.xlu0 %v3320, 120
        %v3353 = vpop.permute.xlu0 %3352
        %3354 = vrot.lane.b32.xlu0 %v3321, 120
        %v3355 = vpop.permute.xlu0 %3354
        %3356 = vrot.lane.b32.xlu0 %v3322, 120
        %v3357 = vpop.permute.xlu0 %3356
        %3358 = vrot.lane.b32.xlu0 %v3323, 120
        %v3359 = vpop.permute.xlu0 %3358
        %3360 = vrot.lane.b32.xlu0 %v3324, 120
        %v3361 = vpop.permute.xlu0 %3360
        %3362 = vrot.lane.b32.xlu0 %v3325, 120
        %v3363 = vpop.permute.xlu0 %3362
        %3364 = vrot.lane.b32.xlu0 %v3326, 120
        %v3365 = vpop.permute.xlu0 %3364
        %3366 = vrot.lane.b32.xlu0 %v3327, 120
        %v3367 = vpop.permute.xlu0 %3366
        %3368 = vrot.lane.b32.xlu0 %v3328, 120
        %v3369 = vpop.permute.xlu0 %3368
        %3370 = vrot.lane.b32.xlu0 %v3329, 120
        %v3371 = vpop.permute.xlu0 %3370
        %3372 = vrot.lane.b32.xlu0 %v3330, 120
        %v3373 = vpop.permute.xlu0 %3372
        %3374 = vrot.lane.b32.xlu0 %v3331, 120
        %v3375 = vpop.permute.xlu0 %3374
        %3376 = vrot.lane.b32.xlu0 %v3332, 120
        %v3377 = vpop.permute.xlu0 %3376
        %3378 = vrot.lane.b32.xlu0 %v3333, 120
        %v3379 = vpop.permute.xlu0 %3378
        %3380 = vrot.lane.b32.xlu0 %v3334, 120
        %v3381 = vpop.permute.xlu0 %3380
        %3382 = vrot.lane.b32.xlu0 %v3335, 120
        %v3383 = vpop.permute.xlu0 %3382
        %v3400 = vmax.f32 %v3320, %v3353
        %v3401 = vmax.f32 %v3321, %v3355
        %v3402 = vmax.f32 %v3322, %v3357
        %v3403 = vmax.f32 %v3323, %v3359
        %v3404 = vmax.f32 %v3324, %v3361
        %v3405 = vmax.f32 %v3325, %v3363
        %v3406 = vmax.f32 %v3326, %v3365
        %v3407 = vmax.f32 %v3327, %v3367
        %v3408 = vmax.f32 %v3328, %v3369
        %v3409 = vmax.f32 %v3329, %v3371
        %v3410 = vmax.f32 %v3330, %v3373
        %v3411 = vmax.f32 %v3331, %v3375
        %v3412 = vmax.f32 %v3332, %v3377
        %v3413 = vmax.f32 %v3333, %v3379
        %v3414 = vmax.f32 %v3334, %v3381
        %v3415 = vmax.f32 %v3335, %v3383
        %3432 = vrot.lane.b32.xlu0 %v3400, 126
        %v3433 = vpop.permute.xlu0 %3432
        %3434 = vrot.lane.b32.xlu0 %v3401, 126
        %v3435 = vpop.permute.xlu0 %3434
        %3436 = vrot.lane.b32.xlu0 %v3402, 126
        %v3437 = vpop.permute.xlu0 %3436
        %3438 = vrot.lane.b32.xlu0 %v3403, 126
        %v3439 = vpop.permute.xlu0 %3438
        %3440 = vrot.lane.b32.xlu0 %v3404, 126
        %v3441 = vpop.permute.xlu0 %3440
        %3442 = vrot.lane.b32.xlu0 %v3405, 126
        %v3443 = vpop.permute.xlu0 %3442
        %3444 = vrot.lane.b32.xlu0 %v3406, 126
        %v3445 = vpop.permute.xlu0 %3444
        %3446 = vrot.lane.b32.xlu0 %v3407, 126
        %v3447 = vpop.permute.xlu0 %3446
        %3448 = vrot.lane.b32.xlu0 %v3408, 126
        %v3449 = vpop.permute.xlu0 %3448
        %3450 = vrot.lane.b32.xlu0 %v3409, 126
        %v3451 = vpop.permute.xlu0 %3450
        %3452 = vrot.lane.b32.xlu0 %v3410, 126
        %v3453 = vpop.permute.xlu0 %3452
        %3454 = vrot.lane.b32.xlu0 %v3411, 126
        %v3455 = vpop.permute.xlu0 %3454
        %3456 = vrot.lane.b32.xlu0 %v3412, 126
        %v3457 = vpop.permute.xlu0 %3456
        %3458 = vrot.lane.b32.xlu0 %v3413, 126
        %v3459 = vpop.permute.xlu0 %3458
        %3460 = vrot.lane.b32.xlu0 %v3414, 126
        %v3461 = vpop.permute.xlu0 %3460
        %3462 = vrot.lane.b32.xlu0 %v3415, 126
        %v3463 = vpop.permute.xlu0 %3462
        %v3480 = vadd.f32 %v3400, %v3433
        %v3481 = vadd.f32 %v3401, %v3435
        %v3482 = vadd.f32 %v3402, %v3437
        %v3483 = vadd.f32 %v3403, %v3439
        %v3484 = vadd.f32 %v3404, %v3441
        %v3485 = vadd.f32 %v3405, %v3443
        %v3486 = vadd.f32 %v3406, %v3445
        %v3487 = vadd.f32 %v3407, %v3447
        %v3488 = vadd.f32 %v3408, %v3449
        %v3489 = vadd.f32 %v3409, %v3451
        %v3490 = vadd.f32 %v3410, %v3453
        %v3491 = vadd.f32 %v3411, %v3455
        %v3492 = vadd.f32 %v3412, %v3457
        %v3493 = vadd.f32 %v3413, %v3459
        %v3494 = vadd.f32 %v3414, %v3461
        %v3495 = vadd.f32 %v3415, %v3463
        %3496 = vrot.lane.b32.xlu0 %v3400, 124
        %v3497 = vpop.permute.xlu0 %3496
        %3498 = vrot.lane.b32.xlu0 %v3401, 124
        %v3499 = vpop.permute.xlu0 %3498
        %3500 = vrot.lane.b32.xlu0 %v3402, 124
        %v3501 = vpop.permute.xlu0 %3500
        %3502 = vrot.lane.b32.xlu0 %v3403, 124
        %v3503 = vpop.permute.xlu0 %3502
        %3504 = vrot.lane.b32.xlu0 %v3404, 124
        %v3505 = vpop.permute.xlu0 %3504
        %3506 = vrot.lane.b32.xlu0 %v3405, 124
        %v3507 = vpop.permute.xlu0 %3506
        %3508 = vrot.lane.b32.xlu0 %v3406, 124
        %v3509 = vpop.permute.xlu0 %3508
        %3510 = vrot.lane.b32.xlu0 %v3407, 124
        %v3511 = vpop.permute.xlu0 %3510
        %3512 = vrot.lane.b32.xlu0 %v3408, 124
        %v3513 = vpop.permute.xlu0 %3512
        %3514 = vrot.lane.b32.xlu0 %v3409, 124
        %v3515 = vpop.permute.xlu0 %3514
        %3516 = vrot.lane.b32.xlu0 %v3410, 124
        %v3517 = vpop.permute.xlu0 %3516
        %3518 = vrot.lane.b32.xlu0 %v3411, 124
        %v3519 = vpop.permute.xlu0 %3518
        %3520 = vrot.lane.b32.xlu0 %v3412, 124
        %v3521 = vpop.permute.xlu0 %3520
        %3522 = vrot.lane.b32.xlu0 %v3413, 124
        %v3523 = vpop.permute.xlu0 %3522
        %3524 = vrot.lane.b32.xlu0 %v3414, 124
        %v3525 = vpop.permute.xlu0 %3524
        %3526 = vrot.lane.b32.xlu0 %v3415, 124
        %v3527 = vpop.permute.xlu0 %3526
        %v3544 = vadd.f32 %v3480, %v3497
        %v3545 = vadd.f32 %v3481, %v3499
        %v3546 = vadd.f32 %v3482, %v3501
        %v3547 = vadd.f32 %v3483, %v3503
        %v3548 = vadd.f32 %v3484, %v3505
        %v3549 = vadd.f32 %v3485, %v3507
        %v3550 = vadd.f32 %v3486, %v3509
        %v3551 = vadd.f32 %v3487, %v3511
        %v3552 = vadd.f32 %v3488, %v3513
        %v3553 = vadd.f32 %v3489, %v3515
        %v3554 = vadd.f32 %v3490, %v3517
        %v3555 = vadd.f32 %v3491, %v3519
        %v3556 = vadd.f32 %v3492, %v3521
        %v3557 = vadd.f32 %v3493, %v3523
        %v3558 = vadd.f32 %v3494, %v3525
        %v3559 = vadd.f32 %v3495, %v3527
        %3560 = vrot.lane.b32.xlu0 %v3400, 112
        %v3561 = vpop.permute.xlu0 %3560
        %3562 = vrot.lane.b32.xlu0 %v3401, 112
        %v3563 = vpop.permute.xlu0 %3562
        %3564 = vrot.lane.b32.xlu0 %v3402, 112
        %v3565 = vpop.permute.xlu0 %3564
        %3566 = vrot.lane.b32.xlu0 %v3403, 112
        %v3567 = vpop.permute.xlu0 %3566
        %3568 = vrot.lane.b32.xlu0 %v3404, 112
        %v3569 = vpop.permute.xlu0 %3568
        %3570 = vrot.lane.b32.xlu0 %v3405, 112
        %v3571 = vpop.permute.xlu0 %3570
        %3572 = vrot.lane.b32.xlu0 %v3406, 112
        %v3573 = vpop.permute.xlu0 %3572
        %3574 = vrot.lane.b32.xlu0 %v3407, 112
        %v3575 = vpop.permute.xlu0 %3574
        %3576 = vrot.lane.b32.xlu0 %v3408, 112
        %v3577 = vpop.permute.xlu0 %3576
        %3578 = vrot.lane.b32.xlu0 %v3409, 112
        %v3579 = vpop.permute.xlu0 %3578
        %3580 = vrot.lane.b32.xlu0 %v3410, 112
        %v3581 = vpop.permute.xlu0 %3580
        %3582 = vrot.lane.b32.xlu0 %v3411, 112
        %v3583 = vpop.permute.xlu0 %3582
        %3584 = vrot.lane.b32.xlu0 %v3412, 112
        %v3585 = vpop.permute.xlu0 %3584
        %3586 = vrot.lane.b32.xlu0 %v3413, 112
        %v3587 = vpop.permute.xlu0 %3586
        %3588 = vrot.lane.b32.xlu0 %v3414, 112
        %v3589 = vpop.permute.xlu0 %3588
        %3590 = vrot.lane.b32.xlu0 %v3415, 112
        %v3591 = vpop.permute.xlu0 %3590
        %v3608 = vadd.f32 %v3544, %v3561
        %v3609 = vadd.f32 %v3545, %v3563
        %v3610 = vadd.f32 %v3546, %v3565
        %v3611 = vadd.f32 %v3547, %v3567
        %v3612 = vadd.f32 %v3548, %v3569
        %v3613 = vadd.f32 %v3549, %v3571
        %v3614 = vadd.f32 %v3550, %v3573
        %v3615 = vadd.f32 %v3551, %v3575
        %v3616 = vadd.f32 %v3552, %v3577
        %v3617 = vadd.f32 %v3553, %v3579
        %v3618 = vadd.f32 %v3554, %v3581
        %v3619 = vadd.f32 %v3555, %v3583
        %v3620 = vadd.f32 %v3556, %v3585
        %v3621 = vadd.f32 %v3557, %v3587
        %v3622 = vadd.f32 %v3558, %v3589
        %v3623 = vadd.f32 %v3559, %v3591
        %3624 = vrot.lane.b32.xlu0 %v3400, 110
        %v3625 = vpop.permute.xlu0 %3624
        %3626 = vrot.lane.b32.xlu0 %v3401, 110
        %v3627 = vpop.permute.xlu0 %3626
        %3628 = vrot.lane.b32.xlu0 %v3402, 110
        %v3629 = vpop.permute.xlu0 %3628
        %3630 = vrot.lane.b32.xlu0 %v3403, 110
        %v3631 = vpop.permute.xlu0 %3630
        %3632 = vrot.lane.b32.xlu0 %v3404, 110
        %v3633 = vpop.permute.xlu0 %3632
        %3634 = vrot.lane.b32.xlu0 %v3405, 110
        %v3635 = vpop.permute.xlu0 %3634
        %3636 = vrot.lane.b32.xlu0 %v3406, 110
        %v3637 = vpop.permute.xlu0 %3636
        %3638 = vrot.lane.b32.xlu0 %v3407, 110
        %v3639 = vpop.permute.xlu0 %3638
        %3640 = vrot.lane.b32.xlu0 %v3408, 110
        %v3641 = vpop.permute.xlu0 %3640
        %3642 = vrot.lane.b32.xlu0 %v3409, 110
        %v3643 = vpop.permute.xlu0 %3642
        %3644 = vrot.lane.b32.xlu0 %v3410, 110
        %v3645 = vpop.permute.xlu0 %3644
        %3646 = vrot.lane.b32.xlu0 %v3411, 110
        %v3647 = vpop.permute.xlu0 %3646
        %3648 = vrot.lane.b32.xlu0 %v3412, 110
        %v3649 = vpop.permute.xlu0 %3648
        %3650 = vrot.lane.b32.xlu0 %v3413, 110
        %v3651 = vpop.permute.xlu0 %3650
        %3652 = vrot.lane.b32.xlu0 %v3414, 110
        %v3653 = vpop.permute.xlu0 %3652
        %3654 = vrot.lane.b32.xlu0 %v3415, 110
        %v3655 = vpop.permute.xlu0 %3654
        %v3672 = vadd.f32 %v3608, %v3625
        %v3673 = vadd.f32 %v3609, %v3627
        %v3674 = vadd.f32 %v3610, %v3629
        %v3675 = vadd.f32 %v3611, %v3631
        %v3676 = vadd.f32 %v3612, %v3633
        %v3677 = vadd.f32 %v3613, %v3635
        %v3678 = vadd.f32 %v3614, %v3637
        %v3679 = vadd.f32 %v3615, %v3639
        %v3680 = vadd.f32 %v3616, %v3641
        %v3681 = vadd.f32 %v3617, %v3643
        %v3682 = vadd.f32 %v3618, %v3645
        %v3683 = vadd.f32 %v3619, %v3647
        %v3684 = vadd.f32 %v3620, %v3649
        %v3685 = vadd.f32 %v3621, %v3651
        %v3686 = vadd.f32 %v3622, %v3653
        %v3687 = vadd.f32 %v3623, %v3655
        %3688 = vrot.lane.b32.xlu0 %v3400, 108
        %v3689 = vpop.permute.xlu0 %3688
        %3690 = vrot.lane.b32.xlu0 %v3401, 108
        %v3691 = vpop.permute.xlu0 %3690
        %3692 = vrot.lane.b32.xlu0 %v3402, 108
        %v3693 = vpop.permute.xlu0 %3692
        %3694 = vrot.lane.b32.xlu0 %v3403, 108
        %v3695 = vpop.permute.xlu0 %3694
        %3696 = vrot.lane.b32.xlu0 %v3404, 108
        %v3697 = vpop.permute.xlu0 %3696
        %3698 = vrot.lane.b32.xlu0 %v3405, 108
        %v3699 = vpop.permute.xlu0 %3698
        %3700 = vrot.lane.b32.xlu0 %v3406, 108
        %v3701 = vpop.permute.xlu0 %3700
        %3702 = vrot.lane.b32.xlu0 %v3407, 108
        %v3703 = vpop.permute.xlu0 %3702
        %3704 = vrot.lane.b32.xlu0 %v3408, 108
        %v3705 = vpop.permute.xlu0 %3704
        %3706 = vrot.lane.b32.xlu0 %v3409, 108
        %v3707 = vpop.permute.xlu0 %3706
        %3708 = vrot.lane.b32.xlu0 %v3410, 108
        %v3709 = vpop.permute.xlu0 %3708
        %3710 = vrot.lane.b32.xlu0 %v3411, 108
        %v3711 = vpop.permute.xlu0 %3710
        %3712 = vrot.lane.b32.xlu0 %v3412, 108
        %v3713 = vpop.permute.xlu0 %3712
        %3714 = vrot.lane.b32.xlu0 %v3413, 108
        %v3715 = vpop.permute.xlu0 %3714
        %3716 = vrot.lane.b32.xlu0 %v3414, 108
        %v3717 = vpop.permute.xlu0 %3716
        %3718 = vrot.lane.b32.xlu0 %v3415, 108
        %v3719 = vpop.permute.xlu0 %3718
        %v3736 = vadd.f32 %v3672, %v3689
        %v3737 = vadd.f32 %v3673, %v3691
        %v3738 = vadd.f32 %v3674, %v3693
        %v3739 = vadd.f32 %v3675, %v3695
        %v3740 = vadd.f32 %v3676, %v3697
        %v3741 = vadd.f32 %v3677, %v3699
        %v3742 = vadd.f32 %v3678, %v3701
        %v3743 = vadd.f32 %v3679, %v3703
        %v3744 = vadd.f32 %v3680, %v3705
        %v3745 = vadd.f32 %v3681, %v3707
        %v3746 = vadd.f32 %v3682, %v3709
        %v3747 = vadd.f32 %v3683, %v3711
        %v3748 = vadd.f32 %v3684, %v3713
        %v3749 = vadd.f32 %v3685, %v3715
        %v3750 = vadd.f32 %v3686, %v3717
        %v3751 = vadd.f32 %v3687, %v3719
        %3752 = vrot.lane.b32.xlu0 %v3400, 96
        %v3753 = vpop.permute.xlu0 %3752
        %3754 = vrot.lane.b32.xlu0 %v3401, 96
        %v3755 = vpop.permute.xlu0 %3754
        %3756 = vrot.lane.b32.xlu0 %v3402, 96
        %v3757 = vpop.permute.xlu0 %3756
        %3758 = vrot.lane.b32.xlu0 %v3403, 96
        %v3759 = vpop.permute.xlu0 %3758
        %3760 = vrot.lane.b32.xlu0 %v3404, 96
        %v3761 = vpop.permute.xlu0 %3760
        %3762 = vrot.lane.b32.xlu0 %v3405, 96
        %v3763 = vpop.permute.xlu0 %3762
        %3764 = vrot.lane.b32.xlu0 %v3406, 96
        %v3765 = vpop.permute.xlu0 %3764
        %3766 = vrot.lane.b32.xlu0 %v3407, 96
        %v3767 = vpop.permute.xlu0 %3766
        %3768 = vrot.lane.b32.xlu0 %v3408, 96
        %v3769 = vpop.permute.xlu0 %3768
        %3770 = vrot.lane.b32.xlu0 %v3409, 96
        %v3771 = vpop.permute.xlu0 %3770
        %3772 = vrot.lane.b32.xlu0 %v3410, 96
        %v3773 = vpop.permute.xlu0 %3772
        %3774 = vrot.lane.b32.xlu0 %v3411, 96
        %v3775 = vpop.permute.xlu0 %3774
        %3776 = vrot.lane.b32.xlu0 %v3412, 96
        %v3777 = vpop.permute.xlu0 %3776
        %3778 = vrot.lane.b32.xlu0 %v3413, 96
        %v3779 = vpop.permute.xlu0 %3778
        %3780 = vrot.lane.b32.xlu0 %v3414, 96
        %v3781 = vpop.permute.xlu0 %3780
        %3782 = vrot.lane.b32.xlu0 %v3415, 96
        %v3783 = vpop.permute.xlu0 %3782
        %v3800 = vadd.f32 %v3736, %v3753
        %v3801 = vadd.f32 %v3737, %v3755
        %v3802 = vadd.f32 %v3738, %v3757
        %v3803 = vadd.f32 %v3739, %v3759
        %v3804 = vadd.f32 %v3740, %v3761
        %v3805 = vadd.f32 %v3741, %v3763
        %v3806 = vadd.f32 %v3742, %v3765
        %v3807 = vadd.f32 %v3743, %v3767
        %v3808 = vadd.f32 %v3744, %v3769
        %v3809 = vadd.f32 %v3745, %v3771
        %v3810 = vadd.f32 %v3746, %v3773
        %v3811 = vadd.f32 %v3747, %v3775
        %v3812 = vadd.f32 %v3748, %v3777
        %v3813 = vadd.f32 %v3749, %v3779
        %v3814 = vadd.f32 %v3750, %v3781
        %v3815 = vadd.f32 %v3751, %v3783
        %3816 = vrot.lane.b32.xlu0 %v3400, 94
        %v3817 = vpop.permute.xlu0 %3816
        %3818 = vrot.lane.b32.xlu0 %v3401, 94
        %v3819 = vpop.permute.xlu0 %3818
        %3820 = vrot.lane.b32.xlu0 %v3402, 94
        %v3821 = vpop.permute.xlu0 %3820
        %3822 = vrot.lane.b32.xlu0 %v3403, 94
        %v3823 = vpop.permute.xlu0 %3822
        %3824 = vrot.lane.b32.xlu0 %v3404, 94
        %v3825 = vpop.permute.xlu0 %3824
        %3826 = vrot.lane.b32.xlu0 %v3405, 94
        %v3827 = vpop.permute.xlu0 %3826
        %3828 = vrot.lane.b32.xlu0 %v3406, 94
        %v3829 = vpop.permute.xlu0 %3828
        %3830 = vrot.lane.b32.xlu0 %v3407, 94
        %v3831 = vpop.permute.xlu0 %3830
        %3832 = vrot.lane.b32.xlu0 %v3408, 94
        %v3833 = vpop.permute.xlu0 %3832
        %3834 = vrot.lane.b32.xlu0 %v3409, 94
        %v3835 = vpop.permute.xlu0 %3834
        %3836 = vrot.lane.b32.xlu0 %v3410, 94
        %v3837 = vpop.permute.xlu0 %3836
        %3838 = vrot.lane.b32.xlu0 %v3411, 94
        %v3839 = vpop.permute.xlu0 %3838
        %3840 = vrot.lane.b32.xlu0 %v3412, 94
        %v3841 = vpop.permute.xlu0 %3840
        %3842 = vrot.lane.b32.xlu0 %v3413, 94
        %v3843 = vpop.permute.xlu0 %3842
        %3844 = vrot.lane.b32.xlu0 %v3414, 94
        %v3845 = vpop.permute.xlu0 %3844
        %3846 = vrot.lane.b32.xlu0 %v3415, 94
        %v3847 = vpop.permute.xlu0 %3846
        %v3864 = vadd.f32 %v3800, %v3817
        %v3865 = vadd.f32 %v3801, %v3819
        %v3866 = vadd.f32 %v3802, %v3821
        %v3867 = vadd.f32 %v3803, %v3823
        %v3868 = vadd.f32 %v3804, %v3825
        %v3869 = vadd.f32 %v3805, %v3827
        %v3870 = vadd.f32 %v3806, %v3829
        %v3871 = vadd.f32 %v3807, %v3831
        %v3872 = vadd.f32 %v3808, %v3833
        %v3873 = vadd.f32 %v3809, %v3835
        %v3874 = vadd.f32 %v3810, %v3837
        %v3875 = vadd.f32 %v3811, %v3839
        %v3876 = vadd.f32 %v3812, %v3841
        %v3877 = vadd.f32 %v3813, %v3843
        %v3878 = vadd.f32 %v3814, %v3845
        %v3879 = vadd.f32 %v3815, %v3847
        %3880 = vrot.lane.b32.xlu0 %v3400, 92
        %v3881 = vpop.permute.xlu0 %3880
        %3882 = vrot.lane.b32.xlu0 %v3401, 92
        %v3883 = vpop.permute.xlu0 %3882
        %3884 = vrot.lane.b32.xlu0 %v3402, 92
        %v3885 = vpop.permute.xlu0 %3884
        %3886 = vrot.lane.b32.xlu0 %v3403, 92
        %v3887 = vpop.permute.xlu0 %3886
        %3888 = vrot.lane.b32.xlu0 %v3404, 92
        %v3889 = vpop.permute.xlu0 %3888
        %3890 = vrot.lane.b32.xlu0 %v3405, 92
        %v3891 = vpop.permute.xlu0 %3890
        %3892 = vrot.lane.b32.xlu0 %v3406, 92
        %v3893 = vpop.permute.xlu0 %3892
        %3894 = vrot.lane.b32.xlu0 %v3407, 92
        %v3895 = vpop.permute.xlu0 %3894
        %3896 = vrot.lane.b32.xlu0 %v3408, 92
        %v3897 = vpop.permute.xlu0 %3896
        %3898 = vrot.lane.b32.xlu0 %v3409, 92
        %v3899 = vpop.permute.xlu0 %3898
        %3900 = vrot.lane.b32.xlu0 %v3410, 92
        %v3901 = vpop.permute.xlu0 %3900
        %3902 = vrot.lane.b32.xlu0 %v3411, 92
        %v3903 = vpop.permute.xlu0 %3902
        %3904 = vrot.lane.b32.xlu0 %v3412, 92
        %v3905 = vpop.permute.xlu0 %3904
        %3906 = vrot.lane.b32.xlu0 %v3413, 92
        %v3907 = vpop.permute.xlu0 %3906
        %3908 = vrot.lane.b32.xlu0 %v3414, 92
        %v3909 = vpop.permute.xlu0 %3908
        %3910 = vrot.lane.b32.xlu0 %v3415, 92
        %v3911 = vpop.permute.xlu0 %3910
        %v3928 = vadd.f32 %v3864, %v3881
        %v3929 = vadd.f32 %v3865, %v3883
        %v3930 = vadd.f32 %v3866, %v3885
        %v3931 = vadd.f32 %v3867, %v3887
        %v3932 = vadd.f32 %v3868, %v3889
        %v3933 = vadd.f32 %v3869, %v3891
        %v3934 = vadd.f32 %v3870, %v3893
        %v3935 = vadd.f32 %v3871, %v3895
        %v3936 = vadd.f32 %v3872, %v3897
        %v3937 = vadd.f32 %v3873, %v3899
        %v3938 = vadd.f32 %v3874, %v3901
        %v3939 = vadd.f32 %v3875, %v3903
        %v3940 = vadd.f32 %v3876, %v3905
        %v3941 = vadd.f32 %v3877, %v3907
        %v3942 = vadd.f32 %v3878, %v3909
        %v3943 = vadd.f32 %v3879, %v3911
        %v3944 = vmul.f32 %v3928, 0.11111111
        %v3945 = vmul.f32 %v3929, 0.11111111
        %v3946 = vmul.f32 %v3930, 0.11111111
        %v3947 = vmul.f32 %v3931, 0.11111111
        %v3948 = vmul.f32 %v3932, 0.11111111
        %v3949 = vmul.f32 %v3933, 0.11111111
        %v3950 = vmul.f32 %v3934, 0.11111111
        %v3951 = vmul.f32 %v3935, 0.11111111
        %v3952 = vmul.f32 %v3936, 0.11111111
        %v3953 = vmul.f32 %v3937, 0.11111111
        %v3954 = vmul.f32 %v3938, 0.11111111
        %v3955 = vmul.f32 %v3939, 0.11111111
        %v3956 = vmul.f32 %v3940, 0.11111111
        %v3957 = vmul.f32 %v3941, 0.11111111
        %v3958 = vmul.f32 %v3942, 0.11111111
        %v3959 = vmul.f32 %v3943, 0.11111111
        %v3960 = vld [vmem:[%s8] sm:$0xff]
        %v3961 = vld [vmem:[%s8 + $0x8] sm:$0xff]
        %v3962 = vld [vmem:[%s8 + $0x10] sm:$0xff]
        %v3963 = vld [vmem:[%s8 + $0x18] sm:$0xff]
        %v3964 = vld [vmem:[%s8 + $0x20] sm:$0xff]
        %v3965 = vld [vmem:[%s8 + $0x28] sm:$0xff]
        %v3966 = vld [vmem:[%s8 + $0x30] sm:$0xff]
        %v3967 = vld [vmem:[%s8 + $0x38] sm:$0xff]
        %v3968 = vld [vmem:[%s8 + $0x40] sm:$0xff]
        %v3969 = vld [vmem:[%s8 + $0x48] sm:$0xff]
        %v3970 = vld [vmem:[%s8 + $0x50] sm:$0xff]
        %v3971 = vld [vmem:[%s8 + $0x58] sm:$0xff]
        %v3972 = vld [vmem:[%s8 + $0x60] sm:$0xff]
        %v3973 = vld [vmem:[%s8 + $0x68] sm:$0xff]
        %v3974 = vld [vmem:[%s8 + $0x70] sm:$0xff]
        %v3975 = vld [vmem:[%s8 + $0x78] sm:$0xff]
        %3977 = vset.pattern.permute.xlu0 0
        %3978 = vperm.xlu0 %3977, %v3944
        %v3979 = vpop.permute.xlu0 %3978
        %3982 = vset.pattern.permute.xlu0 0
        %3983 = vperm.xlu0 %3982, %v3945
        %v3984 = vpop.permute.xlu0 %3983
        %3987 = vset.pattern.permute.xlu0 0
        %3988 = vperm.xlu0 %3987, %v3946
        %v3989 = vpop.permute.xlu0 %3988
        %3992 = vset.pattern.permute.xlu0 0
        %3993 = vperm.xlu0 %3992, %v3947
        %v3994 = vpop.permute.xlu0 %3993
        %3997 = vset.pattern.permute.xlu0 0
        %3998 = vperm.xlu0 %3997, %v3948
        %v3999 = vpop.permute.xlu0 %3998
        %4002 = vset.pattern.permute.xlu0 0
        %4003 = vperm.xlu0 %4002, %v3949
        %v4004 = vpop.permute.xlu0 %4003
        %4007 = vset.pattern.permute.xlu0 0
        %4008 = vperm.xlu0 %4007, %v3950
        %v4009 = vpop.permute.xlu0 %4008
        %4012 = vset.pattern.permute.xlu0 0
        %4013 = vperm.xlu0 %4012, %v3951
        %v4014 = vpop.permute.xlu0 %4013
        %4017 = vset.pattern.permute.xlu0 0
        %4018 = vperm.xlu0 %4017, %v3952
        %v4019 = vpop.permute.xlu0 %4018
        %4022 = vset.pattern.permute.xlu0 0
        %4023 = vperm.xlu0 %4022, %v3953
        %v4024 = vpop.permute.xlu0 %4023
        %4027 = vset.pattern.permute.xlu0 0
        %4028 = vperm.xlu0 %4027, %v3954
        %v4029 = vpop.permute.xlu0 %4028
        %4032 = vset.pattern.permute.xlu0 0
        %4033 = vperm.xlu0 %4032, %v3955
        %v4034 = vpop.permute.xlu0 %4033
        %4037 = vset.pattern.permute.xlu0 0
        %4038 = vperm.xlu0 %4037, %v3956
        %v4039 = vpop.permute.xlu0 %4038
        %4042 = vset.pattern.permute.xlu0 0
        %4043 = vperm.xlu0 %4042, %v3957
        %v4044 = vpop.permute.xlu0 %4043
        %4047 = vset.pattern.permute.xlu0 0
        %4048 = vperm.xlu0 %4047, %v3958
        %v4049 = vpop.permute.xlu0 %4048
        %4052 = vset.pattern.permute.xlu0 0
        %4053 = vperm.xlu0 %4052, %v3959
        %v4054 = vpop.permute.xlu0 %4053
        %v4056 = vmul.f32 %v3979, %v3960
        %v4057 = vmul.f32 %v3984, %v3961
        %v4058 = vmul.f32 %v3989, %v3962
        %v4059 = vmul.f32 %v3994, %v3963
        %v4060 = vmul.f32 %v3999, %v3964
        %v4061 = vmul.f32 %v4004, %v3965
        %v4062 = vmul.f32 %v4009, %v3966
        %v4063 = vmul.f32 %v4014, %v3967
        %v4064 = vmul.f32 %v4019, %v3968
        %v4065 = vmul.f32 %v4024, %v3969
        %v4066 = vmul.f32 %v4029, %v3970
        %v4067 = vmul.f32 %v4034, %v3971
        %v4068 = vmul.f32 %v4039, %v3972
        %v4069 = vmul.f32 %v4044, %v3973
        %v4070 = vmul.f32 %v4049, %v3974
        %v4071 = vmul.f32 %v4054, %v3975
        %v4072 = vadd.f32 %v4056, %v4057
        %v4073 = vadd.f32 %v4072, %v4058
        %v4074 = vadd.f32 %v4073, %v4059
        %v4075 = vadd.f32 %v4074, %v4060
        %v4076 = vadd.f32 %v4075, %v4061
        %v4077 = vadd.f32 %v4076, %v4062
        %v4078 = vadd.f32 %v4077, %v4063
        %v4079 = vadd.f32 %v4078, %v4064
        %v4080 = vadd.f32 %v4079, %v4065
        %v4081 = vadd.f32 %v4080, %v4066
        %v4082 = vadd.f32 %v4081, %v4067
        %v4083 = vadd.f32 %v4082, %v4068
        %v4084 = vadd.f32 %v4083, %v4069
        %v4085 = vadd.f32 %v4084, %v4070
        %v4086 = vadd.f32 %v4085, %v4071
        %v4087 = vrot.slane %v4086, 4
        %v4088 = vadd.f32 %v4086, %v4087
        %v4089 = vrot.slane %v4088, 2
        %v4090 = vadd.f32 %v4088, %v4089
        %v4091 = vrot.slane %v4090, 1
        %v4092 = vadd.f32 %v4090, %v4091
        %v4093 = vld [vmem:[%s9] sm:$0x1]
        %v4094 = vadd.f32 %v4092, %v4093
        %4095 = vst [vmem:[%s351] sm:$0x1] %v4094
        %s4096 = sand.u32 %s247, 1
        %s4097 = scalar_lea.sflag [#allocation3], %s4096
        %s4098 = sand.u32 %s247, 1
        %s4099 = scalar_lea.vmem [#allocation2], %s4098
        // Predicated region
        $region61: #{base_model_forward.1} parent=59 // pred_check
          %p4100 = pneg %p257
        $region62: #{base_model_forward.1} parent=59 // pred_check_branch
          %4102 = sbr.rel (%p4100) target = $region64
        $region63: #{base_model_forward.1} parent=59 // pred_region
          %s4104 = ssub.s32 16, 16
          %4105 = vsyncadd %s4097, %s4104
          %s4106 = smul.addr %s24, 16
          %s4107 = scalar_lea.hbm %s10, %s4106
          %s4109 = sshll.u32 %s4099, 4
          %s4110 = int_to_ptr.vmem [resolvable:$true] %s4109
          %4112 = dma.vmem_to_hbm [thread:$0]  %s4110, 16, %s4107, %s4097
        $region64: #{base_model_forward.1} parent=59 // pred_fallthru
          _
      $region60: #{base_model_forward.1} parent=5 // pred_fallthru
        _
      %p4113 = scmp.le.s32.totalorder 2, %s19
      // Predicated region
      $region65: #{base_model_forward.1} parent=5 // pred_check
        %p4114 = pneg %p4113
      $region66: #{base_model_forward.1} parent=5 // pred_check_branch
        %4116 = sbr.rel (%p4114) target = $region68
      $region67: #{base_model_forward.1} parent=5 // pred_region
        %s4117 = ssub.s32 %s19, 2
        // Predicated region
        $region69: #{base_model_forward.1} parent=67 // pred_check
          %p4118 = pneg %p263
        $region70: #{base_model_forward.1} parent=67 // pred_check_branch
          %4120 = sbr.rel (%p4118) target = $region72
        $region71: #{base_model_forward.1} parent=67 // pred_region
          %s4121 = sand.u32 %s248, 1
          %s4122 = scalar_lea.sflag [#allocation3], %s4121
          %s4123 = sand.u32 %s248, 1
          %s4124 = scalar_lea.vmem [#allocation2], %s4123
          %4125 = dma.done %s4122, 16
        $region72: #{base_model_forward.1} parent=67 // pred_fallthru
          _
      $region68: #{base_model_forward.1} parent=5 // pred_fallthru
        _
    $region6: #{base_model_forward.1} parent=1 // loop_footer
      %s23 = sadd.s32 1, %s19
    $region7: #{base_model_forward.1} parent=1 // loop_footer_branch
      %18 = sbr.rel target = $region3
    $region8: #{base_model_forward.1} parent=1 // loop_exit
      _
    %4126 = vsyncpa [#allocation3], 1
    %s4127 = scalar_lea.sflag [#allocation3], 1
    %4128 = vsyncpa %s4127, 1

</llo_original>
